<compile_context>
chip_gen: v5e
topology: v5e:2x2
jax: 0.10.0
libtpu: 0.0.40
codegen_flags: <defaults>
</compile_context>

<pallas_src>
from functools import partial

import jax
import jax.numpy as jnp
from jax.experimental import pallas as pl
from jax.experimental.pallas import tpu as pltpu

# ----------------------------- configuration --------------------------------
B = 2
IMG = 32                      # stands in for 224
PATCH = 16                    # same patch size as vit_base_patch16_224
GRID = IMG // PATCH           # 2
N_PATCH = GRID * GRID         # 4 patches
SEQ = N_PATCH + 1             # +1 cls token = 5
EMBED = 128                   # stands in for 768
HEADS = 4                     # stands in for 12
HEAD_DIM = EMBED // HEADS     # 32
MLP = 4 * EMBED               # mlp_ratio = 4
DEPTH = 2                     # stands in for 12 blocks
NUM_CLASSES = 1
EPS = 1e-6                    # timm ViT LayerNorm eps
PP = PATCH * PATCH            # 256 (channel dim folded into the weight)
N_VEC_ROWS = DEPTH * 8 + 4    # packed per-layer vectors + head vectors


# ------------------------------ fused Pallas kernel --------------------------
def _vit_forward_kernel(
    nb,                             # static python int: batch size
    patch_ref,                      # (nb*SEQ, PP)  bf16, rows b*SEQ are zeros (cls slots)
    pe_w_ref,                       # (PP, EMBED)   bf16 (channel-summed conv weight)
    base_ref,                       # (nb*SEQ, EMBED) f32: cls+pos[0] ; pos[i]+patch_b
    vec_ref,                        # (N_VEC_ROWS, MLP) f32 packed vectors
    qkv_w_ref,                      # (DEPTH, EMBED, 3*EMBED) bf16 (scale folded into q cols)
    proj_w_ref,                     # (DEPTH, EMBED, EMBED)   bf16
    fc1_w_ref,                      # (DEPTH, EMBED, MLP)     bf16
    fc2_w_ref,                      # (DEPTH, MLP, EMBED)     bf16
    out_ref,                        # (nb, EMBED) f32 (lane-dense; col 0 = logit)
):
    f32 = jnp.float32
    bf16 = jnp.bfloat16

    def layernorm(x, g, b):
        mu = jnp.mean(x, axis=-1, keepdims=True)
        xc = x - mu
        var = jnp.mean(xc * xc, axis=-1, keepdims=True)    # biased var, like torch
        return (xc * jax.lax.rsqrt(var + EPS)) * g + b

    def vrow(r, width):
        return vec_ref[r:r + 1, 0:width]                   # (1, width) f32

    # --- patch embedding (zero rows at each sample's cls slot keep it untouched)
    tok = base_ref[...] + jnp.dot(patch_ref[...], pe_w_ref[...],
                                  preferred_element_type=f32)      # (nb*SEQ, E) f32

    for d in range(DEPTH):
        r0 = d * 8
        # ---------------- attention sub-block (pre-norm) ----------------
        h = layernorm(tok, vrow(r0 + 0, EMBED), vrow(r0 + 1, EMBED))
        qkv = jnp.dot(h.astype(bf16), qkv_w_ref[d],
                      preferred_element_type=f32) + vrow(r0 + 2, 3 * EMBED)

        o_rows = []
        for bb in range(nb):                       # per-sample 5x5 attention
            q0 = bb * SEQ
            heads = []
            for hh in range(HEADS):
                lo = hh * HEAD_DIM
                q = qkv[q0:q0 + SEQ, lo:lo + HEAD_DIM]              # scale pre-folded
                k = qkv[q0:q0 + SEQ, EMBED + lo:EMBED + lo + HEAD_DIM]
                v = qkv[q0:q0 + SEQ, 2 * EMBED + lo:2 * EMBED + lo + HEAD_DIM]
                s = jax.lax.dot_general(
                    q, k, dimension_numbers=(((1,), (1,)), ((), ())),
                    preferred_element_type=f32)                     # (SEQ, SEQ)
                s = s - jnp.max(s, axis=-1, keepdims=True)
                p = jnp.exp(s)
                p = p * pl.reciprocal(jnp.sum(p, axis=-1, keepdims=True),
                                      approx=True)
                heads.append(jnp.dot(p, v, preferred_element_type=f32))  # (SEQ, HD)
            o_rows.append(jnp.concatenate(heads, axis=1))           # (SEQ, EMBED)
        o_all = jnp.concatenate(o_rows, axis=0).astype(bf16)        # (nb*SEQ, EMBED)

        # single K=128 proj matmul for the whole batch
        tok = tok + jnp.dot(o_all, proj_w_ref[d],
                            preferred_element_type=f32) + vrow(r0 + 3, EMBED)

        # ---------------- MLP sub-block (pre-norm) -----------------------
        h2 = layernorm(tok, vrow(r0 + 4, EMBED), vrow(r0 + 5, EMBED))
        h2 = jnp.dot(h2.astype(bf16), fc1_w_ref[d],
                     preferred_element_type=f32) + vrow(r0 + 6, MLP)
        # tanh GELU -> EUP slot.  (torch nn.GELU is exact erf; ~1e-3 deviation.)
        h2 = jax.nn.gelu(h2, approximate=True)
        h2 = jnp.dot(h2.astype(bf16), fc2_w_ref[d],
                     preferred_element_type=f32) + vrow(r0 + 7, EMBED)
        tok = tok + h2

    # --- final LayerNorm + binary head on the cls rows only (VPU reduce) ------
    hr = DEPTH * 8
    cls = jnp.concatenate([tok[bb * SEQ:bb * SEQ + 1, :] for bb in range(nb)],
                          axis=0)                                   # (nb, EMBED)
    cls_n = layernorm(cls, vrow(hr + 0, EMBED), vrow(hr + 1, EMBED))
    logit = jnp.sum(cls_n * vrow(hr + 2, EMBED), axis=-1, keepdims=True)  # (nb, 1)
    # row hr+3 holds fc_b broadcast across all lanes -> lane-dense output write
    out_ref[...] = jnp.broadcast_to(logit, (nb, EMBED)) + vrow(hr + 3, EMBED)


# --------------------------- parameters (deterministic) ----------------------
def init_params(key):
    def nrm(k, shape, scale=0.02):
        return (scale * jax.random.normal(k, shape)).astype(jnp.float32)

    keys = iter(jax.random.split(key, 8 + DEPTH * 8))
    p = {
        # Conv2d(3, EMBED, kernel=PATCH, stride=PATCH) weight, PyTorch layout.
        "patch_w": nrm(next(keys), (EMBED, 3, PATCH, PATCH)),
        "patch_b": jnp.zeros((1, EMBED), jnp.float32),
        "cls": nrm(next(keys), (1, 1, EMBED)),
        "pos": nrm(next(keys), (1, SEQ, EMBED)),
        "lnf_g": jnp.ones((1, EMBED), jnp.float32),
        "lnf_b": jnp.zeros((1, EMBED), jnp.float32),
        # final binary head: nn.Linear(num_features, 1)
        "fc_w": nrm(next(keys), (EMBED, NUM_CLASSES)),
        "fc_b": jnp.zeros((1, NUM_CLASSES), jnp.float32),
        "blocks": [],
    }
    for _ in range(DEPTH):
        blk = {
            "ln1_g": jnp.ones((1, EMBED), jnp.float32),
            "ln1_b": jnp.zeros((1, EMBED), jnp.float32),
            "qkv_w": nrm(next(keys), (EMBED, 3 * EMBED)),
            "qkv_b": jnp.zeros((1, 3 * EMBED), jnp.float32),
            "proj_w": nrm(next(keys), (EMBED, EMBED)),
            "proj_b": jnp.zeros((1, EMBED), jnp.float32),
            "ln2_g": jnp.ones((1, EMBED), jnp.float32),
            "ln2_b": jnp.zeros((1, EMBED), jnp.float32),
            "fc1_w": nrm(next(keys), (EMBED, MLP)),
            "fc1_b": jnp.zeros((1, MLP), jnp.float32),
            "fc2_w": nrm(next(keys), (MLP, EMBED)),
            "fc2_b": jnp.zeros((1, EMBED), jnp.float32),
        }
        p["blocks"].append(blk)
    return p


def build_kernel_params(p):
    """Convert PyTorch-layout params into the fused-kernel operand layout."""
    bf16 = jnp.bfloat16
    scale = 1.0 / (HEAD_DIM ** 0.5)

    # Input channels are 3 identical copies -> fold the channel sum into the weight.
    pe_w = p["patch_w"].sum(axis=1).reshape(EMBED, PP).T              # (PP, EMBED)
    # Row 0: cls + pos[0]; rows 1..: pos[i] + patch_b (patch bias folded here).
    base = jnp.concatenate(
        [p["cls"].reshape(1, EMBED) + p["pos"][0, 0:1, :],
         p["pos"][0, 1:, :] + p["patch_b"]], axis=0)                  # (SEQ, EMBED)

    def stack(name):
        return jnp.stack([blk[name] for blk in p["blocks"]], axis=0)

    # Fold 1/sqrt(head_dim) into the q columns of qkv weight & bias.
    qkv_w = stack("qkv_w")                                            # (D, E, 3E)
    qkv_w = qkv_w.at[:, :, :EMBED].multiply(scale)
    qkv_b = stack("qkv_b")                                            # (D, 1, 3E)
    qkv_b = qkv_b.at[:, :, :EMBED].multiply(scale)

    # Pack all small f32 vectors into one (DEPTH*8 + 4, MLP) array.
    def _row(v):
        v = jnp.asarray(v, jnp.float32).reshape(1, -1)
        return jnp.pad(v, ((0, 0), (0, MLP - v.shape[1])))

    rows = []
    for d in range(DEPTH):
        blk = p["blocks"][d]
        rows += [_row(blk["ln1_g"]), _row(blk["ln1_b"]),
                 _row(qkv_b[d]), _row(blk["proj_b"]),
                 _row(blk["ln2_g"]), _row(blk["ln2_b"]),
                 _row(blk["fc1_b"]), _row(blk["fc2_b"])]
    rows += [_row(p["lnf_g"]), _row(p["lnf_b"]),
             _row(p["fc_w"].reshape(1, EMBED)),
             _row(jnp.broadcast_to(p["fc_b"].reshape(1, 1), (1, EMBED)))]
    vecs = jnp.concatenate(rows, axis=0)                              # (N_VEC_ROWS, MLP)

    return dict(
        pe_w=pe_w.astype(bf16),
        base=base,
        vecs=vecs,
        qkv_w=qkv_w.astype(bf16),
        proj_w=stack("proj_w").astype(bf16),
        fc1_w=stack("fc1_w").astype(bf16),
        fc2_w=stack("fc2_w").astype(bf16),
    )


# ------------------------------- forward pass --------------------------------
@jax.jit
def forward(x, kp):
    """x: (B, seq_len, feats) with seq_len*feats == IMG*IMG.  Returns (B, 1) logits."""
    b = x.shape[0]
    # x.view(b, 1, H, W) + expand_to_3_channels is folded into the weight sum.
    img = x.reshape(b, IMG, IMG).astype(jnp.float32)
    patches = img.reshape(b, GRID, PATCH, GRID, PATCH)
    patches = patches.transpose(0, 1, 3, 2, 4).reshape(b, N_PATCH, PP)
    # Prepend a zero row per sample so the patch-embed matmul leaves cls rows alone.
    patches = jnp.concatenate(
        [jnp.zeros((b, 1, PP), jnp.float32), patches], axis=1)       # (b, SEQ, PP)
    patches_flat = patches.reshape(b * SEQ, PP).astype(jnp.bfloat16)  # (b*SEQ, PP)
    base_b = jnp.tile(kp["base"], (b, 1))                             # (b*SEQ, EMBED)

    cm2 = lambda i: (0, 0)
    cm3 = lambda i: (0, 0, 0)

    out = pl.pallas_call(
        partial(_vit_forward_kernel, b),
        out_shape=jax.ShapeDtypeStruct((b, EMBED), jnp.float32),
        grid=(1,),                                  # whole batch in one step
        in_specs=[
            pl.BlockSpec((b * SEQ, PP), cm2),                         # patches
            pl.BlockSpec((PP, EMBED), cm2),                           # pe_w
            pl.BlockSpec((b * SEQ, EMBED), cm2),                      # base (tiled)
            pl.BlockSpec((N_VEC_ROWS, MLP), cm2),                     # packed vectors
            pl.BlockSpec((DEPTH, EMBED, 3 * EMBED), cm3),             # qkv_w
            pl.BlockSpec((DEPTH, EMBED, EMBED), cm3),                 # proj_w
            pl.BlockSpec((DEPTH, EMBED, MLP), cm3),                   # fc1_w
            pl.BlockSpec((DEPTH, MLP, EMBED), cm3),                   # fc2_w
        ],
        out_specs=pl.BlockSpec((b, EMBED), cm2),                      # lane-dense
        compiler_params=pltpu.CompilerParams(
            dimension_semantics=("arbitrary",)),
    )(
        patches_flat, kp["pe_w"], base_b, kp["vecs"],
        kp["qkv_w"], kp["proj_w"], kp["fc1_w"], kp["fc2_w"],
    )
    return out[:, :NUM_CLASSES]                                       # (B, 1)

# TODO(synk): `return_attention=True` branch (per-block attention maps) and the
# host-side train_model/predict loops (BCEWithLogitsLoss, optimizer, scheduler)
# are not part of the kernel forward pass and are not implemented here.


# ----------------------------------- main ------------------------------------
if __name__ == "__main__":
    key = jax.random.PRNGKey(0)
    k_param, k_data = jax.random.split(key)

    params = init_params(k_param)
    kparams = build_kernel_params(params)

    # (B, seq_len, feats) with seq_len*feats == IMG*IMG  (mirrors the 224*224 case)
    x = jax.random.normal(k_data, (B, IMG, IMG), dtype=jnp.float32)

    logits = forward(x, kparams)
    logits = jax.block_until_ready(logits)
    assert logits.shape == (B, NUM_CLASSES), logits.shape
    assert bool(jnp.all(jnp.isfinite(logits)))
    print("KERNEL_OK")
</pallas_src>

<mosaic_0001>
module attributes {stable_mosaic.version = 11 : i64} {
  func.func @_vit_forward_kernel(%arg0: i32, %arg1: memref<10x256xbf16, #tpu.memory_space<vmem>>, %arg2: memref<256x128xbf16, #tpu.memory_space<vmem>>, %arg3: memref<10x128xf32, #tpu.memory_space<vmem>>, %arg4: memref<20x512xf32, #tpu.memory_space<vmem>>, %arg5: memref<2x128x384xbf16, #tpu.memory_space<vmem>>, %arg6: memref<2x128x128xbf16, #tpu.memory_space<vmem>>, %arg7: memref<2x128x512xbf16, #tpu.memory_space<vmem>>, %arg8: memref<2x512x128xbf16, #tpu.memory_space<vmem>>, %arg9: memref<2x128xf32, #tpu.memory_space<vmem>>) attributes {dimension_semantics = [#tpu.dimension_semantics<arbitrary>], iteration_bounds = array<i64: 1>, scalar_prefetch = 0 : i64, scratch_operands = 0 : i64, tpu.core_type = #tpu.core_type<tc>, window_params = [{pipeline_mode = #tpu.pipeline_mode<synchronous>, transform_indices = @transform_0, window_bounds = array<i64: 10, 256>}, {pipeline_mode = #tpu.pipeline_mode<synchronous>, transform_indices = @transform_1, window_bounds = array<i64: 256, 128>}, {pipeline_mode = #tpu.pipeline_mode<synchronous>, transform_indices = @transform_2, window_bounds = array<i64: 10, 128>}, {pipeline_mode = #tpu.pipeline_mode<synchronous>, transform_indices = @transform_3, window_bounds = array<i64: 20, 512>}, {pipeline_mode = #tpu.pipeline_mode<synchronous>, transform_indices = @transform_4, window_bounds = array<i64: 2, 128, 384>}, {pipeline_mode = #tpu.pipeline_mode<synchronous>, transform_indices = @transform_5, window_bounds = array<i64: 2, 128, 128>}, {pipeline_mode = #tpu.pipeline_mode<synchronous>, transform_indices = @transform_6, window_bounds = array<i64: 2, 128, 512>}, {pipeline_mode = #tpu.pipeline_mode<synchronous>, transform_indices = @transform_7, window_bounds = array<i64: 2, 512, 128>}, {pipeline_mode = #tpu.pipeline_mode<synchronous>, transform_indices = @transform_8, window_bounds = array<i64: 2, 128>}]} {
    %c0 = arith.constant 0 : index
    %c0_0 = arith.constant 0 : index
    %0 = vector.load %arg3[%c0, %c0_0] : memref<10x128xf32, #tpu.memory_space<vmem>>, vector<10x128xf32>
    %c0_1 = arith.constant 0 : index
    %c0_2 = arith.constant 0 : index
    %1 = vector.load %arg1[%c0_1, %c0_2] : memref<10x256xbf16, #tpu.memory_space<vmem>>, vector<10x256xbf16>
    %c0_3 = arith.constant 0 : index
    %c0_4 = arith.constant 0 : index
    %2 = vector.load %arg2[%c0_3, %c0_4] : memref<256x128xbf16, #tpu.memory_space<vmem>>, vector<256x128xbf16>
    %cst = arith.constant dense<0.000000e+00> : vector<10x128xf32>
    %3 = tpu.matmul %1, %2, %cst {dimension_numbers = #tpu.dot_dimension_numbers<[1], [0], [0], [1], [0, 0, 1, 1], [], []>} : vector<10x256xbf16>, vector<256x128xbf16>, vector<10x128xf32> -> vector<10x128xf32>
    %4 = arith.addf %0, %3 : vector<10x128xf32>
    %c0_5 = arith.constant 0 : index
    %c0_6 = arith.constant 0 : index
    %5 = vector.load %arg4[%c0_5, %c0_6] : memref<20x512xf32, #tpu.memory_space<vmem>>, vector<1x128xf32>
    %c1 = arith.constant 1 : index
    %c0_7 = arith.constant 0 : index
    %6 = vector.load %arg4[%c1, %c0_7] : memref<20x512xf32, #tpu.memory_space<vmem>>, vector<1x128xf32>
    %cst_8 = arith.constant dense<0.000000e+00> : vector<10xf32>
    %7 = vector.multi_reduction <add>, %4, %cst_8 [1] : vector<10x128xf32> to vector<10xf32>
    %8 = vector.shape_cast %7 : vector<10xf32> to vector<10x1xf32>
    %cst_9 = arith.constant 1.280000e+02 : f32
    %9 = vector.broadcast %cst_9 : f32 to vector<10x1xf32>
    %10 = arith.divf %8, %9 : vector<10x1xf32>
    %11 = vector.broadcast %10 : vector<10x1xf32> to vector<10x128xf32>
    %12 = arith.subf %4, %11 : vector<10x128xf32>
    %13 = arith.mulf %12, %12 : vector<10x128xf32>
    %cst_10 = arith.constant dense<0.000000e+00> : vector<10xf32>
    %14 = vector.multi_reduction <add>, %13, %cst_10 [1] : vector<10x128xf32> to vector<10xf32>
    %15 = vector.shape_cast %14 : vector<10xf32> to vector<10x1xf32>
    %cst_11 = arith.constant 1.280000e+02 : f32
    %16 = vector.broadcast %cst_11 : f32 to vector<10x1xf32>
    %17 = arith.divf %15, %16 : vector<10x1xf32>
    %cst_12 = arith.constant 9.99999997E-7 : f32
    %18 = vector.broadcast %cst_12 : f32 to vector<10x1xf32>
    %19 = arith.addf %17, %18 : vector<10x1xf32>
    %20 = math.rsqrt %19 : vector<10x1xf32>
    %21 = vector.broadcast %20 : vector<10x1xf32> to vector<10x128xf32>
    %22 = arith.mulf %12, %21 : vector<10x128xf32>
    %23 = vector.broadcast %5 : vector<1x128xf32> to vector<10x128xf32>
    %24 = arith.mulf %22, %23 : vector<10x128xf32>
    %25 = vector.broadcast %6 : vector<1x128xf32> to vector<10x128xf32>
    %26 = arith.addf %24, %25 : vector<10x128xf32>
    %27 = arith.truncf %26 : vector<10x128xf32> to vector<10x128xbf16>
    %c0_13 = arith.constant 0 : index
    %c0_14 = arith.constant 0 : index
    %c0_15 = arith.constant 0 : index
    %28 = vector.load %arg5[%c0_13, %c0_14, %c0_15] : memref<2x128x384xbf16, #tpu.memory_space<vmem>>, vector<1x128x384xbf16>
    %29 = vector.shape_cast %28 : vector<1x128x384xbf16> to vector<128x384xbf16>
    %cst_16 = arith.constant dense<0.000000e+00> : vector<10x384xf32>
    %30 = tpu.matmul %27, %29, %cst_16 {dimension_numbers = #tpu.dot_dimension_numbers<[1], [0], [0], [1], [0, 0, 1, 1], [], []>} : vector<10x128xbf16>, vector<128x384xbf16>, vector<10x384xf32> -> vector<10x384xf32>
    %c2 = arith.constant 2 : index
    %c0_17 = arith.constant 0 : index
    %31 = vector.load %arg4[%c2, %c0_17] : memref<20x512xf32, #tpu.memory_space<vmem>>, vector<1x384xf32>
    %32 = vector.broadcast %31 : vector<1x384xf32> to vector<10x384xf32>
    %33 = arith.addf %30, %32 : vector<10x384xf32>
    %34 = vector.extract_strided_slice %33 {offsets = [0, 0], sizes = [5, 32], strides = [1, 1]} : vector<10x384xf32> to vector<5x32xf32>
    %35 = vector.extract_strided_slice %33 {offsets = [0, 128], sizes = [5, 32], strides = [1, 1]} : vector<10x384xf32> to vector<5x32xf32>
    %36 = vector.extract_strided_slice %33 {offsets = [0, 256], sizes = [5, 32], strides = [1, 1]} : vector<10x384xf32> to vector<5x32xf32>
    %cst_18 = arith.constant dense<0.000000e+00> : vector<5x5xf32>
    %37 = tpu.matmul %34, %35, %cst_18 {dimension_numbers = #tpu.dot_dimension_numbers<[1], [1], [0], [0], [0, 0, 1, 0], [], []>} : vector<5x32xf32>, vector<5x32xf32>, vector<5x5xf32> -> vector<5x5xf32>
    %cst_19 = arith.constant dense<0xFF800000> : vector<5xf32>
    %38 = vector.multi_reduction <maximumf>, %37, %cst_19 [1] : vector<5x5xf32> to vector<5xf32>
    %39 = vector.shape_cast %38 : vector<5xf32> to vector<5x1xf32>
    %40 = vector.broadcast %39 : vector<5x1xf32> to vector<5x5xf32>
    %41 = arith.subf %37, %40 : vector<5x5xf32>
    %42 = math.exp %41 : vector<5x5xf32>
    %cst_20 = arith.constant dense<0.000000e+00> : vector<5xf32>
    %43 = vector.multi_reduction <add>, %42, %cst_20 [1] : vector<5x5xf32> to vector<5xf32>
    %44 = vector.shape_cast %43 : vector<5xf32> to vector<5x1xf32>
    %45 = tpu.reciprocal %44 {approx = true} : vector<5x1xf32> -> vector<5x1xf32>
    %46 = vector.broadcast %45 : vector<5x1xf32> to vector<5x5xf32>
    %47 = arith.mulf %42, %46 : vector<5x5xf32>
    %cst_21 = arith.constant dense<0.000000e+00> : vector<5x32xf32>
    %48 = tpu.matmul %47, %36, %cst_21 {dimension_numbers = #tpu.dot_dimension_numbers<[1], [0], [0], [1], [0, 0, 1, 1], [], []>} : vector<5x5xf32>, vector<5x32xf32>, vector<5x32xf32> -> vector<5x32xf32>
    %49 = vector.extract_strided_slice %33 {offsets = [0, 32], sizes = [5, 32], strides = [1, 1]} : vector<10x384xf32> to vector<5x32xf32>
    %50 = vector.extract_strided_slice %33 {offsets = [0, 160], sizes = [5, 32], strides = [1, 1]} : vector<10x384xf32> to vector<5x32xf32>
    %51 = vector.extract_strided_slice %33 {offsets = [0, 288], sizes = [5, 32], strides = [1, 1]} : vector<10x384xf32> to vector<5x32xf32>
    %cst_22 = arith.constant dense<0.000000e+00> : vector<5x5xf32>
    %52 = tpu.matmul %49, %50, %cst_22 {dimension_numbers = #tpu.dot_dimension_numbers<[1], [1], [0], [0], [0, 0, 1, 0], [], []>} : vector<5x32xf32>, vector<5x32xf32>, vector<5x5xf32> -> vector<5x5xf32>
    %cst_23 = arith.constant dense<0xFF800000> : vector<5xf32>
    %53 = vector.multi_reduction <maximumf>, %52, %cst_23 [1] : vector<5x5xf32> to vector<5xf32>
    %54 = vector.shape_cast %53 : vector<5xf32> to vector<5x1xf32>
    %55 = vector.broadcast %54 : vector<5x1xf32> to vector<5x5xf32>
    %56 = arith.subf %52, %55 : vector<5x5xf32>
    %57 = math.exp %56 : vector<5x5xf32>
    %cst_24 = arith.constant dense<0.000000e+00> : vector<5xf32>
    %58 = vector.multi_reduction <add>, %57, %cst_24 [1] : vector<5x5xf32> to vector<5xf32>
    %59 = vector.shape_cast %58 : vector<5xf32> to vector<5x1xf32>
    %60 = tpu.reciprocal %59 {approx = true} : vector<5x1xf32> -> vector<5x1xf32>
    %61 = vector.broadcast %60 : vector<5x1xf32> to vector<5x5xf32>
    %62 = arith.mulf %57, %61 : vector<5x5xf32>
    %cst_25 = arith.constant dense<0.000000e+00> : vector<5x32xf32>
    %63 = tpu.matmul %62, %51, %cst_25 {dimension_numbers = #tpu.dot_dimension_numbers<[1], [0], [0], [1], [0, 0, 1, 1], [], []>} : vector<5x5xf32>, vector<5x32xf32>, vector<5x32xf32> -> vector<5x32xf32>
    %64 = vector.extract_strided_slice %33 {offsets = [0, 64], sizes = [5, 32], strides = [1, 1]} : vector<10x384xf32> to vector<5x32xf32>
    %65 = vector.extract_strided_slice %33 {offsets = [0, 192], sizes = [5, 32], strides = [1, 1]} : vector<10x384xf32> to vector<5x32xf32>
    %66 = vector.extract_strided_slice %33 {offsets = [0, 320], sizes = [5, 32], strides = [1, 1]} : vector<10x384xf32> to vector<5x32xf32>
    %cst_26 = arith.constant dense<0.000000e+00> : vector<5x5xf32>
    %67 = tpu.matmul %64, %65, %cst_26 {dimension_numbers = #tpu.dot_dimension_numbers<[1], [1], [0], [0], [0, 0, 1, 0], [], []>} : vector<5x32xf32>, vector<5x32xf32>, vector<5x5xf32> -> vector<5x5xf32>
    %cst_27 = arith.constant dense<0xFF800000> : vector<5xf32>
    %68 = vector.multi_reduction <maximumf>, %67, %cst_27 [1] : vector<5x5xf32> to vector<5xf32>
    %69 = vector.shape_cast %68 : vector<5xf32> to vector<5x1xf32>
    %70 = vector.broadcast %69 : vector<5x1xf32> to vector<5x5xf32>
    %71 = arith.subf %67, %70 : vector<5x5xf32>
    %72 = math.exp %71 : vector<5x5xf32>
    %cst_28 = arith.constant dense<0.000000e+00> : vector<5xf32>
    %73 = vector.multi_reduction <add>, %72, %cst_28 [1] : vector<5x5xf32> to vector<5xf32>
    %74 = vector.shape_cast %73 : vector<5xf32> to vector<5x1xf32>
    %75 = tpu.reciprocal %74 {approx = true} : vector<5x1xf32> -> vector<5x1xf32>
    %76 = vector.broadcast %75 : vector<5x1xf32> to vector<5x5xf32>
    %77 = arith.mulf %72, %76 : vector<5x5xf32>
    %cst_29 = arith.constant dense<0.000000e+00> : vector<5x32xf32>
    %78 = tpu.matmul %77, %66, %cst_29 {dimension_numbers = #tpu.dot_dimension_numbers<[1], [0], [0], [1], [0, 0, 1, 1], [], []>} : vector<5x5xf32>, vector<5x32xf32>, vector<5x32xf32> -> vector<5x32xf32>
    %79 = vector.extract_strided_slice %33 {offsets = [0, 96], sizes = [5, 32], strides = [1, 1]} : vector<10x384xf32> to vector<5x32xf32>
    %80 = vector.extract_strided_slice %33 {offsets = [0, 224], sizes = [5, 32], strides = [1, 1]} : vector<10x384xf32> to vector<5x32xf32>
    %81 = vector.extract_strided_slice %33 {offsets = [0, 352], sizes = [5, 32], strides = [1, 1]} : vector<10x384xf32> to vector<5x32xf32>
    %cst_30 = arith.constant dense<0.000000e+00> : vector<5x5xf32>
    %82 = tpu.matmul %79, %80, %cst_30 {dimension_numbers = #tpu.dot_dimension_numbers<[1], [1], [0], [0], [0, 0, 1, 0], [], []>} : vector<5x32xf32>, vector<5x32xf32>, vector<5x5xf32> -> vector<5x5xf32>
    %cst_31 = arith.constant dense<0xFF800000> : vector<5xf32>
    %83 = vector.multi_reduction <maximumf>, %82, %cst_31 [1] : vector<5x5xf32> to vector<5xf32>
    %84 = vector.shape_cast %83 : vector<5xf32> to vector<5x1xf32>
    %85 = vector.broadcast %84 : vector<5x1xf32> to vector<5x5xf32>
    %86 = arith.subf %82, %85 : vector<5x5xf32>
    %87 = math.exp %86 : vector<5x5xf32>
    %cst_32 = arith.constant dense<0.000000e+00> : vector<5xf32>
    %88 = vector.multi_reduction <add>, %87, %cst_32 [1] : vector<5x5xf32> to vector<5xf32>
    %89 = vector.shape_cast %88 : vector<5xf32> to vector<5x1xf32>
    %90 = tpu.reciprocal %89 {approx = true} : vector<5x1xf32> -> vector<5x1xf32>
    %91 = vector.broadcast %90 : vector<5x1xf32> to vector<5x5xf32>
    %92 = arith.mulf %87, %91 : vector<5x5xf32>
    %cst_33 = arith.constant dense<0.000000e+00> : vector<5x32xf32>
    %93 = tpu.matmul %92, %81, %cst_33 {dimension_numbers = #tpu.dot_dimension_numbers<[1], [0], [0], [1], [0, 0, 1, 1], [], []>} : vector<5x5xf32>, vector<5x32xf32>, vector<5x32xf32> -> vector<5x32xf32>
    %94 = tpu.concatenate %48, %63, %78, %93 in 1 : vector<5x32xf32>, vector<5x32xf32>, vector<5x32xf32>, vector<5x32xf32> -> vector<5x128xf32>
    %95 = vector.extract_strided_slice %33 {offsets = [5, 0], sizes = [5, 32], strides = [1, 1]} : vector<10x384xf32> to vector<5x32xf32>
    %96 = vector.extract_strided_slice %33 {offsets = [5, 128], sizes = [5, 32], strides = [1, 1]} : vector<10x384xf32> to vector<5x32xf32>
    %97 = vector.extract_strided_slice %33 {offsets = [5, 256], sizes = [5, 32], strides = [1, 1]} : vector<10x384xf32> to vector<5x32xf32>
    %cst_34 = arith.constant dense<0.000000e+00> : vector<5x5xf32>
    %98 = tpu.matmul %95, %96, %cst_34 {dimension_numbers = #tpu.dot_dimension_numbers<[1], [1], [0], [0], [0, 0, 1, 0], [], []>} : vector<5x32xf32>, vector<5x32xf32>, vector<5x5xf32> -> vector<5x5xf32>
    %cst_35 = arith.constant dense<0xFF800000> : vector<5xf32>
    %99 = vector.multi_reduction <maximumf>, %98, %cst_35 [1] : vector<5x5xf32> to vector<5xf32>
    %100 = vector.shape_cast %99 : vector<5xf32> to vector<5x1xf32>
    %101 = vector.broadcast %100 : vector<5x1xf32> to vector<5x5xf32>
    %102 = arith.subf %98, %101 : vector<5x5xf32>
    %103 = math.exp %102 : vector<5x5xf32>
    %cst_36 = arith.constant dense<0.000000e+00> : vector<5xf32>
    %104 = vector.multi_reduction <add>, %103, %cst_36 [1] : vector<5x5xf32> to vector<5xf32>
    %105 = vector.shape_cast %104 : vector<5xf32> to vector<5x1xf32>
    %106 = tpu.reciprocal %105 {approx = true} : vector<5x1xf32> -> vector<5x1xf32>
    %107 = vector.broadcast %106 : vector<5x1xf32> to vector<5x5xf32>
    %108 = arith.mulf %103, %107 : vector<5x5xf32>
    %cst_37 = arith.constant dense<0.000000e+00> : vector<5x32xf32>
    %109 = tpu.matmul %108, %97, %cst_37 {dimension_numbers = #tpu.dot_dimension_numbers<[1], [0], [0], [1], [0, 0, 1, 1], [], []>} : vector<5x5xf32>, vector<5x32xf32>, vector<5x32xf32> -> vector<5x32xf32>
    %110 = vector.extract_strided_slice %33 {offsets = [5, 32], sizes = [5, 32], strides = [1, 1]} : vector<10x384xf32> to vector<5x32xf32>
    %111 = vector.extract_strided_slice %33 {offsets = [5, 160], sizes = [5, 32], strides = [1, 1]} : vector<10x384xf32> to vector<5x32xf32>
    %112 = vector.extract_strided_slice %33 {offsets = [5, 288], sizes = [5, 32], strides = [1, 1]} : vector<10x384xf32> to vector<5x32xf32>
    %cst_38 = arith.constant dense<0.000000e+00> : vector<5x5xf32>
    %113 = tpu.matmul %110, %111, %cst_38 {dimension_numbers = #tpu.dot_dimension_numbers<[1], [1], [0], [0], [0, 0, 1, 0], [], []>} : vector<5x32xf32>, vector<5x32xf32>, vector<5x5xf32> -> vector<5x5xf32>
    %cst_39 = arith.constant dense<0xFF800000> : vector<5xf32>
    %114 = vector.multi_reduction <maximumf>, %113, %cst_39 [1] : vector<5x5xf32> to vector<5xf32>
    %115 = vector.shape_cast %114 : vector<5xf32> to vector<5x1xf32>
    %116 = vector.broadcast %115 : vector<5x1xf32> to vector<5x5xf32>
    %117 = arith.subf %113, %116 : vector<5x5xf32>
    %118 = math.exp %117 : vector<5x5xf32>
    %cst_40 = arith.constant dense<0.000000e+00> : vector<5xf32>
    %119 = vector.multi_reduction <add>, %118, %cst_40 [1] : vector<5x5xf32> to vector<5xf32>
    %120 = vector.shape_cast %119 : vector<5xf32> to vector<5x1xf32>
    %121 = tpu.reciprocal %120 {approx = true} : vector<5x1xf32> -> vector<5x1xf32>
    %122 = vector.broadcast %121 : vector<5x1xf32> to vector<5x5xf32>
    %123 = arith.mulf %118, %122 : vector<5x5xf32>
    %cst_41 = arith.constant dense<0.000000e+00> : vector<5x32xf32>
    %124 = tpu.matmul %123, %112, %cst_41 {dimension_numbers = #tpu.dot_dimension_numbers<[1], [0], [0], [1], [0, 0, 1, 1], [], []>} : vector<5x5xf32>, vector<5x32xf32>, vector<5x32xf32> -> vector<5x32xf32>
    %125 = vector.extract_strided_slice %33 {offsets = [5, 64], sizes = [5, 32], strides = [1, 1]} : vector<10x384xf32> to vector<5x32xf32>
    %126 = vector.extract_strided_slice %33 {offsets = [5, 192], sizes = [5, 32], strides = [1, 1]} : vector<10x384xf32> to vector<5x32xf32>
    %127 = vector.extract_strided_slice %33 {offsets = [5, 320], sizes = [5, 32], strides = [1, 1]} : vector<10x384xf32> to vector<5x32xf32>
    %cst_42 = arith.constant dense<0.000000e+00> : vector<5x5xf32>
    %128 = tpu.matmul %125, %126, %cst_42 {dimension_numbers = #tpu.dot_dimension_numbers<[1], [1], [0], [0], [0, 0, 1, 0], [], []>} : vector<5x32xf32>, vector<5x32xf32>, vector<5x5xf32> -> vector<5x5xf32>
    %cst_43 = arith.constant dense<0xFF800000> : vector<5xf32>
    %129 = vector.multi_reduction <maximumf>, %128, %cst_43 [1] : vector<5x5xf32> to vector<5xf32>
    %130 = vector.shape_cast %129 : vector<5xf32> to vector<5x1xf32>
    %131 = vector.broadcast %130 : vector<5x1xf32> to vector<5x5xf32>
    %132 = arith.subf %128, %131 : vector<5x5xf32>
    %133 = math.exp %132 : vector<5x5xf32>
    %cst_44 = arith.constant dense<0.000000e+00> : vector<5xf32>
    %134 = vector.multi_reduction <add>, %133, %cst_44 [1] : vector<5x5xf32> to vector<5xf32>
    %135 = vector.shape_cast %134 : vector<5xf32> to vector<5x1xf32>
    %136 = tpu.reciprocal %135 {approx = true} : vector<5x1xf32> -> vector<5x1xf32>
    %137 = vector.broadcast %136 : vector<5x1xf32> to vector<5x5xf32>
    %138 = arith.mulf %133, %137 : vector<5x5xf32>
    %cst_45 = arith.constant dense<0.000000e+00> : vector<5x32xf32>
    %139 = tpu.matmul %138, %127, %cst_45 {dimension_numbers = #tpu.dot_dimension_numbers<[1], [0], [0], [1], [0, 0, 1, 1], [], []>} : vector<5x5xf32>, vector<5x32xf32>, vector<5x32xf32> -> vector<5x32xf32>
    %140 = vector.extract_strided_slice %33 {offsets = [5, 96], sizes = [5, 32], strides = [1, 1]} : vector<10x384xf32> to vector<5x32xf32>
    %141 = vector.extract_strided_slice %33 {offsets = [5, 224], sizes = [5, 32], strides = [1, 1]} : vector<10x384xf32> to vector<5x32xf32>
    %142 = vector.extract_strided_slice %33 {offsets = [5, 352], sizes = [5, 32], strides = [1, 1]} : vector<10x384xf32> to vector<5x32xf32>
    %cst_46 = arith.constant dense<0.000000e+00> : vector<5x5xf32>
    %143 = tpu.matmul %140, %141, %cst_46 {dimension_numbers = #tpu.dot_dimension_numbers<[1], [1], [0], [0], [0, 0, 1, 0], [], []>} : vector<5x32xf32>, vector<5x32xf32>, vector<5x5xf32> -> vector<5x5xf32>
    %cst_47 = arith.constant dense<0xFF800000> : vector<5xf32>
    %144 = vector.multi_reduction <maximumf>, %143, %cst_47 [1] : vector<5x5xf32> to vector<5xf32>
    %145 = vector.shape_cast %144 : vector<5xf32> to vector<5x1xf32>
    %146 = vector.broadcast %145 : vector<5x1xf32> to vector<5x5xf32>
    %147 = arith.subf %143, %146 : vector<5x5xf32>
    %148 = math.exp %147 : vector<5x5xf32>
    %cst_48 = arith.constant dense<0.000000e+00> : vector<5xf32>
    %149 = vector.multi_reduction <add>, %148, %cst_48 [1] : vector<5x5xf32> to vector<5xf32>
    %150 = vector.shape_cast %149 : vector<5xf32> to vector<5x1xf32>
    %151 = tpu.reciprocal %150 {approx = true} : vector<5x1xf32> -> vector<5x1xf32>
    %152 = vector.broadcast %151 : vector<5x1xf32> to vector<5x5xf32>
    %153 = arith.mulf %148, %152 : vector<5x5xf32>
    %cst_49 = arith.constant dense<0.000000e+00> : vector<5x32xf32>
    %154 = tpu.matmul %153, %142, %cst_49 {dimension_numbers = #tpu.dot_dimension_numbers<[1], [0], [0], [1], [0, 0, 1, 1], [], []>} : vector<5x5xf32>, vector<5x32xf32>, vector<5x32xf32> -> vector<5x32xf32>
    %155 = tpu.concatenate %109, %124, %139, %154 in 1 : vector<5x32xf32>, vector<5x32xf32>, vector<5x32xf32>, vector<5x32xf32> -> vector<5x128xf32>
    %156 = tpu.concatenate %94, %155 in 0 : vector<5x128xf32>, vector<5x128xf32> -> vector<10x128xf32>
    %157 = arith.truncf %156 : vector<10x128xf32> to vector<10x128xbf16>
    %c0_50 = arith.constant 0 : index
    %c0_51 = arith.constant 0 : index
    %c0_52 = arith.constant 0 : index
    %158 = vector.load %arg6[%c0_50, %c0_51, %c0_52] : memref<2x128x128xbf16, #tpu.memory_space<vmem>>, vector<1x128x128xbf16>
    %159 = vector.shape_cast %158 : vector<1x128x128xbf16> to vector<128x128xbf16>
    %cst_53 = arith.constant dense<0.000000e+00> : vector<10x128xf32>
    %160 = tpu.matmul %157, %159, %cst_53 {dimension_numbers = #tpu.dot_dimension_numbers<[1], [0], [0], [1], [0, 0, 1, 1], [], []>} : vector<10x128xbf16>, vector<128x128xbf16>, vector<10x128xf32> -> vector<10x128xf32>
    %161 = arith.addf %4, %160 : vector<10x128xf32>
    %c3 = arith.constant 3 : index
    %c0_54 = arith.constant 0 : index
    %162 = vector.load %arg4[%c3, %c0_54] : memref<20x512xf32, #tpu.memory_space<vmem>>, vector<1x128xf32>
    %163 = vector.broadcast %162 : vector<1x128xf32> to vector<10x128xf32>
    %164 = arith.addf %161, %163 : vector<10x128xf32>
    %c4 = arith.constant 4 : index
    %c0_55 = arith.constant 0 : index
    %165 = vector.load %arg4[%c4, %c0_55] : memref<20x512xf32, #tpu.memory_space<vmem>>, vector<1x128xf32>
    %c5 = arith.constant 5 : index
    %c0_56 = arith.constant 0 : index
    %166 = vector.load %arg4[%c5, %c0_56] : memref<20x512xf32, #tpu.memory_space<vmem>>, vector<1x128xf32>
    %cst_57 = arith.constant dense<0.000000e+00> : vector<10xf32>
    %167 = vector.multi_reduction <add>, %164, %cst_57 [1] : vector<10x128xf32> to vector<10xf32>
    %168 = vector.shape_cast %167 : vector<10xf32> to vector<10x1xf32>
    %cst_58 = arith.constant 1.280000e+02 : f32
    %169 = vector.broadcast %cst_58 : f32 to vector<10x1xf32>
    %170 = arith.divf %168, %169 : vector<10x1xf32>
    %171 = vector.broadcast %170 : vector<10x1xf32> to vector<10x128xf32>
    %172 = arith.subf %164, %171 : vector<10x128xf32>
    %173 = arith.mulf %172, %172 : vector<10x128xf32>
    %cst_59 = arith.constant dense<0.000000e+00> : vector<10xf32>
    %174 = vector.multi_reduction <add>, %173, %cst_59 [1] : vector<10x128xf32> to vector<10xf32>
    %175 = vector.shape_cast %174 : vector<10xf32> to vector<10x1xf32>
    %cst_60 = arith.constant 1.280000e+02 : f32
    %176 = vector.broadcast %cst_60 : f32 to vector<10x1xf32>
    %177 = arith.divf %175, %176 : vector<10x1xf32>
    %cst_61 = arith.constant 9.99999997E-7 : f32
    %178 = vector.broadcast %cst_61 : f32 to vector<10x1xf32>
    %179 = arith.addf %177, %178 : vector<10x1xf32>
    %180 = math.rsqrt %179 : vector<10x1xf32>
    %181 = vector.broadcast %180 : vector<10x1xf32> to vector<10x128xf32>
    %182 = arith.mulf %172, %181 : vector<10x128xf32>
    %183 = vector.broadcast %165 : vector<1x128xf32> to vector<10x128xf32>
    %184 = arith.mulf %182, %183 : vector<10x128xf32>
    %185 = vector.broadcast %166 : vector<1x128xf32> to vector<10x128xf32>
    %186 = arith.addf %184, %185 : vector<10x128xf32>
    %187 = arith.truncf %186 : vector<10x128xf32> to vector<10x128xbf16>
    %c0_62 = arith.constant 0 : index
    %c0_63 = arith.constant 0 : index
    %c0_64 = arith.constant 0 : index
    %188 = vector.load %arg7[%c0_62, %c0_63, %c0_64] : memref<2x128x512xbf16, #tpu.memory_space<vmem>>, vector<1x128x512xbf16>
    %189 = vector.shape_cast %188 : vector<1x128x512xbf16> to vector<128x512xbf16>
    %cst_65 = arith.constant dense<0.000000e+00> : vector<10x512xf32>
    %190 = tpu.matmul %187, %189, %cst_65 {dimension_numbers = #tpu.dot_dimension_numbers<[1], [0], [0], [1], [0, 0, 1, 1], [], []>} : vector<10x128xbf16>, vector<128x512xbf16>, vector<10x512xf32> -> vector<10x512xf32>
    %c6 = arith.constant 6 : index
    %c0_66 = arith.constant 0 : index
    %191 = vector.load %arg4[%c6, %c0_66] : memref<20x512xf32, #tpu.memory_space<vmem>>, vector<1x512xf32>
    %192 = vector.broadcast %191 : vector<1x512xf32> to vector<10x512xf32>
    %193 = arith.addf %190, %192 : vector<10x512xf32>
    %194 = arith.mulf %193, %193 : vector<10x512xf32>
    %195 = arith.mulf %193, %194 : vector<10x512xf32>
    %cst_67 = arith.constant 4.471500e-02 : f32
    %196 = vector.broadcast %cst_67 : f32 to vector<10x512xf32>
    %197 = arith.mulf %196, %195 : vector<10x512xf32>
    %198 = arith.addf %193, %197 : vector<10x512xf32>
    %cst_68 = arith.constant 0.797884583 : f32
    %199 = vector.broadcast %cst_68 : f32 to vector<10x512xf32>
    %200 = arith.mulf %199, %198 : vector<10x512xf32>
    %201 = math.tanh %200 : vector<10x512xf32>
    %cst_69 = arith.constant 1.000000e+00 : f32
    %202 = vector.broadcast %cst_69 : f32 to vector<10x512xf32>
    %203 = arith.addf %202, %201 : vector<10x512xf32>
    %cst_70 = arith.constant 5.000000e-01 : f32
    %204 = vector.broadcast %cst_70 : f32 to vector<10x512xf32>
    %205 = arith.mulf %204, %203 : vector<10x512xf32>
    %206 = arith.mulf %193, %205 : vector<10x512xf32>
    %207 = arith.truncf %206 : vector<10x512xf32> to vector<10x512xbf16>
    %c0_71 = arith.constant 0 : index
    %c0_72 = arith.constant 0 : index
    %c0_73 = arith.constant 0 : index
    %208 = vector.load %arg8[%c0_71, %c0_72, %c0_73] : memref<2x512x128xbf16, #tpu.memory_space<vmem>>, vector<1x512x128xbf16>
    %209 = vector.shape_cast %208 : vector<1x512x128xbf16> to vector<512x128xbf16>
    %cst_74 = arith.constant dense<0.000000e+00> : vector<10x128xf32>
    %210 = tpu.matmul %207, %209, %cst_74 {dimension_numbers = #tpu.dot_dimension_numbers<[1], [0], [0], [1], [0, 0, 1, 1], [], []>} : vector<10x512xbf16>, vector<512x128xbf16>, vector<10x128xf32> -> vector<10x128xf32>
    %c7 = arith.constant 7 : index
    %c0_75 = arith.constant 0 : index
    %211 = vector.load %arg4[%c7, %c0_75] : memref<20x512xf32, #tpu.memory_space<vmem>>, vector<1x128xf32>
    %212 = vector.broadcast %211 : vector<1x128xf32> to vector<10x128xf32>
    %213 = arith.addf %210, %212 : vector<10x128xf32>
    %214 = arith.addf %164, %213 : vector<10x128xf32>
    %c8 = arith.constant 8 : index
    %c0_76 = arith.constant 0 : index
    %215 = vector.load %arg4[%c8, %c0_76] : memref<20x512xf32, #tpu.memory_space<vmem>>, vector<1x128xf32>
    %c9 = arith.constant 9 : index
    %c0_77 = arith.constant 0 : index
    %216 = vector.load %arg4[%c9, %c0_77] : memref<20x512xf32, #tpu.memory_space<vmem>>, vector<1x128xf32>
    %cst_78 = arith.constant dense<0.000000e+00> : vector<10xf32>
    %217 = vector.multi_reduction <add>, %214, %cst_78 [1] : vector<10x128xf32> to vector<10xf32>
    %218 = vector.shape_cast %217 : vector<10xf32> to vector<10x1xf32>
    %cst_79 = arith.constant 1.280000e+02 : f32
    %219 = vector.broadcast %cst_79 : f32 to vector<10x1xf32>
    %220 = arith.divf %218, %219 : vector<10x1xf32>
    %221 = vector.broadcast %220 : vector<10x1xf32> to vector<10x128xf32>
    %222 = arith.subf %214, %221 : vector<10x128xf32>
    %223 = arith.mulf %222, %222 : vector<10x128xf32>
    %cst_80 = arith.constant dense<0.000000e+00> : vector<10xf32>
    %224 = vector.multi_reduction <add>, %223, %cst_80 [1] : vector<10x128xf32> to vector<10xf32>
    %225 = vector.shape_cast %224 : vector<10xf32> to vector<10x1xf32>
    %cst_81 = arith.constant 1.280000e+02 : f32
    %226 = vector.broadcast %cst_81 : f32 to vector<10x1xf32>
    %227 = arith.divf %225, %226 : vector<10x1xf32>
    %cst_82 = arith.constant 9.99999997E-7 : f32
    %228 = vector.broadcast %cst_82 : f32 to vector<10x1xf32>
    %229 = arith.addf %227, %228 : vector<10x1xf32>
    %230 = math.rsqrt %229 : vector<10x1xf32>
    %231 = vector.broadcast %230 : vector<10x1xf32> to vector<10x128xf32>
    %232 = arith.mulf %222, %231 : vector<10x128xf32>
    %233 = vector.broadcast %215 : vector<1x128xf32> to vector<10x128xf32>
    %234 = arith.mulf %232, %233 : vector<10x128xf32>
    %235 = vector.broadcast %216 : vector<1x128xf32> to vector<10x128xf32>
    %236 = arith.addf %234, %235 : vector<10x128xf32>
    %237 = arith.truncf %236 : vector<10x128xf32> to vector<10x128xbf16>
    %c1_83 = arith.constant 1 : index
    %c0_84 = arith.constant 0 : index
    %c0_85 = arith.constant 0 : index
    %238 = vector.load %arg5[%c1_83, %c0_84, %c0_85] : memref<2x128x384xbf16, #tpu.memory_space<vmem>>, vector<1x128x384xbf16>
    %239 = vector.shape_cast %238 : vector<1x128x384xbf16> to vector<128x384xbf16>
    %cst_86 = arith.constant dense<0.000000e+00> : vector<10x384xf32>
    %240 = tpu.matmul %237, %239, %cst_86 {dimension_numbers = #tpu.dot_dimension_numbers<[1], [0], [0], [1], [0, 0, 1, 1], [], []>} : vector<10x128xbf16>, vector<128x384xbf16>, vector<10x384xf32> -> vector<10x384xf32>
    %c10 = arith.constant 10 : index
    %c0_87 = arith.constant 0 : index
    %241 = vector.load %arg4[%c10, %c0_87] : memref<20x512xf32, #tpu.memory_space<vmem>>, vector<1x384xf32>
    %242 = vector.broadcast %241 : vector<1x384xf32> to vector<10x384xf32>
    %243 = arith.addf %240, %242 : vector<10x384xf32>
    %244 = vector.extract_strided_slice %243 {offsets = [0, 0], sizes = [5, 32], strides = [1, 1]} : vector<10x384xf32> to vector<5x32xf32>
    %245 = vector.extract_strided_slice %243 {offsets = [0, 128], sizes = [5, 32], strides = [1, 1]} : vector<10x384xf32> to vector<5x32xf32>
    %246 = vector.extract_strided_slice %243 {offsets = [0, 256], sizes = [5, 32], strides = [1, 1]} : vector<10x384xf32> to vector<5x32xf32>
    %cst_88 = arith.constant dense<0.000000e+00> : vector<5x5xf32>
    %247 = tpu.matmul %244, %245, %cst_88 {dimension_numbers = #tpu.dot_dimension_numbers<[1], [1], [0], [0], [0, 0, 1, 0], [], []>} : vector<5x32xf32>, vector<5x32xf32>, vector<5x5xf32> -> vector<5x5xf32>
    %cst_89 = arith.constant dense<0xFF800000> : vector<5xf32>
    %248 = vector.multi_reduction <maximumf>, %247, %cst_89 [1] : vector<5x5xf32> to vector<5xf32>
    %249 = vector.shape_cast %248 : vector<5xf32> to vector<5x1xf32>
    %250 = vector.broadcast %249 : vector<5x1xf32> to vector<5x5xf32>
    %251 = arith.subf %247, %250 : vector<5x5xf32>
    %252 = math.exp %251 : vector<5x5xf32>
    %cst_90 = arith.constant dense<0.000000e+00> : vector<5xf32>
    %253 = vector.multi_reduction <add>, %252, %cst_90 [1] : vector<5x5xf32> to vector<5xf32>
    %254 = vector.shape_cast %253 : vector<5xf32> to vector<5x1xf32>
    %255 = tpu.reciprocal %254 {approx = true} : vector<5x1xf32> -> vector<5x1xf32>
    %256 = vector.broadcast %255 : vector<5x1xf32> to vector<5x5xf32>
    %257 = arith.mulf %252, %256 : vector<5x5xf32>
    %cst_91 = arith.constant dense<0.000000e+00> : vector<5x32xf32>
    %258 = tpu.matmul %257, %246, %cst_91 {dimension_numbers = #tpu.dot_dimension_numbers<[1], [0], [0], [1], [0, 0, 1, 1], [], []>} : vector<5x5xf32>, vector<5x32xf32>, vector<5x32xf32> -> vector<5x32xf32>
    %259 = vector.extract_strided_slice %243 {offsets = [0, 32], sizes = [5, 32], strides = [1, 1]} : vector<10x384xf32> to vector<5x32xf32>
    %260 = vector.extract_strided_slice %243 {offsets = [0, 160], sizes = [5, 32], strides = [1, 1]} : vector<10x384xf32> to vector<5x32xf32>
    %261 = vector.extract_strided_slice %243 {offsets = [0, 288], sizes = [5, 32], strides = [1, 1]} : vector<10x384xf32> to vector<5x32xf32>
    %cst_92 = arith.constant dense<0.000000e+00> : vector<5x5xf32>
    %262 = tpu.matmul %259, %260, %cst_92 {dimension_numbers = #tpu.dot_dimension_numbers<[1], [1], [0], [0], [0, 0, 1, 0], [], []>} : vector<5x32xf32>, vector<5x32xf32>, vector<5x5xf32> -> vector<5x5xf32>
    %cst_93 = arith.constant dense<0xFF800000> : vector<5xf32>
    %263 = vector.multi_reduction <maximumf>, %262, %cst_93 [1] : vector<5x5xf32> to vector<5xf32>
    %264 = vector.shape_cast %263 : vector<5xf32> to vector<5x1xf32>
    %265 = vector.broadcast %264 : vector<5x1xf32> to vector<5x5xf32>
    %266 = arith.subf %262, %265 : vector<5x5xf32>
    %267 = math.exp %266 : vector<5x5xf32>
    %cst_94 = arith.constant dense<0.000000e+00> : vector<5xf32>
    %268 = vector.multi_reduction <add>, %267, %cst_94 [1] : vector<5x5xf32> to vector<5xf32>
    %269 = vector.shape_cast %268 : vector<5xf32> to vector<5x1xf32>
    %270 = tpu.reciprocal %269 {approx = true} : vector<5x1xf32> -> vector<5x1xf32>
    %271 = vector.broadcast %270 : vector<5x1xf32> to vector<5x5xf32>
    %272 = arith.mulf %267, %271 : vector<5x5xf32>
    %cst_95 = arith.constant dense<0.000000e+00> : vector<5x32xf32>
    %273 = tpu.matmul %272, %261, %cst_95 {dimension_numbers = #tpu.dot_dimension_numbers<[1], [0], [0], [1], [0, 0, 1, 1], [], []>} : vector<5x5xf32>, vector<5x32xf32>, vector<5x32xf32> -> vector<5x32xf32>
    %274 = vector.extract_strided_slice %243 {offsets = [0, 64], sizes = [5, 32], strides = [1, 1]} : vector<10x384xf32> to vector<5x32xf32>
    %275 = vector.extract_strided_slice %243 {offsets = [0, 192], sizes = [5, 32], strides = [1, 1]} : vector<10x384xf32> to vector<5x32xf32>
    %276 = vector.extract_strided_slice %243 {offsets = [0, 320], sizes = [5, 32], strides = [1, 1]} : vector<10x384xf32> to vector<5x32xf32>
    %cst_96 = arith.constant dense<0.000000e+00> : vector<5x5xf32>
    %277 = tpu.matmul %274, %275, %cst_96 {dimension_numbers = #tpu.dot_dimension_numbers<[1], [1], [0], [0], [0, 0, 1, 0], [], []>} : vector<5x32xf32>, vector<5x32xf32>, vector<5x5xf32> -> vector<5x5xf32>
    %cst_97 = arith.constant dense<0xFF800000> : vector<5xf32>
    %278 = vector.multi_reduction <maximumf>, %277, %cst_97 [1] : vector<5x5xf32> to vector<5xf32>
    %279 = vector.shape_cast %278 : vector<5xf32> to vector<5x1xf32>
    %280 = vector.broadcast %279 : vector<5x1xf32> to vector<5x5xf32>
    %281 = arith.subf %277, %280 : vector<5x5xf32>
    %282 = math.exp %281 : vector<5x5xf32>
    %cst_98 = arith.constant dense<0.000000e+00> : vector<5xf32>
    %283 = vector.multi_reduction <add>, %282, %cst_98 [1] : vector<5x5xf32> to vector<5xf32>
    %284 = vector.shape_cast %283 : vector<5xf32> to vector<5x1xf32>
    %285 = tpu.reciprocal %284 {approx = true} : vector<5x1xf32> -> vector<5x1xf32>
    %286 = vector.broadcast %285 : vector<5x1xf32> to vector<5x5xf32>
    %287 = arith.mulf %282, %286 : vector<5x5xf32>
    %cst_99 = arith.constant dense<0.000000e+00> : vector<5x32xf32>
    %288 = tpu.matmul %287, %276, %cst_99 {dimension_numbers = #tpu.dot_dimension_numbers<[1], [0], [0], [1], [0, 0, 1, 1], [], []>} : vector<5x5xf32>, vector<5x32xf32>, vector<5x32xf32> -> vector<5x32xf32>
    %289 = vector.extract_strided_slice %243 {offsets = [0, 96], sizes = [5, 32], strides = [1, 1]} : vector<10x384xf32> to vector<5x32xf32>
    %290 = vector.extract_strided_slice %243 {offsets = [0, 224], sizes = [5, 32], strides = [1, 1]} : vector<10x384xf32> to vector<5x32xf32>
    %291 = vector.extract_strided_slice %243 {offsets = [0, 352], sizes = [5, 32], strides = [1, 1]} : vector<10x384xf32> to vector<5x32xf32>
    %cst_100 = arith.constant dense<0.000000e+00> : vector<5x5xf32>
    %292 = tpu.matmul %289, %290, %cst_100 {dimension_numbers = #tpu.dot_dimension_numbers<[1], [1], [0], [0], [0, 0, 1, 0], [], []>} : vector<5x32xf32>, vector<5x32xf32>, vector<5x5xf32> -> vector<5x5xf32>
    %cst_101 = arith.constant dense<0xFF800000> : vector<5xf32>
    %293 = vector.multi_reduction <maximumf>, %292, %cst_101 [1] : vector<5x5xf32> to vector<5xf32>
    %294 = vector.shape_cast %293 : vector<5xf32> to vector<5x1xf32>
    %295 = vector.broadcast %294 : vector<5x1xf32> to vector<5x5xf32>
    %296 = arith.subf %292, %295 : vector<5x5xf32>
    %297 = math.exp %296 : vector<5x5xf32>
    %cst_102 = arith.constant dense<0.000000e+00> : vector<5xf32>
    %298 = vector.multi_reduction <add>, %297, %cst_102 [1] : vector<5x5xf32> to vector<5xf32>
    %299 = vector.shape_cast %298 : vector<5xf32> to vector<5x1xf32>
    %300 = tpu.reciprocal %299 {approx = true} : vector<5x1xf32> -> vector<5x1xf32>
    %301 = vector.broadcast %300 : vector<5x1xf32> to vector<5x5xf32>
    %302 = arith.mulf %297, %301 : vector<5x5xf32>
    %cst_103 = arith.constant dense<0.000000e+00> : vector<5x32xf32>
    %303 = tpu.matmul %302, %291, %cst_103 {dimension_numbers = #tpu.dot_dimension_numbers<[1], [0], [0], [1], [0, 0, 1, 1], [], []>} : vector<5x5xf32>, vector<5x32xf32>, vector<5x32xf32> -> vector<5x32xf32>
    %304 = tpu.concatenate %258, %273, %288, %303 in 1 : vector<5x32xf32>, vector<5x32xf32>, vector<5x32xf32>, vector<5x32xf32> -> vector<5x128xf32>
    %305 = vector.extract_strided_slice %243 {offsets = [5, 0], sizes = [5, 32], strides = [1, 1]} : vector<10x384xf32> to vector<5x32xf32>
    %306 = vector.extract_strided_slice %243 {offsets = [5, 128], sizes = [5, 32], strides = [1, 1]} : vector<10x384xf32> to vector<5x32xf32>
    %307 = vector.extract_strided_slice %243 {offsets = [5, 256], sizes = [5, 32], strides = [1, 1]} : vector<10x384xf32> to vector<5x32xf32>
    %cst_104 = arith.constant dense<0.000000e+00> : vector<5x5xf32>
    %308 = tpu.matmul %305, %306, %cst_104 {dimension_numbers = #tpu.dot_dimension_numbers<[1], [1], [0], [0], [0, 0, 1, 0], [], []>} : vector<5x32xf32>, vector<5x32xf32>, vector<5x5xf32> -> vector<5x5xf32>
    %cst_105 = arith.constant dense<0xFF800000> : vector<5xf32>
    %309 = vector.multi_reduction <maximumf>, %308, %cst_105 [1] : vector<5x5xf32> to vector<5xf32>
    %310 = vector.shape_cast %309 : vector<5xf32> to vector<5x1xf32>
    %311 = vector.broadcast %310 : vector<5x1xf32> to vector<5x5xf32>
    %312 = arith.subf %308, %311 : vector<5x5xf32>
    %313 = math.exp %312 : vector<5x5xf32>
    %cst_106 = arith.constant dense<0.000000e+00> : vector<5xf32>
    %314 = vector.multi_reduction <add>, %313, %cst_106 [1] : vector<5x5xf32> to vector<5xf32>
    %315 = vector.shape_cast %314 : vector<5xf32> to vector<5x1xf32>
    %316 = tpu.reciprocal %315 {approx = true} : vector<5x1xf32> -> vector<5x1xf32>
    %317 = vector.broadcast %316 : vector<5x1xf32> to vector<5x5xf32>
    %318 = arith.mulf %313, %317 : vector<5x5xf32>
    %cst_107 = arith.constant dense<0.000000e+00> : vector<5x32xf32>
    %319 = tpu.matmul %318, %307, %cst_107 {dimension_numbers = #tpu.dot_dimension_numbers<[1], [0], [0], [1], [0, 0, 1, 1], [], []>} : vector<5x5xf32>, vector<5x32xf32>, vector<5x32xf32> -> vector<5x32xf32>
    %320 = vector.extract_strided_slice %243 {offsets = [5, 32], sizes = [5, 32], strides = [1, 1]} : vector<10x384xf32> to vector<5x32xf32>
    %321 = vector.extract_strided_slice %243 {offsets = [5, 160], sizes = [5, 32], strides = [1, 1]} : vector<10x384xf32> to vector<5x32xf32>
    %322 = vector.extract_strided_slice %243 {offsets = [5, 288], sizes = [5, 32], strides = [1, 1]} : vector<10x384xf32> to vector<5x32xf32>
    %cst_108 = arith.constant dense<0.000000e+00> : vector<5x5xf32>
    %323 = tpu.matmul %320, %321, %cst_108 {dimension_numbers = #tpu.dot_dimension_numbers<[1], [1], [0], [0], [0, 0, 1, 0], [], []>} : vector<5x32xf32>, vector<5x32xf32>, vector<5x5xf32> -> vector<5x5xf32>
    %cst_109 = arith.constant dense<0xFF800000> : vector<5xf32>
    %324 = vector.multi_reduction <maximumf>, %323, %cst_109 [1] : vector<5x5xf32> to vector<5xf32>
    %325 = vector.shape_cast %324 : vector<5xf32> to vector<5x1xf32>
    %326 = vector.broadcast %325 : vector<5x1xf32> to vector<5x5xf32>
    %327 = arith.subf %323, %326 : vector<5x5xf32>
    %328 = math.exp %327 : vector<5x5xf32>
    %cst_110 = arith.constant dense<0.000000e+00> : vector<5xf32>
    %329 = vector.multi_reduction <add>, %328, %cst_110 [1] : vector<5x5xf32> to vector<5xf32>
    %330 = vector.shape_cast %329 : vector<5xf32> to vector<5x1xf32>
    %331 = tpu.reciprocal %330 {approx = true} : vector<5x1xf32> -> vector<5x1xf32>
    %332 = vector.broadcast %331 : vector<5x1xf32> to vector<5x5xf32>
    %333 = arith.mulf %328, %332 : vector<5x5xf32>
    %cst_111 = arith.constant dense<0.000000e+00> : vector<5x32xf32>
    %334 = tpu.matmul %333, %322, %cst_111 {dimension_numbers = #tpu.dot_dimension_numbers<[1], [0], [0], [1], [0, 0, 1, 1], [], []>} : vector<5x5xf32>, vector<5x32xf32>, vector<5x32xf32> -> vector<5x32xf32>
    %335 = vector.extract_strided_slice %243 {offsets = [5, 64], sizes = [5, 32], strides = [1, 1]} : vector<10x384xf32> to vector<5x32xf32>
    %336 = vector.extract_strided_slice %243 {offsets = [5, 192], sizes = [5, 32], strides = [1, 1]} : vector<10x384xf32> to vector<5x32xf32>
    %337 = vector.extract_strided_slice %243 {offsets = [5, 320], sizes = [5, 32], strides = [1, 1]} : vector<10x384xf32> to vector<5x32xf32>
    %cst_112 = arith.constant dense<0.000000e+00> : vector<5x5xf32>
    %338 = tpu.matmul %335, %336, %cst_112 {dimension_numbers = #tpu.dot_dimension_numbers<[1], [1], [0], [0], [0, 0, 1, 0], [], []>} : vector<5x32xf32>, vector<5x32xf32>, vector<5x5xf32> -> vector<5x5xf32>
    %cst_113 = arith.constant dense<0xFF800000> : vector<5xf32>
    %339 = vector.multi_reduction <maximumf>, %338, %cst_113 [1] : vector<5x5xf32> to vector<5xf32>
    %340 = vector.shape_cast %339 : vector<5xf32> to vector<5x1xf32>
    %341 = vector.broadcast %340 : vector<5x1xf32> to vector<5x5xf32>
    %342 = arith.subf %338, %341 : vector<5x5xf32>
    %343 = math.exp %342 : vector<5x5xf32>
    %cst_114 = arith.constant dense<0.000000e+00> : vector<5xf32>
    %344 = vector.multi_reduction <add>, %343, %cst_114 [1] : vector<5x5xf32> to vector<5xf32>
    %345 = vector.shape_cast %344 : vector<5xf32> to vector<5x1xf32>
    %346 = tpu.reciprocal %345 {approx = true} : vector<5x1xf32> -> vector<5x1xf32>
    %347 = vector.broadcast %346 : vector<5x1xf32> to vector<5x5xf32>
    %348 = arith.mulf %343, %347 : vector<5x5xf32>
    %cst_115 = arith.constant dense<0.000000e+00> : vector<5x32xf32>
    %349 = tpu.matmul %348, %337, %cst_115 {dimension_numbers = #tpu.dot_dimension_numbers<[1], [0], [0], [1], [0, 0, 1, 1], [], []>} : vector<5x5xf32>, vector<5x32xf32>, vector<5x32xf32> -> vector<5x32xf32>
    %350 = vector.extract_strided_slice %243 {offsets = [5, 96], sizes = [5, 32], strides = [1, 1]} : vector<10x384xf32> to vector<5x32xf32>
    %351 = vector.extract_strided_slice %243 {offsets = [5, 224], sizes = [5, 32], strides = [1, 1]} : vector<10x384xf32> to vector<5x32xf32>
    %352 = vector.extract_strided_slice %243 {offsets = [5, 352], sizes = [5, 32], strides = [1, 1]} : vector<10x384xf32> to vector<5x32xf32>
    %cst_116 = arith.constant dense<0.000000e+00> : vector<5x5xf32>
    %353 = tpu.matmul %350, %351, %cst_116 {dimension_numbers = #tpu.dot_dimension_numbers<[1], [1], [0], [0], [0, 0, 1, 0], [], []>} : vector<5x32xf32>, vector<5x32xf32>, vector<5x5xf32> -> vector<5x5xf32>
    %cst_117 = arith.constant dense<0xFF800000> : vector<5xf32>
    %354 = vector.multi_reduction <maximumf>, %353, %cst_117 [1] : vector<5x5xf32> to vector<5xf32>
    %355 = vector.shape_cast %354 : vector<5xf32> to vector<5x1xf32>
    %356 = vector.broadcast %355 : vector<5x1xf32> to vector<5x5xf32>
    %357 = arith.subf %353, %356 : vector<5x5xf32>
    %358 = math.exp %357 : vector<5x5xf32>
    %cst_118 = arith.constant dense<0.000000e+00> : vector<5xf32>
    %359 = vector.multi_reduction <add>, %358, %cst_118 [1] : vector<5x5xf32> to vector<5xf32>
    %360 = vector.shape_cast %359 : vector<5xf32> to vector<5x1xf32>
    %361 = tpu.reciprocal %360 {approx = true} : vector<5x1xf32> -> vector<5x1xf32>
    %362 = vector.broadcast %361 : vector<5x1xf32> to vector<5x5xf32>
    %363 = arith.mulf %358, %362 : vector<5x5xf32>
    %cst_119 = arith.constant dense<0.000000e+00> : vector<5x32xf32>
    %364 = tpu.matmul %363, %352, %cst_119 {dimension_numbers = #tpu.dot_dimension_numbers<[1], [0], [0], [1], [0, 0, 1, 1], [], []>} : vector<5x5xf32>, vector<5x32xf32>, vector<5x32xf32> -> vector<5x32xf32>
    %365 = tpu.concatenate %319, %334, %349, %364 in 1 : vector<5x32xf32>, vector<5x32xf32>, vector<5x32xf32>, vector<5x32xf32> -> vector<5x128xf32>
    %366 = tpu.concatenate %304, %365 in 0 : vector<5x128xf32>, vector<5x128xf32> -> vector<10x128xf32>
    %367 = arith.truncf %366 : vector<10x128xf32> to vector<10x128xbf16>
    %c1_120 = arith.constant 1 : index
    %c0_121 = arith.constant 0 : index
    %c0_122 = arith.constant 0 : index
    %368 = vector.load %arg6[%c1_120, %c0_121, %c0_122] : memref<2x128x128xbf16, #tpu.memory_space<vmem>>, vector<1x128x128xbf16>
    %369 = vector.shape_cast %368 : vector<1x128x128xbf16> to vector<128x128xbf16>
    %cst_123 = arith.constant dense<0.000000e+00> : vector<10x128xf32>
    %370 = tpu.matmul %367, %369, %cst_123 {dimension_numbers = #tpu.dot_dimension_numbers<[1], [0], [0], [1], [0, 0, 1, 1], [], []>} : vector<10x128xbf16>, vector<128x128xbf16>, vector<10x128xf32> -> vector<10x128xf32>
    %371 = arith.addf %214, %370 : vector<10x128xf32>
    %c11 = arith.constant 11 : index
    %c0_124 = arith.constant 0 : index
    %372 = vector.load %arg4[%c11, %c0_124] : memref<20x512xf32, #tpu.memory_space<vmem>>, vector<1x128xf32>
    %373 = vector.broadcast %372 : vector<1x128xf32> to vector<10x128xf32>
    %374 = arith.addf %371, %373 : vector<10x128xf32>
    %c12 = arith.constant 12 : index
    %c0_125 = arith.constant 0 : index
    %375 = vector.load %arg4[%c12, %c0_125] : memref<20x512xf32, #tpu.memory_space<vmem>>, vector<1x128xf32>
    %c13 = arith.constant 13 : index
    %c0_126 = arith.constant 0 : index
    %376 = vector.load %arg4[%c13, %c0_126] : memref<20x512xf32, #tpu.memory_space<vmem>>, vector<1x128xf32>
    %cst_127 = arith.constant dense<0.000000e+00> : vector<10xf32>
    %377 = vector.multi_reduction <add>, %374, %cst_127 [1] : vector<10x128xf32> to vector<10xf32>
    %378 = vector.shape_cast %377 : vector<10xf32> to vector<10x1xf32>
    %cst_128 = arith.constant 1.280000e+02 : f32
    %379 = vector.broadcast %cst_128 : f32 to vector<10x1xf32>
    %380 = arith.divf %378, %379 : vector<10x1xf32>
    %381 = vector.broadcast %380 : vector<10x1xf32> to vector<10x128xf32>
    %382 = arith.subf %374, %381 : vector<10x128xf32>
    %383 = arith.mulf %382, %382 : vector<10x128xf32>
    %cst_129 = arith.constant dense<0.000000e+00> : vector<10xf32>
    %384 = vector.multi_reduction <add>, %383, %cst_129 [1] : vector<10x128xf32> to vector<10xf32>
    %385 = vector.shape_cast %384 : vector<10xf32> to vector<10x1xf32>
    %cst_130 = arith.constant 1.280000e+02 : f32
    %386 = vector.broadcast %cst_130 : f32 to vector<10x1xf32>
    %387 = arith.divf %385, %386 : vector<10x1xf32>
    %cst_131 = arith.constant 9.99999997E-7 : f32
    %388 = vector.broadcast %cst_131 : f32 to vector<10x1xf32>
    %389 = arith.addf %387, %388 : vector<10x1xf32>
    %390 = math.rsqrt %389 : vector<10x1xf32>
    %391 = vector.broadcast %390 : vector<10x1xf32> to vector<10x128xf32>
    %392 = arith.mulf %382, %391 : vector<10x128xf32>
    %393 = vector.broadcast %375 : vector<1x128xf32> to vector<10x128xf32>
    %394 = arith.mulf %392, %393 : vector<10x128xf32>
    %395 = vector.broadcast %376 : vector<1x128xf32> to vector<10x128xf32>
    %396 = arith.addf %394, %395 : vector<10x128xf32>
    %397 = arith.truncf %396 : vector<10x128xf32> to vector<10x128xbf16>
    %c1_132 = arith.constant 1 : index
    %c0_133 = arith.constant 0 : index
    %c0_134 = arith.constant 0 : index
    %398 = vector.load %arg7[%c1_132, %c0_133, %c0_134] : memref<2x128x512xbf16, #tpu.memory_space<vmem>>, vector<1x128x512xbf16>
    %399 = vector.shape_cast %398 : vector<1x128x512xbf16> to vector<128x512xbf16>
    %cst_135 = arith.constant dense<0.000000e+00> : vector<10x512xf32>
    %400 = tpu.matmul %397, %399, %cst_135 {dimension_numbers = #tpu.dot_dimension_numbers<[1], [0], [0], [1], [0, 0, 1, 1], [], []>} : vector<10x128xbf16>, vector<128x512xbf16>, vector<10x512xf32> -> vector<10x512xf32>
    %c14 = arith.constant 14 : index
    %c0_136 = arith.constant 0 : index
    %401 = vector.load %arg4[%c14, %c0_136] : memref<20x512xf32, #tpu.memory_space<vmem>>, vector<1x512xf32>
    %402 = vector.broadcast %401 : vector<1x512xf32> to vector<10x512xf32>
    %403 = arith.addf %400, %402 : vector<10x512xf32>
    %404 = arith.mulf %403, %403 : vector<10x512xf32>
    %405 = arith.mulf %403, %404 : vector<10x512xf32>
    %cst_137 = arith.constant 4.471500e-02 : f32
    %406 = vector.broadcast %cst_137 : f32 to vector<10x512xf32>
    %407 = arith.mulf %406, %405 : vector<10x512xf32>
    %408 = arith.addf %403, %407 : vector<10x512xf32>
    %cst_138 = arith.constant 0.797884583 : f32
    %409 = vector.broadcast %cst_138 : f32 to vector<10x512xf32>
    %410 = arith.mulf %409, %408 : vector<10x512xf32>
    %411 = math.tanh %410 : vector<10x512xf32>
    %cst_139 = arith.constant 1.000000e+00 : f32
    %412 = vector.broadcast %cst_139 : f32 to vector<10x512xf32>
    %413 = arith.addf %412, %411 : vector<10x512xf32>
    %cst_140 = arith.constant 5.000000e-01 : f32
    %414 = vector.broadcast %cst_140 : f32 to vector<10x512xf32>
    %415 = arith.mulf %414, %413 : vector<10x512xf32>
    %416 = arith.mulf %403, %415 : vector<10x512xf32>
    %417 = arith.truncf %416 : vector<10x512xf32> to vector<10x512xbf16>
    %c1_141 = arith.constant 1 : index
    %c0_142 = arith.constant 0 : index
    %c0_143 = arith.constant 0 : index
    %418 = vector.load %arg8[%c1_141, %c0_142, %c0_143] : memref<2x512x128xbf16, #tpu.memory_space<vmem>>, vector<1x512x128xbf16>
    %419 = vector.shape_cast %418 : vector<1x512x128xbf16> to vector<512x128xbf16>
    %cst_144 = arith.constant dense<0.000000e+00> : vector<10x128xf32>
    %420 = tpu.matmul %417, %419, %cst_144 {dimension_numbers = #tpu.dot_dimension_numbers<[1], [0], [0], [1], [0, 0, 1, 1], [], []>} : vector<10x512xbf16>, vector<512x128xbf16>, vector<10x128xf32> -> vector<10x128xf32>
    %c15 = arith.constant 15 : index
    %c0_145 = arith.constant 0 : index
    %421 = vector.load %arg4[%c15, %c0_145] : memref<20x512xf32, #tpu.memory_space<vmem>>, vector<1x128xf32>
    %422 = vector.broadcast %421 : vector<1x128xf32> to vector<10x128xf32>
    %423 = arith.addf %420, %422 : vector<10x128xf32>
    %424 = arith.addf %374, %423 : vector<10x128xf32>
    %425 = vector.extract_strided_slice %424 {offsets = [0, 0], sizes = [1, 128], strides = [1, 1]} : vector<10x128xf32> to vector<1x128xf32>
    %426 = vector.extract_strided_slice %424 {offsets = [5, 0], sizes = [1, 128], strides = [1, 1]} : vector<10x128xf32> to vector<1x128xf32>
    %427 = tpu.concatenate %425, %426 in 0 : vector<1x128xf32>, vector<1x128xf32> -> vector<2x128xf32>
    %c16 = arith.constant 16 : index
    %c0_146 = arith.constant 0 : index
    %428 = vector.load %arg4[%c16, %c0_146] : memref<20x512xf32, #tpu.memory_space<vmem>>, vector<1x128xf32>
    %c17 = arith.constant 17 : index
    %c0_147 = arith.constant 0 : index
    %429 = vector.load %arg4[%c17, %c0_147] : memref<20x512xf32, #tpu.memory_space<vmem>>, vector<1x128xf32>
    %cst_148 = arith.constant dense<0.000000e+00> : vector<2xf32>
    %430 = vector.multi_reduction <add>, %427, %cst_148 [1] : vector<2x128xf32> to vector<2xf32>
    %431 = vector.shape_cast %430 : vector<2xf32> to vector<2x1xf32>
    %cst_149 = arith.constant 1.280000e+02 : f32
    %432 = vector.broadcast %cst_149 : f32 to vector<2x1xf32>
    %433 = arith.divf %431, %432 : vector<2x1xf32>
    %434 = vector.broadcast %433 : vector<2x1xf32> to vector<2x128xf32>
    %435 = arith.subf %427, %434 : vector<2x128xf32>
    %436 = arith.mulf %435, %435 : vector<2x128xf32>
    %cst_150 = arith.constant dense<0.000000e+00> : vector<2xf32>
    %437 = vector.multi_reduction <add>, %436, %cst_150 [1] : vector<2x128xf32> to vector<2xf32>
    %438 = vector.shape_cast %437 : vector<2xf32> to vector<2x1xf32>
    %cst_151 = arith.constant 1.280000e+02 : f32
    %439 = vector.broadcast %cst_151 : f32 to vector<2x1xf32>
    %440 = arith.divf %438, %439 : vector<2x1xf32>
    %cst_152 = arith.constant 9.99999997E-7 : f32
    %441 = vector.broadcast %cst_152 : f32 to vector<2x1xf32>
    %442 = arith.addf %440, %441 : vector<2x1xf32>
    %443 = math.rsqrt %442 : vector<2x1xf32>
    %444 = vector.broadcast %443 : vector<2x1xf32> to vector<2x128xf32>
    %445 = arith.mulf %435, %444 : vector<2x128xf32>
    %446 = vector.broadcast %428 : vector<1x128xf32> to vector<2x128xf32>
    %447 = arith.mulf %445, %446 : vector<2x128xf32>
    %448 = vector.broadcast %429 : vector<1x128xf32> to vector<2x128xf32>
    %449 = arith.addf %447, %448 : vector<2x128xf32>
    %c18 = arith.constant 18 : index
    %c0_153 = arith.constant 0 : index
    %450 = vector.load %arg4[%c18, %c0_153] : memref<20x512xf32, #tpu.memory_space<vmem>>, vector<1x128xf32>
    %451 = vector.broadcast %450 : vector<1x128xf32> to vector<2x128xf32>
    %452 = arith.mulf %449, %451 : vector<2x128xf32>
    %cst_154 = arith.constant dense<0.000000e+00> : vector<2xf32>
    %453 = vector.multi_reduction <add>, %452, %cst_154 [1] : vector<2x128xf32> to vector<2xf32>
    %454 = vector.shape_cast %453 : vector<2xf32> to vector<2x1xf32>
    %455 = vector.shape_cast %454 : vector<2x1xf32> to vector<2x1xf32>
    %456 = vector.broadcast %455 : vector<2x1xf32> to vector<2x128xf32>
    %c19 = arith.constant 19 : index
    %c0_155 = arith.constant 0 : index
    %457 = vector.load %arg4[%c19, %c0_155] : memref<20x512xf32, #tpu.memory_space<vmem>>, vector<1x128xf32>
    %458 = vector.broadcast %457 : vector<1x128xf32> to vector<2x128xf32>
    %459 = arith.addf %456, %458 : vector<2x128xf32>
    %c0_156 = arith.constant 0 : index
    %c0_157 = arith.constant 0 : index
    %460 = vector.load %arg9[%c0_156, %c0_157] : memref<2x128xf32, #tpu.memory_space<vmem>>, vector<2x128xf32>
    tpu.vector_store %arg9[%c0_156, %c0_157], %459 {strides = array<i32>} : memref<2x128xf32, #tpu.memory_space<vmem>>, vector<2x128xf32>,
    return
  }
  func.func @transform_0(%arg0: i32) -> (i32, i32) {
    %c0_i32 = arith.constant 0 : i32
    %c0_i32_0 = arith.constant 0 : i32
    %c0_i32_1 = arith.constant 0 : i32
    return %c0_i32, %c0_i32_0 : i32, i32
  }
  func.func @transform_1(%arg0: i32) -> (i32, i32) {
    %c0_i32 = arith.constant 0 : i32
    %c0_i32_0 = arith.constant 0 : i32
    %c0_i32_1 = arith.constant 0 : i32
    return %c0_i32, %c0_i32_0 : i32, i32
  }
  func.func @transform_2(%arg0: i32) -> (i32, i32) {
    %c0_i32 = arith.constant 0 : i32
    %c0_i32_0 = arith.constant 0 : i32
    %c0_i32_1 = arith.constant 0 : i32
    return %c0_i32, %c0_i32_0 : i32, i32
  }
  func.func @transform_3(%arg0: i32) -> (i32, i32) {
    %c0_i32 = arith.constant 0 : i32
    %c0_i32_0 = arith.constant 0 : i32
    %c0_i32_1 = arith.constant 0 : i32
    return %c0_i32, %c0_i32_0 : i32, i32
  }
  func.func @transform_4(%arg0: i32) -> (i32, i32, i32) {
    %c0_i32 = arith.constant 0 : i32
    %c0_i32_0 = arith.constant 0 : i32
    %c0_i32_1 = arith.constant 0 : i32
    %c0_i32_2 = arith.constant 0 : i32
    return %c0_i32, %c0_i32_0, %c0_i32_1 : i32, i32, i32
  }
  func.func @transform_5(%arg0: i32) -> (i32, i32, i32) {
    %c0_i32 = arith.constant 0 : i32
    %c0_i32_0 = arith.constant 0 : i32
    %c0_i32_1 = arith.constant 0 : i32
    %c0_i32_2 = arith.constant 0 : i32
    return %c0_i32, %c0_i32_0, %c0_i32_1 : i32, i32, i32
  }
  func.func @transform_6(%arg0: i32) -> (i32, i32, i32) {
    %c0_i32 = arith.constant 0 : i32
    %c0_i32_0 = arith.constant 0 : i32
    %c0_i32_1 = arith.constant 0 : i32
    %c0_i32_2 = arith.constant 0 : i32
    return %c0_i32, %c0_i32_0, %c0_i32_1 : i32, i32, i32
  }
  func.func @transform_7(%arg0: i32) -> (i32, i32, i32) {
    %c0_i32 = arith.constant 0 : i32
    %c0_i32_0 = arith.constant 0 : i32
    %c0_i32_1 = arith.constant 0 : i32
    %c0_i32_2 = arith.constant 0 : i32
    return %c0_i32, %c0_i32_0, %c0_i32_1 : i32, i32, i32
  }
  func.func @transform_8(%arg0: i32) -> (i32, i32) {
    %c0_i32 = arith.constant 0 : i32
    %c0_i32_0 = arith.constant 0 : i32
    %c0_i32_1 = arith.constant 0 : i32
    return %c0_i32, %c0_i32_0 : i32, i32
  }
}

</mosaic_0001>

<llo_original>
// kernel: tile.9
$region0: #{tile.9}
  %s0 = inlined_call_operand.vmem [shape: f32[2,5,128], index: 0, kind: input, shape index: {}]
  %s1 = inlined_call_operand.vmem [shape: f32[10,128], index: 1, kind: output, shape index: {}]
  %v2 = vld [vmem:[%s0] sm:$0x1f]
  %3 = vst [vmem:[%s1] sm:$0x1f] %v2
  %s4 = scalar_lea.vmem %s0, 8
  %v5 = vld [vmem:[%s4] sm:$0x1f]
  %s6 = scalar_lea.vmem %s1, 5
  %7 = vst [vmem:[%s6] sm:$0x1f] %v5

// kernel: forward.1
$region0: #{forward.1}
  #allocation0 [shape = 'u32[]', space=smem, size = 0x4, offset = 0x4, fixed_abs, tag = 'smem constant byte address 0x4 - core index']
  #allocation1 [shape = 'u32[72,128]{1,0:T(1,128)}', space=vmem, size = 0x9000, scoped, tag = 'internal scratch']
  %s0 = inlined_call_operand.vmem [shape: bf16[10,256], index: 0, kind: input, shape index: {}]
  %s1 = inlined_call_operand.hbm [shape: bf16[256,128], index: 1, kind: input, shape index: {}]
  %s2 = inlined_call_operand.vmem [shape: f32[10,128], index: 2, kind: input, shape index: {}]
  %s3 = inlined_call_operand.hbm [shape: f32[20,512], index: 3, kind: input, shape index: {}]
  %s4 = inlined_call_operand.vmem [shape: bf16[2,128,384], index: 4, kind: input, shape index: {}]
  %s5 = inlined_call_operand.hbm [shape: bf16[2,128,128], index: 5, kind: input, shape index: {}]
  %s6 = inlined_call_operand.hbm [shape: bf16[2,128,512], index: 6, kind: input, shape index: {}]
  %s7 = inlined_call_operand.hbm [shape: bf16[2,512,128], index: 7, kind: input, shape index: {}]
  %s8 = inlined_call_operand.vmem [shape: f32[2,128], index: 8, kind: output, shape index: {}]
  %s9 = sld [smem:[#allocation0]]
  $region62: #{forward.1} parent=0
    _
  %s11 = ssub.s32 1, %s9
  %s12 = scalar_select 0, %s11, %s9
  $region1: #{forward.1} parent=0
    #allocation2 [shape = 'u8[65536]{0}', space=vmem, size = 0x10000, scoped, tag = 'input window, operand 1, single buffered']
    #allocation3 [shape = 's32[1]{0}', space=sflag, size = 0x4, scoped, tag = 'scoped memory for forward.1']
    #allocation4 [shape = 'u8[49152]{0}', space=vmem, size = 0xc000, scoped, tag = 'input window, operand 3, single buffered']
    #allocation5 [shape = 's32[1]{0}', space=sflag, size = 0x4, scoped, tag = 'scoped memory for forward.1']
    #allocation6 [shape = 'u8[65536]{0}', space=vmem, size = 0x10000, scoped, tag = 'input window, operand 5, single buffered']
    #allocation7 [shape = 'u8[262144]{0}', space=vmem, size = 0x40000, scoped, tag = 'input window, operand 6, single buffered']
    #allocation8 [shape = 's32[1]{0}', space=sflag, size = 0x4, scoped, tag = 'scoped memory for forward.1']
    #allocation9 [shape = 'u8[262144]{0}', space=vmem, size = 0x40000, scoped, tag = 'input window, operand 7, single buffered']
    %13 = vsyncpa [#allocation3], 0
    %14 = vsyncpa [#allocation5], 0
    %15 = vsyncpa [#allocation8], 0
    // Predicated region
    $region2: #{forward.1} parent=1 // pred_check
      _
    $region3: #{forward.1} parent=1 // pred_check_branch
      %17 = sbr.rel (0) target = $region5
    $region4: #{forward.1} parent=1 // pred_region
      _
    $region5: #{forward.1} parent=1 // pred_fallthru
      _
    // Predicated region
    $region6: #{forward.1} parent=1 // pred_check
      _
    $region7: #{forward.1} parent=1 // pred_check_branch
      %19 = sbr.rel (0) target = $region9
    $region8: #{forward.1} parent=1 // pred_region
      %21 = vsyncadd [#allocation3], 0
      %s22 = sshll.u32 %s1, 4
      %s23 = int_to_ptr.hbm [resolvable:$true] %s22
      %s24 = sshll.u32 [#allocation2], 4
      %s25 = int_to_ptr.vmem [resolvable:$true] %s24
      %30 = dma.hbm_to_vmem [thread:$0]  %s23, 2048, %s25, [#allocation3], 64, 64, 4
    $region9: #{forward.1} parent=1 // pred_fallthru
      _
    // Predicated region
    $region10: #{forward.1} parent=1 // pred_check
      _
    $region11: #{forward.1} parent=1 // pred_check_branch
      %32 = sbr.rel (0) target = $region13
    $region12: #{forward.1} parent=1 // pred_region
      _
    $region13: #{forward.1} parent=1 // pred_fallthru
      _
    // Predicated region
    $region14: #{forward.1} parent=1 // pred_check
      _
    $region15: #{forward.1} parent=1 // pred_check_branch
      %34 = sbr.rel (0) target = $region17
    $region16: #{forward.1} parent=1 // pred_region
      %36 = vsyncadd [#allocation5], 0
      %s37 = sshll.u32 %s3, 4
      %s38 = int_to_ptr.hbm [resolvable:$true] %s37
      %s39 = sshll.u32 [#allocation4], 4
      %s40 = int_to_ptr.vmem [resolvable:$true] %s39
      %45 = dma.hbm_to_vmem [thread:$0]  %s38, 1536, %s40, [#allocation5], 512, 512, 32
    $region17: #{forward.1} parent=1 // pred_fallthru
      _
    // Predicated region
    $region18: #{forward.1} parent=1 // pred_check
      _
    $region19: #{forward.1} parent=1 // pred_check_branch
      %47 = sbr.rel (0) target = $region21
    $region20: #{forward.1} parent=1 // pred_region
      _
    $region21: #{forward.1} parent=1 // pred_fallthru
      _
    // Predicated region
    $region22: #{forward.1} parent=1 // pred_check
      _
    $region23: #{forward.1} parent=1 // pred_check_branch
      %49 = sbr.rel (0) target = $region25
    $region24: #{forward.1} parent=1 // pred_region
      %51 = vsyncadd [#allocation5], 0
      %s52 = sshll.u32 %s5, 4
      %s53 = int_to_ptr.hbm [resolvable:$true] %s52
      %s54 = sshll.u32 [#allocation6], 4
      %s55 = int_to_ptr.vmem [resolvable:$true] %s54
      %60 = dma.hbm_to_vmem [thread:$0]  %s53, 2048, %s55, [#allocation5], 64, 64, 4
    $region25: #{forward.1} parent=1 // pred_fallthru
      _
    // Predicated region
    $region26: #{forward.1} parent=1 // pred_check
      _
    $region27: #{forward.1} parent=1 // pred_check_branch
      %62 = sbr.rel (0) target = $region29
    $region28: #{forward.1} parent=1 // pred_region
      %64 = vsyncadd [#allocation8], 0
      %s65 = sshll.u32 %s6, 4
      %s66 = int_to_ptr.hbm [resolvable:$true] %s65
      %s67 = sshll.u32 [#allocation7], 4
      %s68 = int_to_ptr.vmem [resolvable:$true] %s67
      %73 = dma.hbm_to_vmem [thread:$0]  %s66, 8192, %s68, [#allocation8], 256, 256, 16
    $region29: #{forward.1} parent=1 // pred_fallthru
      _
    // Predicated region
    $region30: #{forward.1} parent=1 // pred_check
      _
    $region31: #{forward.1} parent=1 // pred_check_branch
      %75 = sbr.rel (0) target = $region33
    $region32: #{forward.1} parent=1 // pred_region
      %77 = vsyncadd [#allocation8], 0
      %s78 = sshll.u32 %s7, 4
      %s79 = int_to_ptr.hbm [resolvable:$true] %s78
      %s80 = sshll.u32 [#allocation9], 4
      %s81 = int_to_ptr.vmem [resolvable:$true] %s80
      %86 = dma.hbm_to_vmem [thread:$0]  %s79, 8192, %s81, [#allocation8], 64, 64, 4
    $region33: #{forward.1} parent=1 // pred_fallthru
      _
    // Predicated region
    $region34: #{forward.1} parent=1 // pred_check
      _
    $region35: #{forward.1} parent=1 // pred_check_branch
      %88 = sbr.rel (0) target = $region37
    $region36: #{forward.1} parent=1 // pred_region
      %90 = dma.done [#allocation3], 2048
    $region37: #{forward.1} parent=1 // pred_fallthru
      _
    // Predicated region
    $region38: #{forward.1} parent=1 // pred_check
      _
    $region39: #{forward.1} parent=1 // pred_check_branch
      %92 = sbr.rel (0) target = $region41
    $region40: #{forward.1} parent=1 // pred_region
      %94 = dma.done [#allocation5], 1536
    $region41: #{forward.1} parent=1 // pred_fallthru
      _
    // Predicated region
    $region42: #{forward.1} parent=1 // pred_check
      _
    $region43: #{forward.1} parent=1 // pred_check_branch
      %96 = sbr.rel (0) target = $region45
    $region44: #{forward.1} parent=1 // pred_region
      %98 = dma.done [#allocation5], 2048
    $region45: #{forward.1} parent=1 // pred_fallthru
      _
    // Predicated region
    $region46: #{forward.1} parent=1 // pred_check
      _
    $region47: #{forward.1} parent=1 // pred_check_branch
      %100 = sbr.rel (0) target = $region49
    $region48: #{forward.1} parent=1 // pred_region
      %102 = dma.done [#allocation8], 8192
    $region49: #{forward.1} parent=1 // pred_fallthru
      _
    // Predicated region
    $region50: #{forward.1} parent=1 // pred_check
      _
    $region51: #{forward.1} parent=1 // pred_check_branch
      %104 = sbr.rel (0) target = $region53
    $region52: #{forward.1} parent=1 // pred_region
      %106 = dma.done [#allocation8], 8192
    $region53: #{forward.1} parent=1 // pred_fallthru
      _
    %v107 = vld [vmem:[%s2] sm:$0xff]
    %v108 = vld [vmem:[%s2 + $0x8] sm:$0x3]
    %v109 = vld [vmem:[%s0] sm:$0xff]
    %v110 = vld [vmem:[%s0 + $0x8] sm:$0x11]
    %v111 = vld [vmem:[#allocation2] sm:$0xf]
    %v112 = vld [vmem:[#allocation2 + $0x4] sm:$0xf]
    %v113 = vld [vmem:[#allocation2 + $0x8] sm:$0xf]
    %v114 = vld [vmem:[#allocation2 + $0xc] sm:$0xf]
    %v115 = vld [vmem:[#allocation2 + $0x10] sm:$0xf]
    %v116 = vld [vmem:[#allocation2 + $0x14] sm:$0xf]
    %v117 = vld [vmem:[#allocation2 + $0x18] sm:$0xf]
    %v118 = vld [vmem:[#allocation2 + $0x1c] sm:$0xf]
    %v119 = vld [vmem:[#allocation2 + $0x20] sm:$0xf]
    %v120 = vld [vmem:[#allocation2 + $0x24] sm:$0xf]
    %v121 = vld [vmem:[#allocation2 + $0x28] sm:$0xf]
    %v122 = vld [vmem:[#allocation2 + $0x2c] sm:$0xf]
    %v123 = vld [vmem:[#allocation2 + $0x30] sm:$0xf]
    %v124 = vld [vmem:[#allocation2 + $0x34] sm:$0xf]
    %v125 = vld [vmem:[#allocation2 + $0x38] sm:$0xf]
    %v126 = vld [vmem:[#allocation2 + $0x3c] sm:$0xf]
    %v127 = vld [vmem:[#allocation2 + $0x40] sm:$0xf]
    %v128 = vld [vmem:[#allocation2 + $0x44] sm:$0xf]
    %v129 = vld [vmem:[#allocation2 + $0x48] sm:$0xf]
    %v130 = vld [vmem:[#allocation2 + $0x4c] sm:$0xf]
    %v131 = vld [vmem:[#allocation2 + $0x50] sm:$0xf]
    %v132 = vld [vmem:[#allocation2 + $0x54] sm:$0xf]
    %v133 = vld [vmem:[#allocation2 + $0x58] sm:$0xf]
    %v134 = vld [vmem:[#allocation2 + $0x5c] sm:$0xf]
    %v135 = vld [vmem:[#allocation2 + $0x60] sm:$0xf]
    %v136 = vld [vmem:[#allocation2 + $0x64] sm:$0xf]
    %v137 = vld [vmem:[#allocation2 + $0x68] sm:$0xf]
    %v138 = vld [vmem:[#allocation2 + $0x6c] sm:$0xf]
    %v139 = vld [vmem:[#allocation2 + $0x70] sm:$0xf]
    %v140 = vld [vmem:[#allocation2 + $0x74] sm:$0xf]
    %v141 = vld [vmem:[#allocation2 + $0x78] sm:$0xf]
    %v142 = vld [vmem:[#allocation2 + $0x7c] sm:$0xf]
    %v145 = vunpack.c.l.b16 %v109
    %v146 = vunpack.c.h.b16 %v109
    %v147 = vunpack.c.l.b16 %v110
    %v148 = vunpack.c.h.b16 %v110
    %v149 = vpack.c.b16 %v147, %v145
    %v150 = vpack.c.b16 %v148, %v146
    %v185 = vunpack.c.l.b16 %v111
    %v186 = vunpack.c.l.b16 %v112
    %v187 = vunpack.c.l.b16 %v113
    %v188 = vunpack.c.l.b16 %v114
    %v189 = vunpack.c.l.b16 %v115
    %v190 = vunpack.c.l.b16 %v116
    %v191 = vunpack.c.l.b16 %v117
    %v192 = vunpack.c.l.b16 %v118
    %v193 = vunpack.c.l.b16 %v119
    %v194 = vunpack.c.l.b16 %v120
    %v195 = vunpack.c.l.b16 %v121
    %v196 = vunpack.c.l.b16 %v122
    %v197 = vunpack.c.l.b16 %v123
    %v198 = vunpack.c.l.b16 %v124
    %v199 = vunpack.c.l.b16 %v125
    %v200 = vunpack.c.l.b16 %v126
    %v201 = vunpack.c.l.b16 %v127
    %v202 = vunpack.c.l.b16 %v128
    %v203 = vunpack.c.l.b16 %v129
    %v204 = vunpack.c.l.b16 %v130
    %v205 = vunpack.c.l.b16 %v131
    %v206 = vunpack.c.l.b16 %v132
    %v207 = vunpack.c.l.b16 %v133
    %v208 = vunpack.c.l.b16 %v134
    %v209 = vunpack.c.l.b16 %v135
    %v210 = vunpack.c.l.b16 %v136
    %v211 = vunpack.c.l.b16 %v137
    %v212 = vunpack.c.l.b16 %v138
    %v213 = vunpack.c.l.b16 %v139
    %v214 = vunpack.c.l.b16 %v140
    %v215 = vunpack.c.l.b16 %v141
    %v216 = vunpack.c.l.b16 %v142
    %v217 = vpack.c.b16 %v186, %v185
    %v218 = vpack.c.b16 %v188, %v187
    %v219 = vpack.c.b16 %v190, %v189
    %v220 = vpack.c.b16 %v192, %v191
    %v221 = vpack.c.b16 %v194, %v193
    %v222 = vpack.c.b16 %v196, %v195
    %v223 = vpack.c.b16 %v198, %v197
    %v224 = vpack.c.b16 %v200, %v199
    %v225 = vpack.c.b16 %v202, %v201
    %v226 = vpack.c.b16 %v204, %v203
    %v227 = vpack.c.b16 %v206, %v205
    %v228 = vpack.c.b16 %v208, %v207
    %v229 = vpack.c.b16 %v210, %v209
    %v230 = vpack.c.b16 %v212, %v211
    %v231 = vpack.c.b16 %v214, %v213
    %v232 = vpack.c.b16 %v216, %v215
    %249 = vmatpush.bf16.msra.mxu0 %v224
    %250 = vmatpush.bf16.msra.mxu0 %v223
    %251 = vmatpush.bf16.msra.mxu0 %v222
    %252 = vmatpush.bf16.msra.mxu0 %v221
    %253 = vmatpush.bf16.msra.mxu0 %v220
    %254 = vmatpush.bf16.msra.mxu0 %v219
    %255 = vmatpush.bf16.msra.mxu0 %v218
    %256 = vmatpush.bf16.msra.mxu0 %v217
    %257 = vmatmul.bf16.gmra.mxu0 %v149
    %v258 = vpop.f32.mrf.mxu0
    %v259 = vadd.f32 0.0, %v258
    %v260 = vpop.f32.mrf.mxu0
    %v261 = vadd.f32 0.0, %v260
    %262 = vdwg.mxu0
    %263 = vmatpush.bf16.msra.mxu0 %v232
    %264 = vmatpush.bf16.msra.mxu0 %v231
    %265 = vmatpush.bf16.msra.mxu0 %v230
    %266 = vmatpush.bf16.msra.mxu0 %v229
    %267 = vmatpush.bf16.msra.mxu0 %v228
    %268 = vmatpush.bf16.msra.mxu0 %v227
    %269 = vmatpush.bf16.msra.mxu0 %v226
    %270 = vmatpush.bf16.msra.mxu0 %v225
    %271 = vmatmul.bf16.gmra.mxu0 %v150
    %v272 = vpop.f32.mrf.mxu0
    %v273 = vadd.f32 %v259, %v272
    %v274 = vpop.f32.mrf.mxu0
    %v275 = vadd.f32 %v261, %v274
    %276 = vdwg.mxu0
    %v277 = vadd.f32 %v107, %v273
    %v278 = vadd.f32 %v108, %v275
    %v279 = vld [vmem:[#allocation4] ss:$0 sm:$0xff]
    %v280 = vld [vmem:[#allocation4 + $0x1] ss:$0 sm:$0xff]
    %281 = vadd.xlane.f32.xlu0 %v277
    %v282 = vpop.xlane.xlu0 %281
    %vm283 = vcmask 1041408
    %v284 = vsel %vm283, %v278, 0.0
    %285 = vadd.xlane.f32.xlu0 %v284
    %v286 = vpop.xlane.xlu0 %285
    %v287 = vrcp.pop 128.0
    %v288 = vmul.f32 128.0, %v287
    %v289 = vsub.f32 1.0, %v288
    %v290 = vmul.f32 %v287, %v289
    %v291 = vadd.f32 %v287, %v290
    %vm292 = vweird.f32 %v287
    %v293 = vsel %vm292, %v287, %v291
    %v294 = vmul.f32 %v282, %v293
    %v295 = vmul.f32 %v286, %v293
    %v296 = vsub.f32 %v277, %v294
    %v297 = vsub.f32 %v278, %v295
    %v298 = vmul.f32 %v296, %v296
    %v299 = vmul.f32 %v297, %v297
    %300 = vadd.xlane.f32.xlu0 %v298
    %v301 = vpop.xlane.xlu0 %300
    %v302 = vsel %vm283, %v299, 0.0
    %303 = vadd.xlane.f32.xlu0 %v302
    %v304 = vpop.xlane.xlu0 %303
    %v305 = vmul.f32 %v301, %v293
    %v306 = vmul.f32 %v304, %v293
    %v307 = vadd.f32 %v305, 1e-06
    %v308 = vadd.f32 %v306, 1e-06
    %v309 = vrsqrt.pop %v307
    %v310 = vmul.f32 %v309, %v307
    %v311 = vmul.f32 %v310, %v309
    %v312 = vmul.f32 0.5, %v311
    %v313 = vsub.f32 1.5, %v312
    %v314 = vmul.f32 %v309, %v313
    %vm315 = vweird.f32 %v307
    %vm316 = vweird.f32 %v309
    %vm317 = vmor %vm315, %vm316
    %v318 = vsel %vm317, %v309, %v314
    %v319 = vrsqrt.pop %v308
    %v320 = vmul.f32 %v319, %v308
    %v321 = vmul.f32 %v320, %v319
    %v322 = vmul.f32 0.5, %v321
    %v323 = vsub.f32 1.5, %v322
    %v324 = vmul.f32 %v319, %v323
    %vm325 = vweird.f32 %v308
    %vm326 = vweird.f32 %v319
    %vm327 = vmor %vm325, %vm326
    %v328 = vsel %vm327, %v319, %v324
    %v329 = vmul.f32 %v296, %v318
    %v330 = vmul.f32 %v297, %v328
    %v331 = vmul.f32 %v329, %v279
    %v332 = vmul.f32 %v330, %v279
    %v333 = vadd.f32 %v331, %v280
    %v334 = vadd.f32 %v332, %v280
    %v335 = vpack.c.bf16 %v334, %v333
    %v336 = vld [vmem:[%s4] sm:$0xff]
    %v337 = vld [vmem:[%s4 + $0x8] sm:$0xf]
    %v338 = vld [vmem:[%s4 + $0xc] sm:$0xff]
    %v339 = vld [vmem:[%s4 + $0x14] sm:$0xf]
    %v340 = vld [vmem:[%s4 + $0x18] sm:$0xff]
    %v341 = vld [vmem:[%s4 + $0x20] sm:$0xf]
    %v342 = vld [vmem:[%s4 + $0x24] sm:$0xff]
    %v343 = vld [vmem:[%s4 + $0x2c] sm:$0xf]
    %v344 = vld [vmem:[%s4 + $0x30] sm:$0xff]
    %v345 = vld [vmem:[%s4 + $0x38] sm:$0xf]
    %v346 = vld [vmem:[%s4 + $0x3c] sm:$0xff]
    %v347 = vld [vmem:[%s4 + $0x44] sm:$0xf]
    %v348 = vld [vmem:[%s4 + $0x48] sm:$0xff]
    %v349 = vld [vmem:[%s4 + $0x50] sm:$0xf]
    %v350 = vld [vmem:[%s4 + $0x54] sm:$0xff]
    %v351 = vld [vmem:[%s4 + $0x5c] sm:$0xf]
    %v352 = vld [vmem:[%s4 + $0x60] sm:$0xff]
    %v353 = vld [vmem:[%s4 + $0x68] sm:$0xf]
    %v354 = vld [vmem:[%s4 + $0x6c] sm:$0xff]
    %v355 = vld [vmem:[%s4 + $0x74] sm:$0xf]
    %v356 = vld [vmem:[%s4 + $0x78] sm:$0xff]
    %v357 = vld [vmem:[%s4 + $0x80] sm:$0xf]
    %v358 = vld [vmem:[%s4 + $0x84] sm:$0xff]
    %v359 = vld [vmem:[%s4 + $0x8c] sm:$0xf]
    %v360 = vld [vmem:[%s4 + $0x90] sm:$0xff]
    %v361 = vld [vmem:[%s4 + $0x98] sm:$0xf]
    %v362 = vld [vmem:[%s4 + $0x9c] sm:$0xff]
    %v363 = vld [vmem:[%s4 + $0xa4] sm:$0xf]
    %v364 = vld [vmem:[%s4 + $0xa8] sm:$0xff]
    %v365 = vld [vmem:[%s4 + $0xb0] sm:$0xf]
    %v366 = vld [vmem:[%s4 + $0xb4] sm:$0xff]
    %v367 = vld [vmem:[%s4 + $0xbc] sm:$0xf]
    %s368 = scalar_lea.vmem [#allocation4], 2
    %v369 = vld [vmem:[%s368] ss:$8 sm:$0x7]
    %v371 = vperm.slane %v369, 0
    %v372 = vperm.slane %v369, 1
    %v373 = vperm.slane %v369, 2
    %v409 = vunpack.c.l.b16 %v336
    %v410 = vunpack.c.h.b16 %v336
    %v411 = vunpack.c.l.b16 %v337
    %v412 = vunpack.c.l.b16 %v338
    %v413 = vunpack.c.h.b16 %v338
    %v414 = vunpack.c.l.b16 %v339
    %v415 = vunpack.c.l.b16 %v340
    %v416 = vunpack.c.h.b16 %v340
    %v417 = vunpack.c.l.b16 %v341
    %v418 = vunpack.c.l.b16 %v342
    %v419 = vunpack.c.h.b16 %v342
    %v420 = vunpack.c.l.b16 %v343
    %v421 = vunpack.c.l.b16 %v344
    %v422 = vunpack.c.h.b16 %v344
    %v423 = vunpack.c.l.b16 %v345
    %v424 = vunpack.c.l.b16 %v346
    %v425 = vunpack.c.h.b16 %v346
    %v426 = vunpack.c.l.b16 %v347
    %v427 = vunpack.c.l.b16 %v348
    %v428 = vunpack.c.h.b16 %v348
    %v429 = vunpack.c.l.b16 %v349
    %v430 = vunpack.c.l.b16 %v350
    %v431 = vunpack.c.h.b16 %v350
    %v432 = vunpack.c.l.b16 %v351
    %v433 = vunpack.c.l.b16 %v352
    %v434 = vunpack.c.h.b16 %v352
    %v435 = vunpack.c.l.b16 %v353
    %v436 = vunpack.c.l.b16 %v354
    %v437 = vunpack.c.h.b16 %v354
    %v438 = vunpack.c.l.b16 %v355
    %v439 = vunpack.c.l.b16 %v356
    %v440 = vunpack.c.h.b16 %v356
    %v441 = vunpack.c.l.b16 %v357
    %v442 = vunpack.c.l.b16 %v358
    %v443 = vunpack.c.h.b16 %v358
    %v444 = vunpack.c.l.b16 %v359
    %v445 = vunpack.c.l.b16 %v360
    %v446 = vunpack.c.h.b16 %v360
    %v447 = vunpack.c.l.b16 %v361
    %v448 = vunpack.c.l.b16 %v362
    %v449 = vunpack.c.h.b16 %v362
    %v450 = vunpack.c.l.b16 %v363
    %v451 = vunpack.c.l.b16 %v364
    %v452 = vunpack.c.h.b16 %v364
    %v453 = vunpack.c.l.b16 %v365
    %v454 = vunpack.c.l.b16 %v366
    %v455 = vunpack.c.h.b16 %v366
    %v456 = vunpack.c.l.b16 %v367
    %v457 = vpack.c.b16 %v412, %v409
    %v458 = vpack.c.b16 %v413, %v410
    %v459 = vpack.c.b16 %v414, %v411
    %v460 = vpack.c.b16 %v418, %v415
    %v461 = vpack.c.b16 %v419, %v416
    %v462 = vpack.c.b16 %v420, %v417
    %v463 = vpack.c.b16 %v424, %v421
    %v464 = vpack.c.b16 %v425, %v422
    %v465 = vpack.c.b16 %v426, %v423
    %v466 = vpack.c.b16 %v430, %v427
    %v467 = vpack.c.b16 %v431, %v428
    %v468 = vpack.c.b16 %v432, %v429
    %v469 = vpack.c.b16 %v436, %v433
    %v470 = vpack.c.b16 %v437, %v434
    %v471 = vpack.c.b16 %v438, %v435
    %v472 = vpack.c.b16 %v442, %v439
    %v473 = vpack.c.b16 %v443, %v440
    %v474 = vpack.c.b16 %v444, %v441
    %v475 = vpack.c.b16 %v448, %v445
    %v476 = vpack.c.b16 %v449, %v446
    %v477 = vpack.c.b16 %v450, %v447
    %v478 = vpack.c.b16 %v454, %v451
    %v479 = vpack.c.b16 %v455, %v452
    %v480 = vpack.c.b16 %v456, %v453
    %505 = vmatpush.bf16.msra.mxu0 %v478
    %506 = vmatpush.bf16.msra.mxu0 %v475
    %507 = vmatpush.bf16.msra.mxu0 %v472
    %508 = vmatpush.bf16.msra.mxu0 %v469
    %509 = vmatpush.bf16.msra.mxu0 %v466
    %510 = vmatpush.bf16.msra.mxu0 %v463
    %511 = vmatpush.bf16.msra.mxu0 %v460
    %512 = vmatpush.bf16.msra.mxu0 %v457
    %513 = vmatmul.bf16.gmra.mxu0 %v335
    %v514 = vpop.f32.mrf.mxu0
    %v515 = vadd.f32 %v371, %v514
    %v516 = vpop.f32.mrf.mxu0
    %v517 = vadd.f32 %v371, %v516
    %518 = vdwg.mxu0
    %519 = vmatpush.bf16.msra.mxu0 %v479
    %520 = vmatpush.bf16.msra.mxu0 %v476
    %521 = vmatpush.bf16.msra.mxu0 %v473
    %522 = vmatpush.bf16.msra.mxu0 %v470
    %523 = vmatpush.bf16.msra.mxu0 %v467
    %524 = vmatpush.bf16.msra.mxu0 %v464
    %525 = vmatpush.bf16.msra.mxu0 %v461
    %526 = vmatpush.bf16.msra.mxu0 %v458
    %527 = vmatmul.bf16.gmra.mxu0 %v335
    %v528 = vpop.f32.mrf.mxu0
    %v529 = vadd.f32 %v372, %v528
    %v530 = vpop.f32.mrf.mxu0
    %v531 = vadd.f32 %v372, %v530
    %532 = vdwg.mxu0
    %533 = vmatpush.bf16.msra.mxu0 %v480
    %534 = vmatpush.bf16.msra.mxu0 %v477
    %535 = vmatpush.bf16.msra.mxu0 %v474
    %536 = vmatpush.bf16.msra.mxu0 %v471
    %537 = vmatpush.bf16.msra.mxu0 %v468
    %538 = vmatpush.bf16.msra.mxu0 %v465
    %539 = vmatpush.bf16.msra.mxu0 %v462
    %540 = vmatpush.bf16.msra.mxu0 %v459
    %541 = vmatmul.bf16.gmra.mxu0 %v335
    %v542 = vpop.f32.mrf.mxu0
    %v543 = vadd.f32 %v373, %v542
    %v544 = vpop.f32.mrf.mxu0
    %v545 = vadd.f32 %v373, %v544
    %546 = vdwg.mxu0
    %vm547 = vcmask 261120
    %v549 = vsel %vm547, %v515, 0
    %v552 = vsel %vm547, %v529, 0
    %554 = vmatpush.xpose.msra.mxu0 0.0
    %555 = vmatpush.xpose.msra.mxu0 0.0
    %556 = vmatpush.xpose.msra.mxu0 0.0
    %557 = vmatpush.xpose.msra.mxu0 0.0
    %558 = vmatpush.xpose.msra.mxu0 0.0
    %559 = vmatpush.xpose.msra.mxu0 0.0
    %560 = vmatpush.xpose.msra.mxu0 0.0
    %561 = vmatpush.xpose.msra.mxu0 0.0
    %562 = vmatpush.xpose.msra.mxu0 0.0
    %563 = vmatpush.xpose.msra.mxu0 0.0
    %564 = vmatpush.xpose.msra.mxu0 0.0
    %565 = vmatpush.xpose.msra.mxu0 0.0
    %566 = vmatpush.xpose.msra.mxu0 0.0
    %567 = vmatpush.xpose.msra.mxu0 0.0
    %568 = vmatpush.xpose.msra.mxu0 0.0
    %569 = vmatpush.xpose.msra.mxu0 %v552
    %570 = vmatmul.f32.gmra.mxu0 %v549
    %v571 = vpop.f32.mrf.mxu0
    %v572 = vadd.f32 0.0, %v571
    %573 = vdwg.mxu0
    %vm574 = vcmask 36864
    %v575 = vsel %vm574, %v572, -inf
    %576 = vmax.xlane.f32.xlu0 %v575
    %v577 = vpop.xlane.xlu0 %576
    %v578 = vsub.f32 %v572, %v577
    %v579 = vmul.f32 %v578, 1.442695
    %v580 = vpow.pop %v579
    %v581 = vsel %vm574, %v580, 0.0
    %582 = vadd.xlane.f32.xlu0 %v581
    %v583 = vpop.xlane.xlu0 %582
    %v584 = vrcp.pop %v583
    %v585 = vmul.f32 %v580, %v584
    %vm586 = vcmask 39936
    %v588 = vsel %vm586, %v585, 0
    %vm590 = vcmask 1044480
    %v592 = vsel %vm590, %v543, 0
    %594 = vmatpush.msra.mxu0 0.0
    %595 = vmatpush.msra.mxu0 0.0
    %596 = vmatpush.msra.mxu0 0.0
    %597 = vmatpush.msra.mxu0 0.0
    %598 = vmatpush.msra.mxu0 0.0
    %599 = vmatpush.msra.mxu0 0.0
    %600 = vmatpush.msra.mxu0 0.0
    %601 = vmatpush.msra.mxu0 0.0
    %602 = vmatpush.msra.mxu0 0.0
    %603 = vmatpush.msra.mxu0 0.0
    %604 = vmatpush.msra.mxu0 0.0
    %605 = vmatpush.msra.mxu0 0.0
    %606 = vmatpush.msra.mxu0 0.0
    %607 = vmatpush.msra.mxu0 0.0
    %608 = vmatpush.msra.mxu0 0.0
    %609 = vmatpush.msra.mxu0 %v592
    %610 = vmatmul.f32.gmra.mxu0 %v588
    %v611 = vpop.f32.mrf.mxu0
    %v612 = vadd.f32 0.0, %v611
    %613 = vdwg.mxu0
    %614 = vrot.lane.b32.xlu0 %v515, 96
    %v615 = vpop.permute.xlu0 %614
    %616 = vrot.lane.b32.xlu0 %v529, 96
    %v617 = vpop.permute.xlu0 %616
    %v618 = vsel %vm547, %v615, 0
    %v620 = vsel %vm547, %v617, 0
    %622 = vmatpush.xpose.msra.mxu0 0.0
    %623 = vmatpush.xpose.msra.mxu0 0.0
    %624 = vmatpush.xpose.msra.mxu0 0.0
    %625 = vmatpush.xpose.msra.mxu0 0.0
    %626 = vmatpush.xpose.msra.mxu0 0.0
    %627 = vmatpush.xpose.msra.mxu0 0.0
    %628 = vmatpush.xpose.msra.mxu0 0.0
    %629 = vmatpush.xpose.msra.mxu0 0.0
    %630 = vmatpush.xpose.msra.mxu0 0.0
    %631 = vmatpush.xpose.msra.mxu0 0.0
    %632 = vmatpush.xpose.msra.mxu0 0.0
    %633 = vmatpush.xpose.msra.mxu0 0.0
    %634 = vmatpush.xpose.msra.mxu0 0.0
    %635 = vmatpush.xpose.msra.mxu0 0.0
    %636 = vmatpush.xpose.msra.mxu0 0.0
    %637 = vmatpush.xpose.msra.mxu0 %v620
    %638 = vmatmul.f32.gmra.mxu0 %v618
    %v639 = vpop.f32.mrf.mxu0
    %v640 = vadd.f32 0.0, %v639
    %641 = vdwg.mxu0
    %v642 = vsel %vm574, %v640, -inf
    %643 = vmax.xlane.f32.xlu0 %v642
    %v644 = vpop.xlane.xlu0 %643
    %v645 = vsub.f32 %v640, %v644
    %v646 = vmul.f32 %v645, 1.442695
    %v647 = vpow.pop %v646
    %v648 = vsel %vm574, %v647, 0.0
    %649 = vadd.xlane.f32.xlu0 %v648
    %v650 = vpop.xlane.xlu0 %649
    %v651 = vrcp.pop %v650
    %v652 = vmul.f32 %v647, %v651
    %653 = vrot.lane.b32.xlu0 %v543, 96
    %v654 = vpop.permute.xlu0 %653
    %v656 = vsel %vm586, %v652, 0
    %v658 = vsel %vm590, %v654, 0
    %660 = vmatpush.msra.mxu0 0.0
    %661 = vmatpush.msra.mxu0 0.0
    %662 = vmatpush.msra.mxu0 0.0
    %663 = vmatpush.msra.mxu0 0.0
    %664 = vmatpush.msra.mxu0 0.0
    %665 = vmatpush.msra.mxu0 0.0
    %666 = vmatpush.msra.mxu0 0.0
    %667 = vmatpush.msra.mxu0 0.0
    %668 = vmatpush.msra.mxu0 0.0
    %669 = vmatpush.msra.mxu0 0.0
    %670 = vmatpush.msra.mxu0 0.0
    %671 = vmatpush.msra.mxu0 0.0
    %672 = vmatpush.msra.mxu0 0.0
    %673 = vmatpush.msra.mxu0 0.0
    %674 = vmatpush.msra.mxu0 0.0
    %675 = vmatpush.msra.mxu0 %v658
    %676 = vmatmul.f32.gmra.mxu0 %v656
    %v677 = vpop.f32.mrf.mxu0
    %v678 = vadd.f32 0.0, %v677
    %679 = vdwg.mxu0
    %680 = vrot.lane.b32.xlu0 %v515, 64
    %v681 = vpop.permute.xlu0 %680
    %682 = vrot.lane.b32.xlu0 %v529, 64
    %v683 = vpop.permute.xlu0 %682
    %v684 = vsel %vm547, %v681, 0
    %v686 = vsel %vm547, %v683, 0
    %688 = vmatpush.xpose.msra.mxu0 0.0
    %689 = vmatpush.xpose.msra.mxu0 0.0
    %690 = vmatpush.xpose.msra.mxu0 0.0
    %691 = vmatpush.xpose.msra.mxu0 0.0
    %692 = vmatpush.xpose.msra.mxu0 0.0
    %693 = vmatpush.xpose.msra.mxu0 0.0
    %694 = vmatpush.xpose.msra.mxu0 0.0
    %695 = vmatpush.xpose.msra.mxu0 0.0
    %696 = vmatpush.xpose.msra.mxu0 0.0
    %697 = vmatpush.xpose.msra.mxu0 0.0
    %698 = vmatpush.xpose.msra.mxu0 0.0
    %699 = vmatpush.xpose.msra.mxu0 0.0
    %700 = vmatpush.xpose.msra.mxu0 0.0
    %701 = vmatpush.xpose.msra.mxu0 0.0
    %702 = vmatpush.xpose.msra.mxu0 0.0
    %703 = vmatpush.xpose.msra.mxu0 %v686
    %704 = vmatmul.f32.gmra.mxu0 %v684
    %v705 = vpop.f32.mrf.mxu0
    %v706 = vadd.f32 0.0, %v705
    %707 = vdwg.mxu0
    %v708 = vsel %vm574, %v706, -inf
    %709 = vmax.xlane.f32.xlu0 %v708
    %v710 = vpop.xlane.xlu0 %709
    %v711 = vsub.f32 %v706, %v710
    %v712 = vmul.f32 %v711, 1.442695
    %v713 = vpow.pop %v712
    %v714 = vsel %vm574, %v713, 0.0
    %715 = vadd.xlane.f32.xlu0 %v714
    %v716 = vpop.xlane.xlu0 %715
    %v717 = vrcp.pop %v716
    %v718 = vmul.f32 %v713, %v717
    %719 = vrot.lane.b32.xlu0 %v543, 64
    %v720 = vpop.permute.xlu0 %719
    %v722 = vsel %vm586, %v718, 0
    %v724 = vsel %vm590, %v720, 0
    %726 = vmatpush.msra.mxu0 0.0
    %727 = vmatpush.msra.mxu0 0.0
    %728 = vmatpush.msra.mxu0 0.0
    %729 = vmatpush.msra.mxu0 0.0
    %730 = vmatpush.msra.mxu0 0.0
    %731 = vmatpush.msra.mxu0 0.0
    %732 = vmatpush.msra.mxu0 0.0
    %733 = vmatpush.msra.mxu0 0.0
    %734 = vmatpush.msra.mxu0 0.0
    %735 = vmatpush.msra.mxu0 0.0
    %736 = vmatpush.msra.mxu0 0.0
    %737 = vmatpush.msra.mxu0 0.0
    %738 = vmatpush.msra.mxu0 0.0
    %739 = vmatpush.msra.mxu0 0.0
    %740 = vmatpush.msra.mxu0 0.0
    %741 = vmatpush.msra.mxu0 %v724
    %742 = vmatmul.f32.gmra.mxu0 %v722
    %v743 = vpop.f32.mrf.mxu0
    %v744 = vadd.f32 0.0, %v743
    %745 = vdwg.mxu0
    %746 = vrot.lane.b32.xlu0 %v515, 32
    %v747 = vpop.permute.xlu0 %746
    %748 = vrot.lane.b32.xlu0 %v529, 32
    %v749 = vpop.permute.xlu0 %748
    %v750 = vsel %vm547, %v747, 0
    %v752 = vsel %vm547, %v749, 0
    %754 = vmatpush.xpose.msra.mxu0 0.0
    %755 = vmatpush.xpose.msra.mxu0 0.0
    %756 = vmatpush.xpose.msra.mxu0 0.0
    %757 = vmatpush.xpose.msra.mxu0 0.0
    %758 = vmatpush.xpose.msra.mxu0 0.0
    %759 = vmatpush.xpose.msra.mxu0 0.0
    %760 = vmatpush.xpose.msra.mxu0 0.0
    %761 = vmatpush.xpose.msra.mxu0 0.0
    %762 = vmatpush.xpose.msra.mxu0 0.0
    %763 = vmatpush.xpose.msra.mxu0 0.0
    %764 = vmatpush.xpose.msra.mxu0 0.0
    %765 = vmatpush.xpose.msra.mxu0 0.0
    %766 = vmatpush.xpose.msra.mxu0 0.0
    %767 = vmatpush.xpose.msra.mxu0 0.0
    %768 = vmatpush.xpose.msra.mxu0 0.0
    %769 = vmatpush.xpose.msra.mxu0 %v752
    %770 = vmatmul.f32.gmra.mxu0 %v750
    %v771 = vpop.f32.mrf.mxu0
    %v772 = vadd.f32 0.0, %v771
    %773 = vdwg.mxu0
    %v774 = vsel %vm574, %v772, -inf
    %775 = vmax.xlane.f32.xlu0 %v774
    %v776 = vpop.xlane.xlu0 %775
    %v777 = vsub.f32 %v772, %v776
    %v778 = vmul.f32 %v777, 1.442695
    %v779 = vpow.pop %v778
    %v780 = vsel %vm574, %v779, 0.0
    %781 = vadd.xlane.f32.xlu0 %v780
    %v782 = vpop.xlane.xlu0 %781
    %v783 = vrcp.pop %v782
    %v784 = vmul.f32 %v779, %v783
    %785 = vrot.lane.b32.xlu0 %v543, 32
    %v786 = vpop.permute.xlu0 %785
    %v788 = vsel %vm586, %v784, 0
    %v790 = vsel %vm590, %v786, 0
    %792 = vmatpush.msra.mxu0 0.0
    %793 = vmatpush.msra.mxu0 0.0
    %794 = vmatpush.msra.mxu0 0.0
    %795 = vmatpush.msra.mxu0 0.0
    %796 = vmatpush.msra.mxu0 0.0
    %797 = vmatpush.msra.mxu0 0.0
    %798 = vmatpush.msra.mxu0 0.0
    %799 = vmatpush.msra.mxu0 0.0
    %800 = vmatpush.msra.mxu0 0.0
    %801 = vmatpush.msra.mxu0 0.0
    %802 = vmatpush.msra.mxu0 0.0
    %803 = vmatpush.msra.mxu0 0.0
    %804 = vmatpush.msra.mxu0 0.0
    %805 = vmatpush.msra.mxu0 0.0
    %806 = vmatpush.msra.mxu0 0.0
    %807 = vmatpush.msra.mxu0 %v790
    %808 = vmatmul.f32.gmra.mxu0 %v788
    %v809 = vpop.f32.mrf.mxu0
    %v810 = vadd.f32 0.0, %v809
    %811 = vdwg.mxu0
    %813 = vrot.lane.b32.xlu0 %v678, 32
    %v814 = vpop.permute.xlu0 %813
    %817 = vrot.lane.b32.xlu0 %v744, 64
    %v818 = vpop.permute.xlu0 %817
    %821 = vrot.lane.b32.xlu0 %v810, 96
    %v822 = vpop.permute.xlu0 %821
    %v824 = vsel %vm547, %v612, %v814
    %vm825 = vcmask 523264
    %v826 = vsel %vm825, %v824, %v818
    %vm827 = vcmask 785408
    %v828 = vsel %vm827, %v826, %v822
    %vm830 = vcmask 1042432
    %v831 = vrot.slane %v515, 5
    %v832 = vrot.slane %v517, 5
    %v833 = vsel %vm830, %v831, %v832
    %v835 = vrot.slane %v529, 5
    %v836 = vrot.slane %v531, 5
    %v837 = vsel %vm830, %v835, %v836
    %v838 = vsel %vm547, %v833, 0
    %v840 = vsel %vm547, %v837, 0
    %842 = vmatpush.xpose.msra.mxu0 0.0
    %843 = vmatpush.xpose.msra.mxu0 0.0
    %844 = vmatpush.xpose.msra.mxu0 0.0
    %845 = vmatpush.xpose.msra.mxu0 0.0
    %846 = vmatpush.xpose.msra.mxu0 0.0
    %847 = vmatpush.xpose.msra.mxu0 0.0
    %848 = vmatpush.xpose.msra.mxu0 0.0
    %849 = vmatpush.xpose.msra.mxu0 0.0
    %850 = vmatpush.xpose.msra.mxu0 0.0
    %851 = vmatpush.xpose.msra.mxu0 0.0
    %852 = vmatpush.xpose.msra.mxu0 0.0
    %853 = vmatpush.xpose.msra.mxu0 0.0
    %854 = vmatpush.xpose.msra.mxu0 0.0
    %855 = vmatpush.xpose.msra.mxu0 0.0
    %856 = vmatpush.xpose.msra.mxu0 0.0
    %857 = vmatpush.xpose.msra.mxu0 %v840
    %858 = vmatmul.f32.gmra.mxu0 %v838
    %v859 = vpop.f32.mrf.mxu0
    %v860 = vadd.f32 0.0, %v859
    %861 = vdwg.mxu0
    %v862 = vsel %vm574, %v860, -inf
    %863 = vmax.xlane.f32.xlu0 %v862
    %v864 = vpop.xlane.xlu0 %863
    %v865 = vsub.f32 %v860, %v864
    %v866 = vmul.f32 %v865, 1.442695
    %v867 = vpow.pop %v866
    %v868 = vsel %vm574, %v867, 0.0
    %869 = vadd.xlane.f32.xlu0 %v868
    %v870 = vpop.xlane.xlu0 %869
    %v871 = vrcp.pop %v870
    %v872 = vmul.f32 %v867, %v871
    %v874 = vrot.slane %v543, 5
    %v875 = vrot.slane %v545, 5
    %v876 = vsel %vm830, %v874, %v875
    %v878 = vsel %vm586, %v872, 0
    %v880 = vsel %vm590, %v876, 0
    %882 = vmatpush.msra.mxu0 0.0
    %883 = vmatpush.msra.mxu0 0.0
    %884 = vmatpush.msra.mxu0 0.0
    %885 = vmatpush.msra.mxu0 0.0
    %886 = vmatpush.msra.mxu0 0.0
    %887 = vmatpush.msra.mxu0 0.0
    %888 = vmatpush.msra.mxu0 0.0
    %889 = vmatpush.msra.mxu0 0.0
    %890 = vmatpush.msra.mxu0 0.0
    %891 = vmatpush.msra.mxu0 0.0
    %892 = vmatpush.msra.mxu0 0.0
    %893 = vmatpush.msra.mxu0 0.0
    %894 = vmatpush.msra.mxu0 0.0
    %895 = vmatpush.msra.mxu0 0.0
    %896 = vmatpush.msra.mxu0 0.0
    %897 = vmatpush.msra.mxu0 %v880
    %898 = vmatmul.f32.gmra.mxu0 %v878
    %v899 = vpop.f32.mrf.mxu0
    %v900 = vadd.f32 0.0, %v899
    %901 = vdwg.mxu0
    %902 = vrot.lane.b32.xlu0 %v833, 96
    %v903 = vpop.permute.xlu0 %902
    %904 = vrot.lane.b32.xlu0 %v837, 96
    %v905 = vpop.permute.xlu0 %904
    %v906 = vsel %vm547, %v903, 0
    %v908 = vsel %vm547, %v905, 0
    %910 = vmatpush.xpose.msra.mxu0 0.0
    %911 = vmatpush.xpose.msra.mxu0 0.0
    %912 = vmatpush.xpose.msra.mxu0 0.0
    %913 = vmatpush.xpose.msra.mxu0 0.0
    %914 = vmatpush.xpose.msra.mxu0 0.0
    %915 = vmatpush.xpose.msra.mxu0 0.0
    %916 = vmatpush.xpose.msra.mxu0 0.0
    %917 = vmatpush.xpose.msra.mxu0 0.0
    %918 = vmatpush.xpose.msra.mxu0 0.0
    %919 = vmatpush.xpose.msra.mxu0 0.0
    %920 = vmatpush.xpose.msra.mxu0 0.0
    %921 = vmatpush.xpose.msra.mxu0 0.0
    %922 = vmatpush.xpose.msra.mxu0 0.0
    %923 = vmatpush.xpose.msra.mxu0 0.0
    %924 = vmatpush.xpose.msra.mxu0 0.0
    %925 = vmatpush.xpose.msra.mxu0 %v908
    %926 = vmatmul.f32.gmra.mxu0 %v906
    %v927 = vpop.f32.mrf.mxu0
    %v928 = vadd.f32 0.0, %v927
    %929 = vdwg.mxu0
    %v930 = vsel %vm574, %v928, -inf
    %931 = vmax.xlane.f32.xlu0 %v930
    %v932 = vpop.xlane.xlu0 %931
    %v933 = vsub.f32 %v928, %v932
    %v934 = vmul.f32 %v933, 1.442695
    %v935 = vpow.pop %v934
    %v936 = vsel %vm574, %v935, 0.0
    %937 = vadd.xlane.f32.xlu0 %v936
    %v938 = vpop.xlane.xlu0 %937
    %v939 = vrcp.pop %v938
    %v940 = vmul.f32 %v935, %v939
    %941 = vrot.lane.b32.xlu0 %v876, 96
    %v942 = vpop.permute.xlu0 %941
    %v944 = vsel %vm586, %v940, 0
    %v946 = vsel %vm590, %v942, 0
    %948 = vmatpush.msra.mxu0 0.0
    %949 = vmatpush.msra.mxu0 0.0
    %950 = vmatpush.msra.mxu0 0.0
    %951 = vmatpush.msra.mxu0 0.0
    %952 = vmatpush.msra.mxu0 0.0
    %953 = vmatpush.msra.mxu0 0.0
    %954 = vmatpush.msra.mxu0 0.0
    %955 = vmatpush.msra.mxu0 0.0
    %956 = vmatpush.msra.mxu0 0.0
    %957 = vmatpush.msra.mxu0 0.0
    %958 = vmatpush.msra.mxu0 0.0
    %959 = vmatpush.msra.mxu0 0.0
    %960 = vmatpush.msra.mxu0 0.0
    %961 = vmatpush.msra.mxu0 0.0
    %962 = vmatpush.msra.mxu0 0.0
    %963 = vmatpush.msra.mxu0 %v946
    %964 = vmatmul.f32.gmra.mxu0 %v944
    %v965 = vpop.f32.mrf.mxu0
    %v966 = vadd.f32 0.0, %v965
    %967 = vdwg.mxu0
    %968 = vrot.lane.b32.xlu0 %v833, 64
    %v969 = vpop.permute.xlu0 %968
    %970 = vrot.lane.b32.xlu0 %v837, 64
    %v971 = vpop.permute.xlu0 %970
    %v972 = vsel %vm547, %v969, 0
    %v974 = vsel %vm547, %v971, 0
    %976 = vmatpush.xpose.msra.mxu0 0.0
    %977 = vmatpush.xpose.msra.mxu0 0.0
    %978 = vmatpush.xpose.msra.mxu0 0.0
    %979 = vmatpush.xpose.msra.mxu0 0.0
    %980 = vmatpush.xpose.msra.mxu0 0.0
    %981 = vmatpush.xpose.msra.mxu0 0.0
    %982 = vmatpush.xpose.msra.mxu0 0.0
    %983 = vmatpush.xpose.msra.mxu0 0.0
    %984 = vmatpush.xpose.msra.mxu0 0.0
    %985 = vmatpush.xpose.msra.mxu0 0.0
    %986 = vmatpush.xpose.msra.mxu0 0.0
    %987 = vmatpush.xpose.msra.mxu0 0.0
    %988 = vmatpush.xpose.msra.mxu0 0.0
    %989 = vmatpush.xpose.msra.mxu0 0.0
    %990 = vmatpush.xpose.msra.mxu0 0.0
    %991 = vmatpush.xpose.msra.mxu0 %v974
    %992 = vmatmul.f32.gmra.mxu0 %v972
    %v993 = vpop.f32.mrf.mxu0
    %v994 = vadd.f32 0.0, %v993
    %995 = vdwg.mxu0
    %v996 = vsel %vm574, %v994, -inf
    %997 = vmax.xlane.f32.xlu0 %v996
    %v998 = vpop.xlane.xlu0 %997
    %v999 = vsub.f32 %v994, %v998
    %v1000 = vmul.f32 %v999, 1.442695
    %v1001 = vpow.pop %v1000
    %v1002 = vsel %vm574, %v1001, 0.0
    %1003 = vadd.xlane.f32.xlu0 %v1002
    %v1004 = vpop.xlane.xlu0 %1003
    %v1005 = vrcp.pop %v1004
    %v1006 = vmul.f32 %v1001, %v1005
    %1007 = vrot.lane.b32.xlu0 %v876, 64
    %v1008 = vpop.permute.xlu0 %1007
    %v1010 = vsel %vm586, %v1006, 0
    %v1012 = vsel %vm590, %v1008, 0
    %1014 = vmatpush.msra.mxu0 0.0
    %1015 = vmatpush.msra.mxu0 0.0
    %1016 = vmatpush.msra.mxu0 0.0
    %1017 = vmatpush.msra.mxu0 0.0
    %1018 = vmatpush.msra.mxu0 0.0
    %1019 = vmatpush.msra.mxu0 0.0
    %1020 = vmatpush.msra.mxu0 0.0
    %1021 = vmatpush.msra.mxu0 0.0
    %1022 = vmatpush.msra.mxu0 0.0
    %1023 = vmatpush.msra.mxu0 0.0
    %1024 = vmatpush.msra.mxu0 0.0
    %1025 = vmatpush.msra.mxu0 0.0
    %1026 = vmatpush.msra.mxu0 0.0
    %1027 = vmatpush.msra.mxu0 0.0
    %1028 = vmatpush.msra.mxu0 0.0
    %1029 = vmatpush.msra.mxu0 %v1012
    %1030 = vmatmul.f32.gmra.mxu0 %v1010
    %v1031 = vpop.f32.mrf.mxu0
    %v1032 = vadd.f32 0.0, %v1031
    %1033 = vdwg.mxu0
    %1034 = vrot.lane.b32.xlu0 %v833, 32
    %v1035 = vpop.permute.xlu0 %1034
    %1036 = vrot.lane.b32.xlu0 %v837, 32
    %v1037 = vpop.permute.xlu0 %1036
    %v1038 = vsel %vm547, %v1035, 0
    %v1040 = vsel %vm547, %v1037, 0
    %1042 = vmatpush.xpose.msra.mxu0 0.0
    %1043 = vmatpush.xpose.msra.mxu0 0.0
    %1044 = vmatpush.xpose.msra.mxu0 0.0
    %1045 = vmatpush.xpose.msra.mxu0 0.0
    %1046 = vmatpush.xpose.msra.mxu0 0.0
    %1047 = vmatpush.xpose.msra.mxu0 0.0
    %1048 = vmatpush.xpose.msra.mxu0 0.0
    %1049 = vmatpush.xpose.msra.mxu0 0.0
    %1050 = vmatpush.xpose.msra.mxu0 0.0
    %1051 = vmatpush.xpose.msra.mxu0 0.0
    %1052 = vmatpush.xpose.msra.mxu0 0.0
    %1053 = vmatpush.xpose.msra.mxu0 0.0
    %1054 = vmatpush.xpose.msra.mxu0 0.0
    %1055 = vmatpush.xpose.msra.mxu0 0.0
    %1056 = vmatpush.xpose.msra.mxu0 0.0
    %1057 = vmatpush.xpose.msra.mxu0 %v1040
    %1058 = vmatmul.f32.gmra.mxu0 %v1038
    %v1059 = vpop.f32.mrf.mxu0
    %v1060 = vadd.f32 0.0, %v1059
    %1061 = vdwg.mxu0
    %v1062 = vsel %vm574, %v1060, -inf
    %1063 = vmax.xlane.f32.xlu0 %v1062
    %v1064 = vpop.xlane.xlu0 %1063
    %v1065 = vsub.f32 %v1060, %v1064
    %v1066 = vmul.f32 %v1065, 1.442695
    %v1067 = vpow.pop %v1066
    %v1068 = vsel %vm574, %v1067, 0.0
    %1069 = vadd.xlane.f32.xlu0 %v1068
    %v1070 = vpop.xlane.xlu0 %1069
    %v1071 = vrcp.pop %v1070
    %v1072 = vmul.f32 %v1067, %v1071
    %1073 = vrot.lane.b32.xlu0 %v876, 32
    %v1074 = vpop.permute.xlu0 %1073
    %v1076 = vsel %vm586, %v1072, 0
    %v1078 = vsel %vm590, %v1074, 0
    %1080 = vmatpush.msra.mxu0 0.0
    %1081 = vmatpush.msra.mxu0 0.0
    %1082 = vmatpush.msra.mxu0 0.0
    %1083 = vmatpush.msra.mxu0 0.0
    %1084 = vmatpush.msra.mxu0 0.0
    %1085 = vmatpush.msra.mxu0 0.0
    %1086 = vmatpush.msra.mxu0 0.0
    %1087 = vmatpush.msra.mxu0 0.0
    %1088 = vmatpush.msra.mxu0 0.0
    %1089 = vmatpush.msra.mxu0 0.0
    %1090 = vmatpush.msra.mxu0 0.0
    %1091 = vmatpush.msra.mxu0 0.0
    %1092 = vmatpush.msra.mxu0 0.0
    %1093 = vmatpush.msra.mxu0 0.0
    %1094 = vmatpush.msra.mxu0 0.0
    %1095 = vmatpush.msra.mxu0 %v1078
    %1096 = vmatmul.f32.gmra.mxu0 %v1076
    %v1097 = vpop.f32.mrf.mxu0
    %v1098 = vadd.f32 0.0, %v1097
    %1099 = vdwg.mxu0
    %1101 = vrot.lane.b32.xlu0 %v966, 32
    %v1102 = vpop.permute.xlu0 %1101
    %1105 = vrot.lane.b32.xlu0 %v1032, 64
    %v1106 = vpop.permute.xlu0 %1105
    %1109 = vrot.lane.b32.xlu0 %v1098, 96
    %v1110 = vpop.permute.xlu0 %1109
    %v1112 = vsel %vm547, %v900, %v1102
    %v1113 = vsel %vm825, %v1112, %v1106
    %v1114 = vsel %vm827, %v1113, %v1110
    %v1116 = vrot.slane %v1114, 3
    %v1118 = vsel %vm590, %v828, %v1116
    %v1119 = vpack.c.bf16 %v1116, %v1118
    %v1120 = vld [vmem:[#allocation6] sm:$0xf]
    %v1121 = vld [vmem:[#allocation6 + $0x4] sm:$0xf]
    %v1122 = vld [vmem:[#allocation6 + $0x8] sm:$0xf]
    %v1123 = vld [vmem:[#allocation6 + $0xc] sm:$0xf]
    %v1124 = vld [vmem:[#allocation6 + $0x10] sm:$0xf]
    %v1125 = vld [vmem:[#allocation6 + $0x14] sm:$0xf]
    %v1126 = vld [vmem:[#allocation6 + $0x18] sm:$0xf]
    %v1127 = vld [vmem:[#allocation6 + $0x1c] sm:$0xf]
    %v1128 = vld [vmem:[#allocation6 + $0x20] sm:$0xf]
    %v1129 = vld [vmem:[#allocation6 + $0x24] sm:$0xf]
    %v1130 = vld [vmem:[#allocation6 + $0x28] sm:$0xf]
    %v1131 = vld [vmem:[#allocation6 + $0x2c] sm:$0xf]
    %v1132 = vld [vmem:[#allocation6 + $0x30] sm:$0xf]
    %v1133 = vld [vmem:[#allocation6 + $0x34] sm:$0xf]
    %v1134 = vld [vmem:[#allocation6 + $0x38] sm:$0xf]
    %v1135 = vld [vmem:[#allocation6 + $0x3c] sm:$0xf]
    %v1152 = vunpack.c.l.b16 %v1120
    %v1153 = vunpack.c.l.b16 %v1121
    %v1154 = vunpack.c.l.b16 %v1122
    %v1155 = vunpack.c.l.b16 %v1123
    %v1156 = vunpack.c.l.b16 %v1124
    %v1157 = vunpack.c.l.b16 %v1125
    %v1158 = vunpack.c.l.b16 %v1126
    %v1159 = vunpack.c.l.b16 %v1127
    %v1160 = vunpack.c.l.b16 %v1128
    %v1161 = vunpack.c.l.b16 %v1129
    %v1162 = vunpack.c.l.b16 %v1130
    %v1163 = vunpack.c.l.b16 %v1131
    %v1164 = vunpack.c.l.b16 %v1132
    %v1165 = vunpack.c.l.b16 %v1133
    %v1166 = vunpack.c.l.b16 %v1134
    %v1167 = vunpack.c.l.b16 %v1135
    %v1168 = vpack.c.b16 %v1153, %v1152
    %v1169 = vpack.c.b16 %v1155, %v1154
    %v1170 = vpack.c.b16 %v1157, %v1156
    %v1171 = vpack.c.b16 %v1159, %v1158
    %v1172 = vpack.c.b16 %v1161, %v1160
    %v1173 = vpack.c.b16 %v1163, %v1162
    %v1174 = vpack.c.b16 %v1165, %v1164
    %v1175 = vpack.c.b16 %v1167, %v1166
    %1184 = vmatpush.bf16.msra.mxu0 %v1175
    %1185 = vmatpush.bf16.msra.mxu0 %v1174
    %1186 = vmatpush.bf16.msra.mxu0 %v1173
    %1187 = vmatpush.bf16.msra.mxu0 %v1172
    %1188 = vmatpush.bf16.msra.mxu0 %v1171
    %1189 = vmatpush.bf16.msra.mxu0 %v1170
    %1190 = vmatpush.bf16.msra.mxu0 %v1169
    %1191 = vmatpush.bf16.msra.mxu0 %v1168
    %1192 = vmatmul.bf16.gmra.mxu0 %v1119
    %v1193 = vpop.f32.mrf.mxu0
    %v1194 = vadd.f32 0.0, %v1193
    %v1195 = vpop.f32.mrf.mxu0
    %v1196 = vadd.f32 0.0, %v1195
    %1197 = vdwg.mxu0
    %v1198 = vadd.f32 %v277, %v1194
    %v1199 = vadd.f32 %v278, %v1196
    %v1200 = vld [vmem:[#allocation4 + $0x3] ss:$0 sm:$0xff]
    %v1201 = vadd.f32 %v1198, %v1200
    %v1202 = vadd.f32 %v1199, %v1200
    %v1203 = vld [vmem:[#allocation4 + $0x4] ss:$0 sm:$0xff]
    %v1204 = vld [vmem:[#allocation4 + $0x5] ss:$0 sm:$0xff]
    %1205 = vadd.xlane.f32.xlu0 %v1201
    %v1206 = vpop.xlane.xlu0 %1205
    %v1207 = vsel %vm283, %v1202, 0.0
    %1208 = vadd.xlane.f32.xlu0 %v1207
    %v1209 = vpop.xlane.xlu0 %1208
    %v1210 = vmul.f32 %v1206, %v293
    %v1211 = vmul.f32 %v1209, %v293
    %v1212 = vsub.f32 %v1201, %v1210
    %v1213 = vsub.f32 %v1202, %v1211
    %v1214 = vmul.f32 %v1212, %v1212
    %v1215 = vmul.f32 %v1213, %v1213
    %1216 = vadd.xlane.f32.xlu0 %v1214
    %v1217 = vpop.xlane.xlu0 %1216
    %v1218 = vsel %vm283, %v1215, 0.0
    %1219 = vadd.xlane.f32.xlu0 %v1218
    %v1220 = vpop.xlane.xlu0 %1219
    %v1221 = vmul.f32 %v1217, %v293
    %v1222 = vmul.f32 %v1220, %v293
    %v1223 = vadd.f32 %v1221, 1e-06
    %v1224 = vadd.f32 %v1222, 1e-06
    %v1225 = vrsqrt.pop %v1223
    %v1226 = vmul.f32 %v1225, %v1223
    %v1227 = vmul.f32 %v1226, %v1225
    %v1228 = vmul.f32 0.5, %v1227
    %v1229 = vsub.f32 1.5, %v1228
    %v1230 = vmul.f32 %v1225, %v1229
    %vm1231 = vweird.f32 %v1223
    %vm1232 = vweird.f32 %v1225
    %vm1233 = vmor %vm1231, %vm1232
    %v1234 = vsel %vm1233, %v1225, %v1230
    %v1235 = vrsqrt.pop %v1224
    %v1236 = vmul.f32 %v1235, %v1224
    %v1237 = vmul.f32 %v1236, %v1235
    %v1238 = vmul.f32 0.5, %v1237
    %v1239 = vsub.f32 1.5, %v1238
    %v1240 = vmul.f32 %v1235, %v1239
    %vm1241 = vweird.f32 %v1224
    %vm1242 = vweird.f32 %v1235
    %vm1243 = vmor %vm1241, %vm1242
    %v1244 = vsel %vm1243, %v1235, %v1240
    %v1245 = vmul.f32 %v1212, %v1234
    %v1246 = vmul.f32 %v1213, %v1244
    %v1247 = vmul.f32 %v1245, %v1203
    %v1248 = vmul.f32 %v1246, %v1203
    %v1249 = vadd.f32 %v1247, %v1204
    %v1250 = vadd.f32 %v1248, %v1204
    %v1251 = vpack.c.bf16 %v1250, %v1249
    %v1252 = vld [vmem:[#allocation7] sm:$0xff]
    %v1253 = vld [vmem:[#allocation7 + $0x8] sm:$0xff]
    %v1254 = vld [vmem:[#allocation7 + $0x10] sm:$0xff]
    %v1255 = vld [vmem:[#allocation7 + $0x18] sm:$0xff]
    %v1256 = vld [vmem:[#allocation7 + $0x20] sm:$0xff]
    %v1257 = vld [vmem:[#allocation7 + $0x28] sm:$0xff]
    %v1258 = vld [vmem:[#allocation7 + $0x30] sm:$0xff]
    %v1259 = vld [vmem:[#allocation7 + $0x38] sm:$0xff]
    %v1260 = vld [vmem:[#allocation7 + $0x40] sm:$0xff]
    %v1261 = vld [vmem:[#allocation7 + $0x48] sm:$0xff]
    %v1262 = vld [vmem:[#allocation7 + $0x50] sm:$0xff]
    %v1263 = vld [vmem:[#allocation7 + $0x58] sm:$0xff]
    %v1264 = vld [vmem:[#allocation7 + $0x60] sm:$0xff]
    %v1265 = vld [vmem:[#allocation7 + $0x68] sm:$0xff]
    %v1266 = vld [vmem:[#allocation7 + $0x70] sm:$0xff]
    %v1267 = vld [vmem:[#allocation7 + $0x78] sm:$0xff]
    %v1268 = vld [vmem:[#allocation7 + $0x80] sm:$0xff]
    %v1269 = vld [vmem:[#allocation7 + $0x88] sm:$0xff]
    %v1270 = vld [vmem:[#allocation7 + $0x90] sm:$0xff]
    %v1271 = vld [vmem:[#allocation7 + $0x98] sm:$0xff]
    %v1272 = vld [vmem:[#allocation7 + $0xa0] sm:$0xff]
    %v1273 = vld [vmem:[#allocation7 + $0xa8] sm:$0xff]
    %v1274 = vld [vmem:[#allocation7 + $0xb0] sm:$0xff]
    %v1275 = vld [vmem:[#allocation7 + $0xb8] sm:$0xff]
    %v1276 = vld [vmem:[#allocation7 + $0xc0] sm:$0xff]
    %v1277 = vld [vmem:[#allocation7 + $0xc8] sm:$0xff]
    %v1278 = vld [vmem:[#allocation7 + $0xd0] sm:$0xff]
    %v1279 = vld [vmem:[#allocation7 + $0xd8] sm:$0xff]
    %v1280 = vld [vmem:[#allocation7 + $0xe0] sm:$0xff]
    %v1281 = vld [vmem:[#allocation7 + $0xe8] sm:$0xff]
    %v1282 = vld [vmem:[#allocation7 + $0xf0] sm:$0xff]
    %v1283 = vld [vmem:[#allocation7 + $0xf8] sm:$0xff]
    %s1284 = scalar_lea.vmem [#allocation4], 6
    %v1285 = vld [vmem:[%s1284] ss:$8 sm:$0xf]
    %v1287 = vperm.slane %v1285, 0
    %v1288 = vperm.slane %v1285, 1
    %v1289 = vperm.slane %v1285, 2
    %v1290 = vperm.slane %v1285, 3
    %v1327 = vunpack.c.l.b16 %v1252
    %v1328 = vunpack.c.h.b16 %v1252
    %v1329 = vunpack.c.l.b16 %v1253
    %v1330 = vunpack.c.h.b16 %v1253
    %v1331 = vunpack.c.l.b16 %v1254
    %v1332 = vunpack.c.h.b16 %v1254
    %v1333 = vunpack.c.l.b16 %v1255
    %v1334 = vunpack.c.h.b16 %v1255
    %v1335 = vunpack.c.l.b16 %v1256
    %v1336 = vunpack.c.h.b16 %v1256
    %v1337 = vunpack.c.l.b16 %v1257
    %v1338 = vunpack.c.h.b16 %v1257
    %v1339 = vunpack.c.l.b16 %v1258
    %v1340 = vunpack.c.h.b16 %v1258
    %v1341 = vunpack.c.l.b16 %v1259
    %v1342 = vunpack.c.h.b16 %v1259
    %v1343 = vunpack.c.l.b16 %v1260
    %v1344 = vunpack.c.h.b16 %v1260
    %v1345 = vunpack.c.l.b16 %v1261
    %v1346 = vunpack.c.h.b16 %v1261
    %v1347 = vunpack.c.l.b16 %v1262
    %v1348 = vunpack.c.h.b16 %v1262
    %v1349 = vunpack.c.l.b16 %v1263
    %v1350 = vunpack.c.h.b16 %v1263
    %v1351 = vunpack.c.l.b16 %v1264
    %v1352 = vunpack.c.h.b16 %v1264
    %v1353 = vunpack.c.l.b16 %v1265
    %v1354 = vunpack.c.h.b16 %v1265
    %v1355 = vunpack.c.l.b16 %v1266
    %v1356 = vunpack.c.h.b16 %v1266
    %v1357 = vunpack.c.l.b16 %v1267
    %v1358 = vunpack.c.h.b16 %v1267
    %v1359 = vunpack.c.l.b16 %v1268
    %v1360 = vunpack.c.h.b16 %v1268
    %v1361 = vunpack.c.l.b16 %v1269
    %v1362 = vunpack.c.h.b16 %v1269
    %v1363 = vunpack.c.l.b16 %v1270
    %v1364 = vunpack.c.h.b16 %v1270
    %v1365 = vunpack.c.l.b16 %v1271
    %v1366 = vunpack.c.h.b16 %v1271
    %v1367 = vunpack.c.l.b16 %v1272
    %v1368 = vunpack.c.h.b16 %v1272
    %v1369 = vunpack.c.l.b16 %v1273
    %v1370 = vunpack.c.h.b16 %v1273
    %v1371 = vunpack.c.l.b16 %v1274
    %v1372 = vunpack.c.h.b16 %v1274
    %v1373 = vunpack.c.l.b16 %v1275
    %v1374 = vunpack.c.h.b16 %v1275
    %v1375 = vunpack.c.l.b16 %v1276
    %v1376 = vunpack.c.h.b16 %v1276
    %v1377 = vunpack.c.l.b16 %v1277
    %v1378 = vunpack.c.h.b16 %v1277
    %v1379 = vunpack.c.l.b16 %v1278
    %v1380 = vunpack.c.h.b16 %v1278
    %v1381 = vunpack.c.l.b16 %v1279
    %v1382 = vunpack.c.h.b16 %v1279
    %v1383 = vunpack.c.l.b16 %v1280
    %v1384 = vunpack.c.h.b16 %v1280
    %v1385 = vunpack.c.l.b16 %v1281
    %v1386 = vunpack.c.h.b16 %v1281
    %v1387 = vunpack.c.l.b16 %v1282
    %v1388 = vunpack.c.h.b16 %v1282
    %v1389 = vunpack.c.l.b16 %v1283
    %v1390 = vunpack.c.h.b16 %v1283
    %v1391 = vpack.c.b16 %v1331, %v1327
    %v1392 = vpack.c.b16 %v1332, %v1328
    %v1393 = vpack.c.b16 %v1333, %v1329
    %v1394 = vpack.c.b16 %v1334, %v1330
    %v1395 = vpack.c.b16 %v1339, %v1335
    %v1396 = vpack.c.b16 %v1340, %v1336
    %v1397 = vpack.c.b16 %v1341, %v1337
    %v1398 = vpack.c.b16 %v1342, %v1338
    %v1399 = vpack.c.b16 %v1347, %v1343
    %v1400 = vpack.c.b16 %v1348, %v1344
    %v1401 = vpack.c.b16 %v1349, %v1345
    %v1402 = vpack.c.b16 %v1350, %v1346
    %v1403 = vpack.c.b16 %v1355, %v1351
    %v1404 = vpack.c.b16 %v1356, %v1352
    %v1405 = vpack.c.b16 %v1357, %v1353
    %v1406 = vpack.c.b16 %v1358, %v1354
    %v1407 = vpack.c.b16 %v1363, %v1359
    %v1408 = vpack.c.b16 %v1364, %v1360
    %v1409 = vpack.c.b16 %v1365, %v1361
    %v1410 = vpack.c.b16 %v1366, %v1362
    %v1411 = vpack.c.b16 %v1371, %v1367
    %v1412 = vpack.c.b16 %v1372, %v1368
    %v1413 = vpack.c.b16 %v1373, %v1369
    %v1414 = vpack.c.b16 %v1374, %v1370
    %v1415 = vpack.c.b16 %v1379, %v1375
    %v1416 = vpack.c.b16 %v1380, %v1376
    %v1417 = vpack.c.b16 %v1381, %v1377
    %v1418 = vpack.c.b16 %v1382, %v1378
    %v1419 = vpack.c.b16 %v1387, %v1383
    %v1420 = vpack.c.b16 %v1388, %v1384
    %v1421 = vpack.c.b16 %v1389, %v1385
    %v1422 = vpack.c.b16 %v1390, %v1386
    %1455 = vmatpush.bf16.msra.mxu0 %v1419
    %1456 = vmatpush.bf16.msra.mxu0 %v1415
    %1457 = vmatpush.bf16.msra.mxu0 %v1411
    %1458 = vmatpush.bf16.msra.mxu0 %v1407
    %1459 = vmatpush.bf16.msra.mxu0 %v1403
    %1460 = vmatpush.bf16.msra.mxu0 %v1399
    %1461 = vmatpush.bf16.msra.mxu0 %v1395
    %1462 = vmatpush.bf16.msra.mxu0 %v1391
    %1463 = vmatmul.bf16.gmra.mxu0 %v1251
    %v1464 = vpop.f32.mrf.mxu0
    %v1465 = vadd.f32 %v1287, %v1464
    %v1466 = vpop.f32.mrf.mxu0
    %v1467 = vadd.f32 %v1287, %v1466
    %1468 = vdwg.mxu0
    %1469 = vmatpush.bf16.msra.mxu0 %v1420
    %1470 = vmatpush.bf16.msra.mxu0 %v1416
    %1471 = vmatpush.bf16.msra.mxu0 %v1412
    %1472 = vmatpush.bf16.msra.mxu0 %v1408
    %1473 = vmatpush.bf16.msra.mxu0 %v1404
    %1474 = vmatpush.bf16.msra.mxu0 %v1400
    %1475 = vmatpush.bf16.msra.mxu0 %v1396
    %1476 = vmatpush.bf16.msra.mxu0 %v1392
    %1477 = vmatmul.bf16.gmra.mxu0 %v1251
    %v1478 = vpop.f32.mrf.mxu0
    %v1479 = vadd.f32 %v1288, %v1478
    %v1480 = vpop.f32.mrf.mxu0
    %v1481 = vadd.f32 %v1288, %v1480
    %1482 = vdwg.mxu0
    %1483 = vmatpush.bf16.msra.mxu0 %v1421
    %1484 = vmatpush.bf16.msra.mxu0 %v1417
    %1485 = vmatpush.bf16.msra.mxu0 %v1413
    %1486 = vmatpush.bf16.msra.mxu0 %v1409
    %1487 = vmatpush.bf16.msra.mxu0 %v1405
    %1488 = vmatpush.bf16.msra.mxu0 %v1401
    %1489 = vmatpush.bf16.msra.mxu0 %v1397
    %1490 = vmatpush.bf16.msra.mxu0 %v1393
    %1491 = vmatmul.bf16.gmra.mxu0 %v1251
    %v1492 = vpop.f32.mrf.mxu0
    %v1493 = vadd.f32 %v1289, %v1492
    %v1494 = vpop.f32.mrf.mxu0
    %v1495 = vadd.f32 %v1289, %v1494
    %1496 = vdwg.mxu0
    %1497 = vmatpush.bf16.msra.mxu0 %v1422
    %1498 = vmatpush.bf16.msra.mxu0 %v1418
    %1499 = vmatpush.bf16.msra.mxu0 %v1414
    %1500 = vmatpush.bf16.msra.mxu0 %v1410
    %1501 = vmatpush.bf16.msra.mxu0 %v1406
    %1502 = vmatpush.bf16.msra.mxu0 %v1402
    %1503 = vmatpush.bf16.msra.mxu0 %v1398
    %1504 = vmatpush.bf16.msra.mxu0 %v1394
    %1505 = vmatmul.bf16.gmra.mxu0 %v1251
    %v1506 = vpop.f32.mrf.mxu0
    %v1507 = vadd.f32 %v1290, %v1506
    %v1508 = vpop.f32.mrf.mxu0
    %v1509 = vadd.f32 %v1290, %v1508
    %1510 = vdwg.mxu0
    %v1511 = vmul.f32 %v1465, %v1465
    %v1512 = vmul.f32 %v1479, %v1479
    %v1513 = vmul.f32 %v1493, %v1493
    %v1514 = vmul.f32 %v1507, %v1507
    %v1515 = vmul.f32 %v1467, %v1467
    %v1516 = vmul.f32 %v1481, %v1481
    %v1517 = vmul.f32 %v1495, %v1495
    %v1518 = vmul.f32 %v1509, %v1509
    %v1519 = vmul.f32 %v1465, %v1511
    %v1520 = vmul.f32 %v1479, %v1512
    %v1521 = vmul.f32 %v1493, %v1513
    %v1522 = vmul.f32 %v1507, %v1514
    %v1523 = vmul.f32 %v1467, %v1515
    %v1524 = vmul.f32 %v1481, %v1516
    %v1525 = vmul.f32 %v1495, %v1517
    %v1526 = vmul.f32 %v1509, %v1518
    %v1527 = vmul.f32 %v1519, 0.044715
    %v1528 = vmul.f32 %v1520, 0.044715
    %v1529 = vmul.f32 %v1521, 0.044715
    %v1530 = vmul.f32 %v1522, 0.044715
    %v1531 = vmul.f32 %v1523, 0.044715
    %v1532 = vmul.f32 %v1524, 0.044715
    %v1533 = vmul.f32 %v1525, 0.044715
    %v1534 = vmul.f32 %v1526, 0.044715
    %v1535 = vadd.f32 %v1465, %v1527
    %v1536 = vadd.f32 %v1479, %v1528
    %v1537 = vadd.f32 %v1493, %v1529
    %v1538 = vadd.f32 %v1507, %v1530
    %v1539 = vadd.f32 %v1467, %v1531
    %v1540 = vadd.f32 %v1481, %v1532
    %v1541 = vadd.f32 %v1495, %v1533
    %v1542 = vadd.f32 %v1509, %v1534
    %v1543 = vmul.f32 %v1535, 0.7978846
    %v1544 = vmul.f32 %v1536, 0.7978846
    %v1545 = vmul.f32 %v1537, 0.7978846
    %v1546 = vmul.f32 %v1538, 0.7978846
    %v1547 = vmul.f32 %v1539, 0.7978846
    %v1548 = vmul.f32 %v1540, 0.7978846
    %v1549 = vmul.f32 %v1541, 0.7978846
    %v1550 = vmul.f32 %v1542, 0.7978846
    %v1551 = vtanh.pop %v1543
    %v1552 = vtanh.pop %v1544
    %v1553 = vtanh.pop %v1545
    %v1554 = vtanh.pop %v1546
    %v1555 = vtanh.pop %v1547
    %v1556 = vtanh.pop %v1548
    %v1557 = vtanh.pop %v1549
    %v1558 = vtanh.pop %v1550
    %v1559 = vadd.f32 %v1551, 1.0
    %v1560 = vadd.f32 %v1552, 1.0
    %v1561 = vadd.f32 %v1553, 1.0
    %v1562 = vadd.f32 %v1554, 1.0
    %v1563 = vadd.f32 %v1555, 1.0
    %v1564 = vadd.f32 %v1556, 1.0
    %v1565 = vadd.f32 %v1557, 1.0
    %v1566 = vadd.f32 %v1558, 1.0
    %v1567 = vmul.f32 %v1559, 0.5
    %v1568 = vmul.f32 %v1560, 0.5
    %v1569 = vmul.f32 %v1561, 0.5
    %v1570 = vmul.f32 %v1562, 0.5
    %v1571 = vmul.f32 %v1563, 0.5
    %v1572 = vmul.f32 %v1564, 0.5
    %v1573 = vmul.f32 %v1565, 0.5
    %v1574 = vmul.f32 %v1566, 0.5
    %v1575 = vmul.f32 %v1465, %v1567
    %v1576 = vmul.f32 %v1479, %v1568
    %v1577 = vmul.f32 %v1493, %v1569
    %v1578 = vmul.f32 %v1507, %v1570
    %v1579 = vmul.f32 %v1467, %v1571
    %v1580 = vmul.f32 %v1481, %v1572
    %v1581 = vmul.f32 %v1495, %v1573
    %v1582 = vmul.f32 %v1509, %v1574
    %v1583 = vpack.c.bf16 %v1579, %v1575
    %v1584 = vpack.c.bf16 %v1580, %v1576
    %v1585 = vpack.c.bf16 %v1581, %v1577
    %v1586 = vpack.c.bf16 %v1582, %v1578
    %v1587 = vld [vmem:[#allocation9] sm:$0xf]
    %v1588 = vld [vmem:[#allocation9 + $0x4] sm:$0xf]
    %v1589 = vld [vmem:[#allocation9 + $0x8] sm:$0xf]
    %v1590 = vld [vmem:[#allocation9 + $0xc] sm:$0xf]
    %v1591 = vld [vmem:[#allocation9 + $0x10] sm:$0xf]
    %v1592 = vld [vmem:[#allocation9 + $0x14] sm:$0xf]
    %v1593 = vld [vmem:[#allocation9 + $0x18] sm:$0xf]
    %v1594 = vld [vmem:[#allocation9 + $0x1c] sm:$0xf]
    %v1595 = vld [vmem:[#allocation9 + $0x20] sm:$0xf]
    %v1596 = vld [vmem:[#allocation9 + $0x24] sm:$0xf]
    %v1597 = vld [vmem:[#allocation9 + $0x28] sm:$0xf]
    %v1598 = vld [vmem:[#allocation9 + $0x2c] sm:$0xf]
    %v1599 = vld [vmem:[#allocation9 + $0x30] sm:$0xf]
    %v1600 = vld [vmem:[#allocation9 + $0x34] sm:$0xf]
    %v1601 = vld [vmem:[#allocation9 + $0x38] sm:$0xf]
    %v1602 = vld [vmem:[#allocation9 + $0x3c] sm:$0xf]
    %v1603 = vld [vmem:[#allocation9 + $0x40] sm:$0xf]
    %v1604 = vld [vmem:[#allocation9 + $0x44] sm:$0xf]
    %v1605 = vld [vmem:[#allocation9 + $0x48] sm:$0xf]
    %v1606 = vld [vmem:[#allocation9 + $0x4c] sm:$0xf]
    %v1607 = vld [vmem:[#allocation9 + $0x50] sm:$0xf]
    %v1608 = vld [vmem:[#allocation9 + $0x54] sm:$0xf]
    %v1609 = vld [vmem:[#allocation9 + $0x58] sm:$0xf]
    %v1610 = vld [vmem:[#allocation9 + $0x5c] sm:$0xf]
    %v1611 = vld [vmem:[#allocation9 + $0x60] sm:$0xf]
    %v1612 = vld [vmem:[#allocation9 + $0x64] sm:$0xf]
    %v1613 = vld [vmem:[#allocation9 + $0x68] sm:$0xf]
    %v1614 = vld [vmem:[#allocation9 + $0x6c] sm:$0xf]
    %v1615 = vld [vmem:[#allocation9 + $0x70] sm:$0xf]
    %v1616 = vld [vmem:[#allocation9 + $0x74] sm:$0xf]
    %v1617 = vld [vmem:[#allocation9 + $0x78] sm:$0xf]
    %v1618 = vld [vmem:[#allocation9 + $0x7c] sm:$0xf]
    %v1619 = vld [vmem:[#allocation9 + $0x80] sm:$0xf]
    %v1620 = vld [vmem:[#allocation9 + $0x84] sm:$0xf]
    %v1621 = vld [vmem:[#allocation9 + $0x88] sm:$0xf]
    %v1622 = vld [vmem:[#allocation9 + $0x8c] sm:$0xf]
    %v1623 = vld [vmem:[#allocation9 + $0x90] sm:$0xf]
    %v1624 = vld [vmem:[#allocation9 + $0x94] sm:$0xf]
    %v1625 = vld [vmem:[#allocation9 + $0x98] sm:$0xf]
    %v1626 = vld [vmem:[#allocation9 + $0x9c] sm:$0xf]
    %v1627 = vld [vmem:[#allocation9 + $0xa0] sm:$0xf]
    %v1628 = vld [vmem:[#allocation9 + $0xa4] sm:$0xf]
    %v1629 = vld [vmem:[#allocation9 + $0xa8] sm:$0xf]
    %v1630 = vld [vmem:[#allocation9 + $0xac] sm:$0xf]
    %v1631 = vld [vmem:[#allocation9 + $0xb0] sm:$0xf]
    %v1632 = vld [vmem:[#allocation9 + $0xb4] sm:$0xf]
    %v1633 = vld [vmem:[#allocation9 + $0xb8] sm:$0xf]
    %v1634 = vld [vmem:[#allocation9 + $0xbc] sm:$0xf]
    %v1635 = vld [vmem:[#allocation9 + $0xc0] sm:$0xf]
    %v1636 = vld [vmem:[#allocation9 + $0xc4] sm:$0xf]
    %v1637 = vld [vmem:[#allocation9 + $0xc8] sm:$0xf]
    %v1638 = vld [vmem:[#allocation9 + $0xcc] sm:$0xf]
    %v1639 = vld [vmem:[#allocation9 + $0xd0] sm:$0xf]
    %v1640 = vld [vmem:[#allocation9 + $0xd4] sm:$0xf]
    %v1641 = vld [vmem:[#allocation9 + $0xd8] sm:$0xf]
    %v1642 = vld [vmem:[#allocation9 + $0xdc] sm:$0xf]
    %v1643 = vld [vmem:[#allocation9 + $0xe0] sm:$0xf]
    %v1644 = vld [vmem:[#allocation9 + $0xe4] sm:$0xf]
    %v1645 = vld [vmem:[#allocation9 + $0xe8] sm:$0xf]
    %v1646 = vld [vmem:[#allocation9 + $0xec] sm:$0xf]
    %v1647 = vld [vmem:[#allocation9 + $0xf0] sm:$0xf]
    %v1648 = vld [vmem:[#allocation9 + $0xf4] sm:$0xf]
    %v1649 = vld [vmem:[#allocation9 + $0xf8] sm:$0xf]
    %v1650 = vld [vmem:[#allocation9 + $0xfc] sm:$0xf]
    %v1651 = vld [vmem:[#allocation4 + $0x7] ss:$0 sm:$0xff]
    %v1716 = vunpack.c.l.b16 %v1587
    %v1717 = vunpack.c.l.b16 %v1588
    %v1718 = vunpack.c.l.b16 %v1589
    %v1719 = vunpack.c.l.b16 %v1590
    %v1720 = vunpack.c.l.b16 %v1591
    %v1721 = vunpack.c.l.b16 %v1592
    %v1722 = vunpack.c.l.b16 %v1593
    %v1723 = vunpack.c.l.b16 %v1594
    %v1724 = vunpack.c.l.b16 %v1595
    %v1725 = vunpack.c.l.b16 %v1596
    %v1726 = vunpack.c.l.b16 %v1597
    %v1727 = vunpack.c.l.b16 %v1598
    %v1728 = vunpack.c.l.b16 %v1599
    %v1729 = vunpack.c.l.b16 %v1600
    %v1730 = vunpack.c.l.b16 %v1601
    %v1731 = vunpack.c.l.b16 %v1602
    %v1732 = vunpack.c.l.b16 %v1603
    %v1733 = vunpack.c.l.b16 %v1604
    %v1734 = vunpack.c.l.b16 %v1605
    %v1735 = vunpack.c.l.b16 %v1606
    %v1736 = vunpack.c.l.b16 %v1607
    %v1737 = vunpack.c.l.b16 %v1608
    %v1738 = vunpack.c.l.b16 %v1609
    %v1739 = vunpack.c.l.b16 %v1610
    %v1740 = vunpack.c.l.b16 %v1611
    %v1741 = vunpack.c.l.b16 %v1612
    %v1742 = vunpack.c.l.b16 %v1613
    %v1743 = vunpack.c.l.b16 %v1614
    %v1744 = vunpack.c.l.b16 %v1615
    %v1745 = vunpack.c.l.b16 %v1616
    %v1746 = vunpack.c.l.b16 %v1617
    %v1747 = vunpack.c.l.b16 %v1618
    %v1748 = vunpack.c.l.b16 %v1619
    %v1749 = vunpack.c.l.b16 %v1620
    %v1750 = vunpack.c.l.b16 %v1621
    %v1751 = vunpack.c.l.b16 %v1622
    %v1752 = vunpack.c.l.b16 %v1623
    %v1753 = vunpack.c.l.b16 %v1624
    %v1754 = vunpack.c.l.b16 %v1625
    %v1755 = vunpack.c.l.b16 %v1626
    %v1756 = vunpack.c.l.b16 %v1627
    %v1757 = vunpack.c.l.b16 %v1628
    %v1758 = vunpack.c.l.b16 %v1629
    %v1759 = vunpack.c.l.b16 %v1630
    %v1760 = vunpack.c.l.b16 %v1631
    %v1761 = vunpack.c.l.b16 %v1632
    %v1762 = vunpack.c.l.b16 %v1633
    %v1763 = vunpack.c.l.b16 %v1634
    %v1764 = vunpack.c.l.b16 %v1635
    %v1765 = vunpack.c.l.b16 %v1636
    %v1766 = vunpack.c.l.b16 %v1637
    %v1767 = vunpack.c.l.b16 %v1638
    %v1768 = vunpack.c.l.b16 %v1639
    %v1769 = vunpack.c.l.b16 %v1640
    %v1770 = vunpack.c.l.b16 %v1641
    %v1771 = vunpack.c.l.b16 %v1642
    %v1772 = vunpack.c.l.b16 %v1643
    %v1773 = vunpack.c.l.b16 %v1644
    %v1774 = vunpack.c.l.b16 %v1645
    %v1775 = vunpack.c.l.b16 %v1646
    %v1776 = vunpack.c.l.b16 %v1647
    %v1777 = vunpack.c.l.b16 %v1648
    %v1778 = vunpack.c.l.b16 %v1649
    %v1779 = vunpack.c.l.b16 %v1650
    %v1780 = vpack.c.b16 %v1717, %v1716
    %v1781 = vpack.c.b16 %v1719, %v1718
    %v1782 = vpack.c.b16 %v1721, %v1720
    %v1783 = vpack.c.b16 %v1723, %v1722
    %v1784 = vpack.c.b16 %v1725, %v1724
    %v1785 = vpack.c.b16 %v1727, %v1726
    %v1786 = vpack.c.b16 %v1729, %v1728
    %v1787 = vpack.c.b16 %v1731, %v1730
    %v1788 = vpack.c.b16 %v1733, %v1732
    %v1789 = vpack.c.b16 %v1735, %v1734
    %v1790 = vpack.c.b16 %v1737, %v1736
    %v1791 = vpack.c.b16 %v1739, %v1738
    %v1792 = vpack.c.b16 %v1741, %v1740
    %v1793 = vpack.c.b16 %v1743, %v1742
    %v1794 = vpack.c.b16 %v1745, %v1744
    %v1795 = vpack.c.b16 %v1747, %v1746
    %v1796 = vpack.c.b16 %v1749, %v1748
    %v1797 = vpack.c.b16 %v1751, %v1750
    %v1798 = vpack.c.b16 %v1753, %v1752
    %v1799 = vpack.c.b16 %v1755, %v1754
    %v1800 = vpack.c.b16 %v1757, %v1756
    %v1801 = vpack.c.b16 %v1759, %v1758
    %v1802 = vpack.c.b16 %v1761, %v1760
    %v1803 = vpack.c.b16 %v1763, %v1762
    %v1804 = vpack.c.b16 %v1765, %v1764
    %v1805 = vpack.c.b16 %v1767, %v1766
    %v1806 = vpack.c.b16 %v1769, %v1768
    %v1807 = vpack.c.b16 %v1771, %v1770
    %v1808 = vpack.c.b16 %v1773, %v1772
    %v1809 = vpack.c.b16 %v1775, %v1774
    %v1810 = vpack.c.b16 %v1777, %v1776
    %v1811 = vpack.c.b16 %v1779, %v1778
    %1844 = vmatpush.bf16.msra.mxu0 %v1787
    %1845 = vmatpush.bf16.msra.mxu0 %v1786
    %1846 = vmatpush.bf16.msra.mxu0 %v1785
    %1847 = vmatpush.bf16.msra.mxu0 %v1784
    %1848 = vmatpush.bf16.msra.mxu0 %v1783
    %1849 = vmatpush.bf16.msra.mxu0 %v1782
    %1850 = vmatpush.bf16.msra.mxu0 %v1781
    %1851 = vmatpush.bf16.msra.mxu0 %v1780
    %1852 = vmatmul.bf16.gmra.mxu0 %v1583
    %v1853 = vpop.f32.mrf.mxu0
    %v1854 = vadd.f32 %v1651, %v1853
    %v1855 = vpop.f32.mrf.mxu0
    %v1856 = vadd.f32 %v1651, %v1855
    %1857 = vdwg.mxu0
    %1858 = vmatpush.bf16.msra.mxu0 %v1795
    %1859 = vmatpush.bf16.msra.mxu0 %v1794
    %1860 = vmatpush.bf16.msra.mxu0 %v1793
    %1861 = vmatpush.bf16.msra.mxu0 %v1792
    %1862 = vmatpush.bf16.msra.mxu0 %v1791
    %1863 = vmatpush.bf16.msra.mxu0 %v1790
    %1864 = vmatpush.bf16.msra.mxu0 %v1789
    %1865 = vmatpush.bf16.msra.mxu0 %v1788
    %1866 = vmatmul.bf16.gmra.mxu0 %v1584
    %v1867 = vpop.f32.mrf.mxu0
    %v1868 = vadd.f32 %v1854, %v1867
    %v1869 = vpop.f32.mrf.mxu0
    %v1870 = vadd.f32 %v1856, %v1869
    %1871 = vdwg.mxu0
    %1872 = vmatpush.bf16.msra.mxu0 %v1803
    %1873 = vmatpush.bf16.msra.mxu0 %v1802
    %1874 = vmatpush.bf16.msra.mxu0 %v1801
    %1875 = vmatpush.bf16.msra.mxu0 %v1800
    %1876 = vmatpush.bf16.msra.mxu0 %v1799
    %1877 = vmatpush.bf16.msra.mxu0 %v1798
    %1878 = vmatpush.bf16.msra.mxu0 %v1797
    %1879 = vmatpush.bf16.msra.mxu0 %v1796
    %1880 = vmatmul.bf16.gmra.mxu0 %v1585
    %v1881 = vpop.f32.mrf.mxu0
    %v1882 = vadd.f32 %v1868, %v1881
    %v1883 = vpop.f32.mrf.mxu0
    %v1884 = vadd.f32 %v1870, %v1883
    %1885 = vdwg.mxu0
    %1886 = vmatpush.bf16.msra.mxu0 %v1811
    %1887 = vmatpush.bf16.msra.mxu0 %v1810
    %1888 = vmatpush.bf16.msra.mxu0 %v1809
    %1889 = vmatpush.bf16.msra.mxu0 %v1808
    %1890 = vmatpush.bf16.msra.mxu0 %v1807
    %1891 = vmatpush.bf16.msra.mxu0 %v1806
    %1892 = vmatpush.bf16.msra.mxu0 %v1805
    %1893 = vmatpush.bf16.msra.mxu0 %v1804
    %1894 = vmatmul.bf16.gmra.mxu0 %v1586
    %v1895 = vpop.f32.mrf.mxu0
    %v1896 = vadd.f32 %v1882, %v1895
    %v1897 = vpop.f32.mrf.mxu0
    %v1898 = vadd.f32 %v1884, %v1897
    %1899 = vdwg.mxu0
    %v1900 = vadd.f32 %v1201, %v1896
    %v1901 = vadd.f32 %v1202, %v1898
    %v1902 = vld [vmem:[#allocation4 + $0x20] ss:$0 sm:$0xff]
    %v1903 = vld [vmem:[#allocation4 + $0x21] ss:$0 sm:$0xff]
    %1904 = vadd.xlane.f32.xlu0 %v1900
    %v1905 = vpop.xlane.xlu0 %1904
    %v1906 = vsel %vm283, %v1901, 0.0
    %1907 = vadd.xlane.f32.xlu0 %v1906
    %v1908 = vpop.xlane.xlu0 %1907
    %v1909 = vmul.f32 %v1905, %v293
    %v1910 = vmul.f32 %v1908, %v293
    %v1911 = vsub.f32 %v1900, %v1909
    %v1912 = vsub.f32 %v1901, %v1910
    %v1913 = vmul.f32 %v1911, %v1911
    %v1914 = vmul.f32 %v1912, %v1912
    %1915 = vadd.xlane.f32.xlu0 %v1913
    %v1916 = vpop.xlane.xlu0 %1915
    %v1917 = vsel %vm283, %v1914, 0.0
    %1918 = vadd.xlane.f32.xlu0 %v1917
    %v1919 = vpop.xlane.xlu0 %1918
    %v1920 = vmul.f32 %v1916, %v293
    %v1921 = vmul.f32 %v1919, %v293
    %v1922 = vadd.f32 %v1920, 1e-06
    %v1923 = vadd.f32 %v1921, 1e-06
    %v1924 = vrsqrt.pop %v1922
    %v1925 = vmul.f32 %v1924, %v1922
    %v1926 = vmul.f32 %v1925, %v1924
    %v1927 = vmul.f32 0.5, %v1926
    %v1928 = vsub.f32 1.5, %v1927
    %v1929 = vmul.f32 %v1924, %v1928
    %vm1930 = vweird.f32 %v1922
    %vm1931 = vweird.f32 %v1924
    %vm1932 = vmor %vm1930, %vm1931
    %v1933 = vsel %vm1932, %v1924, %v1929
    %v1934 = vrsqrt.pop %v1923
    %v1935 = vmul.f32 %v1934, %v1923
    %v1936 = vmul.f32 %v1935, %v1934
    %v1937 = vmul.f32 0.5, %v1936
    %v1938 = vsub.f32 1.5, %v1937
    %v1939 = vmul.f32 %v1934, %v1938
    %vm1940 = vweird.f32 %v1923
    %vm1941 = vweird.f32 %v1934
    %vm1942 = vmor %vm1940, %vm1941
    %v1943 = vsel %vm1942, %v1934, %v1939
    %v1944 = vmul.f32 %v1911, %v1933
    %v1945 = vmul.f32 %v1912, %v1943
    %v1946 = vmul.f32 %v1944, %v1902
    %v1947 = vmul.f32 %v1945, %v1902
    %v1948 = vadd.f32 %v1946, %v1903
    %v1949 = vadd.f32 %v1947, %v1903
    %v1950 = vpack.c.bf16 %v1949, %v1948
    %s1951 = scalar_lea.vmem %s4, 192
    %v1952 = vld [vmem:[%s1951] sm:$0xff]
    %v1953 = vld [vmem:[%s1951 + $0x8] sm:$0xf]
    %v1954 = vld [vmem:[%s1951 + $0xc] sm:$0xff]
    %v1955 = vld [vmem:[%s1951 + $0x14] sm:$0xf]
    %v1956 = vld [vmem:[%s1951 + $0x18] sm:$0xff]
    %v1957 = vld [vmem:[%s1951 + $0x20] sm:$0xf]
    %v1958 = vld [vmem:[%s1951 + $0x24] sm:$0xff]
    %v1959 = vld [vmem:[%s1951 + $0x2c] sm:$0xf]
    %v1960 = vld [vmem:[%s1951 + $0x30] sm:$0xff]
    %v1961 = vld [vmem:[%s1951 + $0x38] sm:$0xf]
    %v1962 = vld [vmem:[%s1951 + $0x3c] sm:$0xff]
    %v1963 = vld [vmem:[%s1951 + $0x44] sm:$0xf]
    %v1964 = vld [vmem:[%s1951 + $0x48] sm:$0xff]
    %v1965 = vld [vmem:[%s1951 + $0x50] sm:$0xf]
    %v1966 = vld [vmem:[%s1951 + $0x54] sm:$0xff]
    %v1967 = vld [vmem:[%s1951 + $0x5c] sm:$0xf]
    %v1968 = vld [vmem:[%s1951 + $0x60] sm:$0xff]
    %v1969 = vld [vmem:[%s1951 + $0x68] sm:$0xf]
    %v1970 = vld [vmem:[%s1951 + $0x6c] sm:$0xff]
    %v1971 = vld [vmem:[%s1951 + $0x74] sm:$0xf]
    %v1972 = vld [vmem:[%s1951 + $0x78] sm:$0xff]
    %v1973 = vld [vmem:[%s1951 + $0x80] sm:$0xf]
    %v1974 = vld [vmem:[%s1951 + $0x84] sm:$0xff]
    %v1975 = vld [vmem:[%s1951 + $0x8c] sm:$0xf]
    %v1976 = vld [vmem:[%s1951 + $0x90] sm:$0xff]
    %v1977 = vld [vmem:[%s1951 + $0x98] sm:$0xf]
    %v1978 = vld [vmem:[%s1951 + $0x9c] sm:$0xff]
    %v1979 = vld [vmem:[%s1951 + $0xa4] sm:$0xf]
    %v1980 = vld [vmem:[%s1951 + $0xa8] sm:$0xff]
    %v1981 = vld [vmem:[%s1951 + $0xb0] sm:$0xf]
    %v1982 = vld [vmem:[%s1951 + $0xb4] sm:$0xff]
    %v1983 = vld [vmem:[%s1951 + $0xbc] sm:$0xf]
    %s1984 = scalar_lea.vmem [#allocation4], 34
    %v1985 = vld [vmem:[%s1984] ss:$8 sm:$0x7]
    %v1987 = vperm.slane %v1985, 0
    %v1988 = vperm.slane %v1985, 1
    %v1989 = vperm.slane %v1985, 2
    %v2025 = vunpack.c.l.b16 %v1952
    %v2026 = vunpack.c.h.b16 %v1952
    %v2027 = vunpack.c.l.b16 %v1953
    %v2028 = vunpack.c.l.b16 %v1954
    %v2029 = vunpack.c.h.b16 %v1954
    %v2030 = vunpack.c.l.b16 %v1955
    %v2031 = vunpack.c.l.b16 %v1956
    %v2032 = vunpack.c.h.b16 %v1956
    %v2033 = vunpack.c.l.b16 %v1957
    %v2034 = vunpack.c.l.b16 %v1958
    %v2035 = vunpack.c.h.b16 %v1958
    %v2036 = vunpack.c.l.b16 %v1959
    %v2037 = vunpack.c.l.b16 %v1960
    %v2038 = vunpack.c.h.b16 %v1960
    %v2039 = vunpack.c.l.b16 %v1961
    %v2040 = vunpack.c.l.b16 %v1962
    %v2041 = vunpack.c.h.b16 %v1962
    %v2042 = vunpack.c.l.b16 %v1963
    %v2043 = vunpack.c.l.b16 %v1964
    %v2044 = vunpack.c.h.b16 %v1964
    %v2045 = vunpack.c.l.b16 %v1965
    %v2046 = vunpack.c.l.b16 %v1966
    %v2047 = vunpack.c.h.b16 %v1966
    %v2048 = vunpack.c.l.b16 %v1967
    %v2049 = vunpack.c.l.b16 %v1968
    %v2050 = vunpack.c.h.b16 %v1968
    %v2051 = vunpack.c.l.b16 %v1969
    %v2052 = vunpack.c.l.b16 %v1970
    %v2053 = vunpack.c.h.b16 %v1970
    %v2054 = vunpack.c.l.b16 %v1971
    %v2055 = vunpack.c.l.b16 %v1972
    %v2056 = vunpack.c.h.b16 %v1972
    %v2057 = vunpack.c.l.b16 %v1973
    %v2058 = vunpack.c.l.b16 %v1974
    %v2059 = vunpack.c.h.b16 %v1974
    %v2060 = vunpack.c.l.b16 %v1975
    %v2061 = vunpack.c.l.b16 %v1976
    %v2062 = vunpack.c.h.b16 %v1976
    %v2063 = vunpack.c.l.b16 %v1977
    %v2064 = vunpack.c.l.b16 %v1978
    %v2065 = vunpack.c.h.b16 %v1978
    %v2066 = vunpack.c.l.b16 %v1979
    %v2067 = vunpack.c.l.b16 %v1980
    %v2068 = vunpack.c.h.b16 %v1980
    %v2069 = vunpack.c.l.b16 %v1981
    %v2070 = vunpack.c.l.b16 %v1982
    %v2071 = vunpack.c.h.b16 %v1982
    %v2072 = vunpack.c.l.b16 %v1983
    %v2073 = vpack.c.b16 %v2028, %v2025
    %v2074 = vpack.c.b16 %v2029, %v2026
    %v2075 = vpack.c.b16 %v2030, %v2027
    %v2076 = vpack.c.b16 %v2034, %v2031
    %v2077 = vpack.c.b16 %v2035, %v2032
    %v2078 = vpack.c.b16 %v2036, %v2033
    %v2079 = vpack.c.b16 %v2040, %v2037
    %v2080 = vpack.c.b16 %v2041, %v2038
    %v2081 = vpack.c.b16 %v2042, %v2039
    %v2082 = vpack.c.b16 %v2046, %v2043
    %v2083 = vpack.c.b16 %v2047, %v2044
    %v2084 = vpack.c.b16 %v2048, %v2045
    %v2085 = vpack.c.b16 %v2052, %v2049
    %v2086 = vpack.c.b16 %v2053, %v2050
    %v2087 = vpack.c.b16 %v2054, %v2051
    %v2088 = vpack.c.b16 %v2058, %v2055
    %v2089 = vpack.c.b16 %v2059, %v2056
    %v2090 = vpack.c.b16 %v2060, %v2057
    %v2091 = vpack.c.b16 %v2064, %v2061
    %v2092 = vpack.c.b16 %v2065, %v2062
    %v2093 = vpack.c.b16 %v2066, %v2063
    %v2094 = vpack.c.b16 %v2070, %v2067
    %v2095 = vpack.c.b16 %v2071, %v2068
    %v2096 = vpack.c.b16 %v2072, %v2069
    %2121 = vmatpush.bf16.msra.mxu0 %v2094
    %2122 = vmatpush.bf16.msra.mxu0 %v2091
    %2123 = vmatpush.bf16.msra.mxu0 %v2088
    %2124 = vmatpush.bf16.msra.mxu0 %v2085
    %2125 = vmatpush.bf16.msra.mxu0 %v2082
    %2126 = vmatpush.bf16.msra.mxu0 %v2079
    %2127 = vmatpush.bf16.msra.mxu0 %v2076
    %2128 = vmatpush.bf16.msra.mxu0 %v2073
    %2129 = vmatmul.bf16.gmra.mxu0 %v1950
    %v2130 = vpop.f32.mrf.mxu0
    %v2131 = vadd.f32 %v1987, %v2130
    %v2132 = vpop.f32.mrf.mxu0
    %v2133 = vadd.f32 %v1987, %v2132
    %2134 = vdwg.mxu0
    %2135 = vmatpush.bf16.msra.mxu0 %v2095
    %2136 = vmatpush.bf16.msra.mxu0 %v2092
    %2137 = vmatpush.bf16.msra.mxu0 %v2089
    %2138 = vmatpush.bf16.msra.mxu0 %v2086
    %2139 = vmatpush.bf16.msra.mxu0 %v2083
    %2140 = vmatpush.bf16.msra.mxu0 %v2080
    %2141 = vmatpush.bf16.msra.mxu0 %v2077
    %2142 = vmatpush.bf16.msra.mxu0 %v2074
    %2143 = vmatmul.bf16.gmra.mxu0 %v1950
    %v2144 = vpop.f32.mrf.mxu0
    %v2145 = vadd.f32 %v1988, %v2144
    %v2146 = vpop.f32.mrf.mxu0
    %v2147 = vadd.f32 %v1988, %v2146
    %2148 = vdwg.mxu0
    %2149 = vmatpush.bf16.msra.mxu0 %v2096
    %2150 = vmatpush.bf16.msra.mxu0 %v2093
    %2151 = vmatpush.bf16.msra.mxu0 %v2090
    %2152 = vmatpush.bf16.msra.mxu0 %v2087
    %2153 = vmatpush.bf16.msra.mxu0 %v2084
    %2154 = vmatpush.bf16.msra.mxu0 %v2081
    %2155 = vmatpush.bf16.msra.mxu0 %v2078
    %2156 = vmatpush.bf16.msra.mxu0 %v2075
    %2157 = vmatmul.bf16.gmra.mxu0 %v1950
    %v2158 = vpop.f32.mrf.mxu0
    %v2159 = vadd.f32 %v1989, %v2158
    %v2160 = vpop.f32.mrf.mxu0
    %v2161 = vadd.f32 %v1989, %v2160
    %2162 = vdwg.mxu0
    %v2164 = vsel %vm547, %v2131, 0
    %v2167 = vsel %vm547, %v2145, 0
    %2169 = vmatpush.xpose.msra.mxu0 0.0
    %2170 = vmatpush.xpose.msra.mxu0 0.0
    %2171 = vmatpush.xpose.msra.mxu0 0.0
    %2172 = vmatpush.xpose.msra.mxu0 0.0
    %2173 = vmatpush.xpose.msra.mxu0 0.0
    %2174 = vmatpush.xpose.msra.mxu0 0.0
    %2175 = vmatpush.xpose.msra.mxu0 0.0
    %2176 = vmatpush.xpose.msra.mxu0 0.0
    %2177 = vmatpush.xpose.msra.mxu0 0.0
    %2178 = vmatpush.xpose.msra.mxu0 0.0
    %2179 = vmatpush.xpose.msra.mxu0 0.0
    %2180 = vmatpush.xpose.msra.mxu0 0.0
    %2181 = vmatpush.xpose.msra.mxu0 0.0
    %2182 = vmatpush.xpose.msra.mxu0 0.0
    %2183 = vmatpush.xpose.msra.mxu0 0.0
    %2184 = vmatpush.xpose.msra.mxu0 %v2167
    %2185 = vmatmul.f32.gmra.mxu0 %v2164
    %v2186 = vpop.f32.mrf.mxu0
    %v2187 = vadd.f32 0.0, %v2186
    %2188 = vdwg.mxu0
    %v2189 = vsel %vm574, %v2187, -inf
    %2190 = vmax.xlane.f32.xlu0 %v2189
    %v2191 = vpop.xlane.xlu0 %2190
    %v2192 = vsub.f32 %v2187, %v2191
    %v2193 = vmul.f32 %v2192, 1.442695
    %v2194 = vpow.pop %v2193
    %v2195 = vsel %vm574, %v2194, 0.0
    %2196 = vadd.xlane.f32.xlu0 %v2195
    %v2197 = vpop.xlane.xlu0 %2196
    %v2198 = vrcp.pop %v2197
    %v2199 = vmul.f32 %v2194, %v2198
    %v2201 = vsel %vm586, %v2199, 0
    %v2204 = vsel %vm590, %v2159, 0
    %2206 = vmatpush.msra.mxu0 0.0
    %2207 = vmatpush.msra.mxu0 0.0
    %2208 = vmatpush.msra.mxu0 0.0
    %2209 = vmatpush.msra.mxu0 0.0
    %2210 = vmatpush.msra.mxu0 0.0
    %2211 = vmatpush.msra.mxu0 0.0
    %2212 = vmatpush.msra.mxu0 0.0
    %2213 = vmatpush.msra.mxu0 0.0
    %2214 = vmatpush.msra.mxu0 0.0
    %2215 = vmatpush.msra.mxu0 0.0
    %2216 = vmatpush.msra.mxu0 0.0
    %2217 = vmatpush.msra.mxu0 0.0
    %2218 = vmatpush.msra.mxu0 0.0
    %2219 = vmatpush.msra.mxu0 0.0
    %2220 = vmatpush.msra.mxu0 0.0
    %2221 = vmatpush.msra.mxu0 %v2204
    %2222 = vmatmul.f32.gmra.mxu0 %v2201
    %v2223 = vpop.f32.mrf.mxu0
    %v2224 = vadd.f32 0.0, %v2223
    %2225 = vdwg.mxu0
    %2226 = vrot.lane.b32.xlu0 %v2131, 96
    %v2227 = vpop.permute.xlu0 %2226
    %2228 = vrot.lane.b32.xlu0 %v2145, 96
    %v2229 = vpop.permute.xlu0 %2228
    %v2230 = vsel %vm547, %v2227, 0
    %v2232 = vsel %vm547, %v2229, 0
    %2234 = vmatpush.xpose.msra.mxu0 0.0
    %2235 = vmatpush.xpose.msra.mxu0 0.0
    %2236 = vmatpush.xpose.msra.mxu0 0.0
    %2237 = vmatpush.xpose.msra.mxu0 0.0
    %2238 = vmatpush.xpose.msra.mxu0 0.0
    %2239 = vmatpush.xpose.msra.mxu0 0.0
    %2240 = vmatpush.xpose.msra.mxu0 0.0
    %2241 = vmatpush.xpose.msra.mxu0 0.0
    %2242 = vmatpush.xpose.msra.mxu0 0.0
    %2243 = vmatpush.xpose.msra.mxu0 0.0
    %2244 = vmatpush.xpose.msra.mxu0 0.0
    %2245 = vmatpush.xpose.msra.mxu0 0.0
    %2246 = vmatpush.xpose.msra.mxu0 0.0
    %2247 = vmatpush.xpose.msra.mxu0 0.0
    %2248 = vmatpush.xpose.msra.mxu0 0.0
    %2249 = vmatpush.xpose.msra.mxu0 %v2232
    %2250 = vmatmul.f32.gmra.mxu0 %v2230
    %v2251 = vpop.f32.mrf.mxu0
    %v2252 = vadd.f32 0.0, %v2251
    %2253 = vdwg.mxu0
    %v2254 = vsel %vm574, %v2252, -inf
    %2255 = vmax.xlane.f32.xlu0 %v2254
    %v2256 = vpop.xlane.xlu0 %2255
    %v2257 = vsub.f32 %v2252, %v2256
    %v2258 = vmul.f32 %v2257, 1.442695
    %v2259 = vpow.pop %v2258
    %v2260 = vsel %vm574, %v2259, 0.0
    %2261 = vadd.xlane.f32.xlu0 %v2260
    %v2262 = vpop.xlane.xlu0 %2261
    %v2263 = vrcp.pop %v2262
    %v2264 = vmul.f32 %v2259, %v2263
    %2265 = vrot.lane.b32.xlu0 %v2159, 96
    %v2266 = vpop.permute.xlu0 %2265
    %v2268 = vsel %vm586, %v2264, 0
    %v2270 = vsel %vm590, %v2266, 0
    %2272 = vmatpush.msra.mxu0 0.0
    %2273 = vmatpush.msra.mxu0 0.0
    %2274 = vmatpush.msra.mxu0 0.0
    %2275 = vmatpush.msra.mxu0 0.0
    %2276 = vmatpush.msra.mxu0 0.0
    %2277 = vmatpush.msra.mxu0 0.0
    %2278 = vmatpush.msra.mxu0 0.0
    %2279 = vmatpush.msra.mxu0 0.0
    %2280 = vmatpush.msra.mxu0 0.0
    %2281 = vmatpush.msra.mxu0 0.0
    %2282 = vmatpush.msra.mxu0 0.0
    %2283 = vmatpush.msra.mxu0 0.0
    %2284 = vmatpush.msra.mxu0 0.0
    %2285 = vmatpush.msra.mxu0 0.0
    %2286 = vmatpush.msra.mxu0 0.0
    %2287 = vmatpush.msra.mxu0 %v2270
    %2288 = vmatmul.f32.gmra.mxu0 %v2268
    %v2289 = vpop.f32.mrf.mxu0
    %v2290 = vadd.f32 0.0, %v2289
    %2291 = vdwg.mxu0
    %2292 = vrot.lane.b32.xlu0 %v2131, 64
    %v2293 = vpop.permute.xlu0 %2292
    %2294 = vrot.lane.b32.xlu0 %v2145, 64
    %v2295 = vpop.permute.xlu0 %2294
    %v2296 = vsel %vm547, %v2293, 0
    %v2298 = vsel %vm547, %v2295, 0
    %2300 = vmatpush.xpose.msra.mxu0 0.0
    %2301 = vmatpush.xpose.msra.mxu0 0.0
    %2302 = vmatpush.xpose.msra.mxu0 0.0
    %2303 = vmatpush.xpose.msra.mxu0 0.0
    %2304 = vmatpush.xpose.msra.mxu0 0.0
    %2305 = vmatpush.xpose.msra.mxu0 0.0
    %2306 = vmatpush.xpose.msra.mxu0 0.0
    %2307 = vmatpush.xpose.msra.mxu0 0.0
    %2308 = vmatpush.xpose.msra.mxu0 0.0
    %2309 = vmatpush.xpose.msra.mxu0 0.0
    %2310 = vmatpush.xpose.msra.mxu0 0.0
    %2311 = vmatpush.xpose.msra.mxu0 0.0
    %2312 = vmatpush.xpose.msra.mxu0 0.0
    %2313 = vmatpush.xpose.msra.mxu0 0.0
    %2314 = vmatpush.xpose.msra.mxu0 0.0
    %2315 = vmatpush.xpose.msra.mxu0 %v2298
    %2316 = vmatmul.f32.gmra.mxu0 %v2296
    %v2317 = vpop.f32.mrf.mxu0
    %v2318 = vadd.f32 0.0, %v2317
    %2319 = vdwg.mxu0
    %v2320 = vsel %vm574, %v2318, -inf
    %2321 = vmax.xlane.f32.xlu0 %v2320
    %v2322 = vpop.xlane.xlu0 %2321
    %v2323 = vsub.f32 %v2318, %v2322
    %v2324 = vmul.f32 %v2323, 1.442695
    %v2325 = vpow.pop %v2324
    %v2326 = vsel %vm574, %v2325, 0.0
    %2327 = vadd.xlane.f32.xlu0 %v2326
    %v2328 = vpop.xlane.xlu0 %2327
    %v2329 = vrcp.pop %v2328
    %v2330 = vmul.f32 %v2325, %v2329
    %2331 = vrot.lane.b32.xlu0 %v2159, 64
    %v2332 = vpop.permute.xlu0 %2331
    %v2334 = vsel %vm586, %v2330, 0
    %v2336 = vsel %vm590, %v2332, 0
    %2338 = vmatpush.msra.mxu0 0.0
    %2339 = vmatpush.msra.mxu0 0.0
    %2340 = vmatpush.msra.mxu0 0.0
    %2341 = vmatpush.msra.mxu0 0.0
    %2342 = vmatpush.msra.mxu0 0.0
    %2343 = vmatpush.msra.mxu0 0.0
    %2344 = vmatpush.msra.mxu0 0.0
    %2345 = vmatpush.msra.mxu0 0.0
    %2346 = vmatpush.msra.mxu0 0.0
    %2347 = vmatpush.msra.mxu0 0.0
    %2348 = vmatpush.msra.mxu0 0.0
    %2349 = vmatpush.msra.mxu0 0.0
    %2350 = vmatpush.msra.mxu0 0.0
    %2351 = vmatpush.msra.mxu0 0.0
    %2352 = vmatpush.msra.mxu0 0.0
    %2353 = vmatpush.msra.mxu0 %v2336
    %2354 = vmatmul.f32.gmra.mxu0 %v2334
    %v2355 = vpop.f32.mrf.mxu0
    %v2356 = vadd.f32 0.0, %v2355
    %2357 = vdwg.mxu0
    %2358 = vrot.lane.b32.xlu0 %v2131, 32
    %v2359 = vpop.permute.xlu0 %2358
    %2360 = vrot.lane.b32.xlu0 %v2145, 32
    %v2361 = vpop.permute.xlu0 %2360
    %v2362 = vsel %vm547, %v2359, 0
    %v2364 = vsel %vm547, %v2361, 0
    %2366 = vmatpush.xpose.msra.mxu0 0.0
    %2367 = vmatpush.xpose.msra.mxu0 0.0
    %2368 = vmatpush.xpose.msra.mxu0 0.0
    %2369 = vmatpush.xpose.msra.mxu0 0.0
    %2370 = vmatpush.xpose.msra.mxu0 0.0
    %2371 = vmatpush.xpose.msra.mxu0 0.0
    %2372 = vmatpush.xpose.msra.mxu0 0.0
    %2373 = vmatpush.xpose.msra.mxu0 0.0
    %2374 = vmatpush.xpose.msra.mxu0 0.0
    %2375 = vmatpush.xpose.msra.mxu0 0.0
    %2376 = vmatpush.xpose.msra.mxu0 0.0
    %2377 = vmatpush.xpose.msra.mxu0 0.0
    %2378 = vmatpush.xpose.msra.mxu0 0.0
    %2379 = vmatpush.xpose.msra.mxu0 0.0
    %2380 = vmatpush.xpose.msra.mxu0 0.0
    %2381 = vmatpush.xpose.msra.mxu0 %v2364
    %2382 = vmatmul.f32.gmra.mxu0 %v2362
    %v2383 = vpop.f32.mrf.mxu0
    %v2384 = vadd.f32 0.0, %v2383
    %2385 = vdwg.mxu0
    %v2386 = vsel %vm574, %v2384, -inf
    %2387 = vmax.xlane.f32.xlu0 %v2386
    %v2388 = vpop.xlane.xlu0 %2387
    %v2389 = vsub.f32 %v2384, %v2388
    %v2390 = vmul.f32 %v2389, 1.442695
    %v2391 = vpow.pop %v2390
    %v2392 = vsel %vm574, %v2391, 0.0
    %2393 = vadd.xlane.f32.xlu0 %v2392
    %v2394 = vpop.xlane.xlu0 %2393
    %v2395 = vrcp.pop %v2394
    %v2396 = vmul.f32 %v2391, %v2395
    %2397 = vrot.lane.b32.xlu0 %v2159, 32
    %v2398 = vpop.permute.xlu0 %2397
    %v2400 = vsel %vm586, %v2396, 0
    %v2402 = vsel %vm590, %v2398, 0
    %2404 = vmatpush.msra.mxu0 0.0
    %2405 = vmatpush.msra.mxu0 0.0
    %2406 = vmatpush.msra.mxu0 0.0
    %2407 = vmatpush.msra.mxu0 0.0
    %2408 = vmatpush.msra.mxu0 0.0
    %2409 = vmatpush.msra.mxu0 0.0
    %2410 = vmatpush.msra.mxu0 0.0
    %2411 = vmatpush.msra.mxu0 0.0
    %2412 = vmatpush.msra.mxu0 0.0
    %2413 = vmatpush.msra.mxu0 0.0
    %2414 = vmatpush.msra.mxu0 0.0
    %2415 = vmatpush.msra.mxu0 0.0
    %2416 = vmatpush.msra.mxu0 0.0
    %2417 = vmatpush.msra.mxu0 0.0
    %2418 = vmatpush.msra.mxu0 0.0
    %2419 = vmatpush.msra.mxu0 %v2402
    %2420 = vmatmul.f32.gmra.mxu0 %v2400
    %v2421 = vpop.f32.mrf.mxu0
    %v2422 = vadd.f32 0.0, %v2421
    %2423 = vdwg.mxu0
    %2425 = vrot.lane.b32.xlu0 %v2290, 32
    %v2426 = vpop.permute.xlu0 %2425
    %2429 = vrot.lane.b32.xlu0 %v2356, 64
    %v2430 = vpop.permute.xlu0 %2429
    %2433 = vrot.lane.b32.xlu0 %v2422, 96
    %v2434 = vpop.permute.xlu0 %2433
    %v2436 = vsel %vm547, %v2224, %v2426
    %v2437 = vsel %vm825, %v2436, %v2430
    %v2438 = vsel %vm827, %v2437, %v2434
    %v2440 = vrot.slane %v2131, 5
    %v2441 = vrot.slane %v2133, 5
    %v2442 = vsel %vm830, %v2440, %v2441
    %v2444 = vrot.slane %v2145, 5
    %v2445 = vrot.slane %v2147, 5
    %v2446 = vsel %vm830, %v2444, %v2445
    %v2447 = vsel %vm547, %v2442, 0
    %v2449 = vsel %vm547, %v2446, 0
    %2451 = vmatpush.xpose.msra.mxu0 0.0
    %2452 = vmatpush.xpose.msra.mxu0 0.0
    %2453 = vmatpush.xpose.msra.mxu0 0.0
    %2454 = vmatpush.xpose.msra.mxu0 0.0
    %2455 = vmatpush.xpose.msra.mxu0 0.0
    %2456 = vmatpush.xpose.msra.mxu0 0.0
    %2457 = vmatpush.xpose.msra.mxu0 0.0
    %2458 = vmatpush.xpose.msra.mxu0 0.0
    %2459 = vmatpush.xpose.msra.mxu0 0.0
    %2460 = vmatpush.xpose.msra.mxu0 0.0
    %2461 = vmatpush.xpose.msra.mxu0 0.0
    %2462 = vmatpush.xpose.msra.mxu0 0.0
    %2463 = vmatpush.xpose.msra.mxu0 0.0
    %2464 = vmatpush.xpose.msra.mxu0 0.0
    %2465 = vmatpush.xpose.msra.mxu0 0.0
    %2466 = vmatpush.xpose.msra.mxu0 %v2449
    %2467 = vmatmul.f32.gmra.mxu0 %v2447
    %v2468 = vpop.f32.mrf.mxu0
    %v2469 = vadd.f32 0.0, %v2468
    %2470 = vdwg.mxu0
    %v2471 = vsel %vm574, %v2469, -inf
    %2472 = vmax.xlane.f32.xlu0 %v2471
    %v2473 = vpop.xlane.xlu0 %2472
    %v2474 = vsub.f32 %v2469, %v2473
    %v2475 = vmul.f32 %v2474, 1.442695
    %v2476 = vpow.pop %v2475
    %v2477 = vsel %vm574, %v2476, 0.0
    %2478 = vadd.xlane.f32.xlu0 %v2477
    %v2479 = vpop.xlane.xlu0 %2478
    %v2480 = vrcp.pop %v2479
    %v2481 = vmul.f32 %v2476, %v2480
    %v2483 = vrot.slane %v2159, 5
    %v2484 = vrot.slane %v2161, 5
    %v2485 = vsel %vm830, %v2483, %v2484
    %v2487 = vsel %vm586, %v2481, 0
    %v2489 = vsel %vm590, %v2485, 0
    %2491 = vmatpush.msra.mxu0 0.0
    %2492 = vmatpush.msra.mxu0 0.0
    %2493 = vmatpush.msra.mxu0 0.0
    %2494 = vmatpush.msra.mxu0 0.0
    %2495 = vmatpush.msra.mxu0 0.0
    %2496 = vmatpush.msra.mxu0 0.0
    %2497 = vmatpush.msra.mxu0 0.0
    %2498 = vmatpush.msra.mxu0 0.0
    %2499 = vmatpush.msra.mxu0 0.0
    %2500 = vmatpush.msra.mxu0 0.0
    %2501 = vmatpush.msra.mxu0 0.0
    %2502 = vmatpush.msra.mxu0 0.0
    %2503 = vmatpush.msra.mxu0 0.0
    %2504 = vmatpush.msra.mxu0 0.0
    %2505 = vmatpush.msra.mxu0 0.0
    %2506 = vmatpush.msra.mxu0 %v2489
    %2507 = vmatmul.f32.gmra.mxu0 %v2487
    %v2508 = vpop.f32.mrf.mxu0
    %v2509 = vadd.f32 0.0, %v2508
    %2510 = vdwg.mxu0
    %2511 = vrot.lane.b32.xlu0 %v2442, 96
    %v2512 = vpop.permute.xlu0 %2511
    %2513 = vrot.lane.b32.xlu0 %v2446, 96
    %v2514 = vpop.permute.xlu0 %2513
    %v2515 = vsel %vm547, %v2512, 0
    %v2517 = vsel %vm547, %v2514, 0
    %2519 = vmatpush.xpose.msra.mxu0 0.0
    %2520 = vmatpush.xpose.msra.mxu0 0.0
    %2521 = vmatpush.xpose.msra.mxu0 0.0
    %2522 = vmatpush.xpose.msra.mxu0 0.0
    %2523 = vmatpush.xpose.msra.mxu0 0.0
    %2524 = vmatpush.xpose.msra.mxu0 0.0
    %2525 = vmatpush.xpose.msra.mxu0 0.0
    %2526 = vmatpush.xpose.msra.mxu0 0.0
    %2527 = vmatpush.xpose.msra.mxu0 0.0
    %2528 = vmatpush.xpose.msra.mxu0 0.0
    %2529 = vmatpush.xpose.msra.mxu0 0.0
    %2530 = vmatpush.xpose.msra.mxu0 0.0
    %2531 = vmatpush.xpose.msra.mxu0 0.0
    %2532 = vmatpush.xpose.msra.mxu0 0.0
    %2533 = vmatpush.xpose.msra.mxu0 0.0
    %2534 = vmatpush.xpose.msra.mxu0 %v2517
    %2535 = vmatmul.f32.gmra.mxu0 %v2515
    %v2536 = vpop.f32.mrf.mxu0
    %v2537 = vadd.f32 0.0, %v2536
    %2538 = vdwg.mxu0
    %v2539 = vsel %vm574, %v2537, -inf
    %2540 = vmax.xlane.f32.xlu0 %v2539
    %v2541 = vpop.xlane.xlu0 %2540
    %v2542 = vsub.f32 %v2537, %v2541
    %v2543 = vmul.f32 %v2542, 1.442695
    %v2544 = vpow.pop %v2543
    %v2545 = vsel %vm574, %v2544, 0.0
    %2546 = vadd.xlane.f32.xlu0 %v2545
    %v2547 = vpop.xlane.xlu0 %2546
    %v2548 = vrcp.pop %v2547
    %v2549 = vmul.f32 %v2544, %v2548
    %2550 = vrot.lane.b32.xlu0 %v2485, 96
    %v2551 = vpop.permute.xlu0 %2550
    %v2553 = vsel %vm586, %v2549, 0
    %v2555 = vsel %vm590, %v2551, 0
    %2557 = vmatpush.msra.mxu0 0.0
    %2558 = vmatpush.msra.mxu0 0.0
    %2559 = vmatpush.msra.mxu0 0.0
    %2560 = vmatpush.msra.mxu0 0.0
    %2561 = vmatpush.msra.mxu0 0.0
    %2562 = vmatpush.msra.mxu0 0.0
    %2563 = vmatpush.msra.mxu0 0.0
    %2564 = vmatpush.msra.mxu0 0.0
    %2565 = vmatpush.msra.mxu0 0.0
    %2566 = vmatpush.msra.mxu0 0.0
    %2567 = vmatpush.msra.mxu0 0.0
    %2568 = vmatpush.msra.mxu0 0.0
    %2569 = vmatpush.msra.mxu0 0.0
    %2570 = vmatpush.msra.mxu0 0.0
    %2571 = vmatpush.msra.mxu0 0.0
    %2572 = vmatpush.msra.mxu0 %v2555
    %2573 = vmatmul.f32.gmra.mxu0 %v2553
    %v2574 = vpop.f32.mrf.mxu0
    %v2575 = vadd.f32 0.0, %v2574
    %2576 = vdwg.mxu0
    %2577 = vrot.lane.b32.xlu0 %v2442, 64
    %v2578 = vpop.permute.xlu0 %2577
    %2579 = vrot.lane.b32.xlu0 %v2446, 64
    %v2580 = vpop.permute.xlu0 %2579
    %v2581 = vsel %vm547, %v2578, 0
    %v2583 = vsel %vm547, %v2580, 0
    %2585 = vmatpush.xpose.msra.mxu0 0.0
    %2586 = vmatpush.xpose.msra.mxu0 0.0
    %2587 = vmatpush.xpose.msra.mxu0 0.0
    %2588 = vmatpush.xpose.msra.mxu0 0.0
    %2589 = vmatpush.xpose.msra.mxu0 0.0
    %2590 = vmatpush.xpose.msra.mxu0 0.0
    %2591 = vmatpush.xpose.msra.mxu0 0.0
    %2592 = vmatpush.xpose.msra.mxu0 0.0
    %2593 = vmatpush.xpose.msra.mxu0 0.0
    %2594 = vmatpush.xpose.msra.mxu0 0.0
    %2595 = vmatpush.xpose.msra.mxu0 0.0
    %2596 = vmatpush.xpose.msra.mxu0 0.0
    %2597 = vmatpush.xpose.msra.mxu0 0.0
    %2598 = vmatpush.xpose.msra.mxu0 0.0
    %2599 = vmatpush.xpose.msra.mxu0 0.0
    %2600 = vmatpush.xpose.msra.mxu0 %v2583
    %2601 = vmatmul.f32.gmra.mxu0 %v2581
    %v2602 = vpop.f32.mrf.mxu0
    %v2603 = vadd.f32 0.0, %v2602
    %2604 = vdwg.mxu0
    %v2605 = vsel %vm574, %v2603, -inf
    %2606 = vmax.xlane.f32.xlu0 %v2605
    %v2607 = vpop.xlane.xlu0 %2606
    %v2608 = vsub.f32 %v2603, %v2607
    %v2609 = vmul.f32 %v2608, 1.442695
    %v2610 = vpow.pop %v2609
    %v2611 = vsel %vm574, %v2610, 0.0
    %2612 = vadd.xlane.f32.xlu0 %v2611
    %v2613 = vpop.xlane.xlu0 %2612
    %v2614 = vrcp.pop %v2613
    %v2615 = vmul.f32 %v2610, %v2614
    %2616 = vrot.lane.b32.xlu0 %v2485, 64
    %v2617 = vpop.permute.xlu0 %2616
    %v2619 = vsel %vm586, %v2615, 0
    %v2621 = vsel %vm590, %v2617, 0
    %2623 = vmatpush.msra.mxu0 0.0
    %2624 = vmatpush.msra.mxu0 0.0
    %2625 = vmatpush.msra.mxu0 0.0
    %2626 = vmatpush.msra.mxu0 0.0
    %2627 = vmatpush.msra.mxu0 0.0
    %2628 = vmatpush.msra.mxu0 0.0
    %2629 = vmatpush.msra.mxu0 0.0
    %2630 = vmatpush.msra.mxu0 0.0
    %2631 = vmatpush.msra.mxu0 0.0
    %2632 = vmatpush.msra.mxu0 0.0
    %2633 = vmatpush.msra.mxu0 0.0
    %2634 = vmatpush.msra.mxu0 0.0
    %2635 = vmatpush.msra.mxu0 0.0
    %2636 = vmatpush.msra.mxu0 0.0
    %2637 = vmatpush.msra.mxu0 0.0
    %2638 = vmatpush.msra.mxu0 %v2621
    %2639 = vmatmul.f32.gmra.mxu0 %v2619
    %v2640 = vpop.f32.mrf.mxu0
    %v2641 = vadd.f32 0.0, %v2640
    %2642 = vdwg.mxu0
    %2643 = vrot.lane.b32.xlu0 %v2442, 32
    %v2644 = vpop.permute.xlu0 %2643
    %2645 = vrot.lane.b32.xlu0 %v2446, 32
    %v2646 = vpop.permute.xlu0 %2645
    %v2647 = vsel %vm547, %v2644, 0
    %v2649 = vsel %vm547, %v2646, 0
    %2651 = vmatpush.xpose.msra.mxu0 0.0
    %2652 = vmatpush.xpose.msra.mxu0 0.0
    %2653 = vmatpush.xpose.msra.mxu0 0.0
    %2654 = vmatpush.xpose.msra.mxu0 0.0
    %2655 = vmatpush.xpose.msra.mxu0 0.0
    %2656 = vmatpush.xpose.msra.mxu0 0.0
    %2657 = vmatpush.xpose.msra.mxu0 0.0
    %2658 = vmatpush.xpose.msra.mxu0 0.0
    %2659 = vmatpush.xpose.msra.mxu0 0.0
    %2660 = vmatpush.xpose.msra.mxu0 0.0
    %2661 = vmatpush.xpose.msra.mxu0 0.0
    %2662 = vmatpush.xpose.msra.mxu0 0.0
    %2663 = vmatpush.xpose.msra.mxu0 0.0
    %2664 = vmatpush.xpose.msra.mxu0 0.0
    %2665 = vmatpush.xpose.msra.mxu0 0.0
    %2666 = vmatpush.xpose.msra.mxu0 %v2649
    %2667 = vmatmul.f32.gmra.mxu0 %v2647
    %v2668 = vpop.f32.mrf.mxu0
    %v2669 = vadd.f32 0.0, %v2668
    %2670 = vdwg.mxu0
    %v2671 = vsel %vm574, %v2669, -inf
    %2672 = vmax.xlane.f32.xlu0 %v2671
    %v2673 = vpop.xlane.xlu0 %2672
    %v2674 = vsub.f32 %v2669, %v2673
    %v2675 = vmul.f32 %v2674, 1.442695
    %v2676 = vpow.pop %v2675
    %v2677 = vsel %vm574, %v2676, 0.0
    %2678 = vadd.xlane.f32.xlu0 %v2677
    %v2679 = vpop.xlane.xlu0 %2678
    %v2680 = vrcp.pop %v2679
    %v2681 = vmul.f32 %v2676, %v2680
    %2682 = vrot.lane.b32.xlu0 %v2485, 32
    %v2683 = vpop.permute.xlu0 %2682
    %v2685 = vsel %vm586, %v2681, 0
    %v2687 = vsel %vm590, %v2683, 0
    %2689 = vmatpush.msra.mxu0 0.0
    %2690 = vmatpush.msra.mxu0 0.0
    %2691 = vmatpush.msra.mxu0 0.0
    %2692 = vmatpush.msra.mxu0 0.0
    %2693 = vmatpush.msra.mxu0 0.0
    %2694 = vmatpush.msra.mxu0 0.0
    %2695 = vmatpush.msra.mxu0 0.0
    %2696 = vmatpush.msra.mxu0 0.0
    %2697 = vmatpush.msra.mxu0 0.0
    %2698 = vmatpush.msra.mxu0 0.0
    %2699 = vmatpush.msra.mxu0 0.0
    %2700 = vmatpush.msra.mxu0 0.0
    %2701 = vmatpush.msra.mxu0 0.0
    %2702 = vmatpush.msra.mxu0 0.0
    %2703 = vmatpush.msra.mxu0 0.0
    %2704 = vmatpush.msra.mxu0 %v2687
    %2705 = vmatmul.f32.gmra.mxu0 %v2685
    %v2706 = vpop.f32.mrf.mxu0
    %v2707 = vadd.f32 0.0, %v2706
    %2708 = vdwg.mxu0
    %2710 = vrot.lane.b32.xlu0 %v2575, 32
    %v2711 = vpop.permute.xlu0 %2710
    %2714 = vrot.lane.b32.xlu0 %v2641, 64
    %v2715 = vpop.permute.xlu0 %2714
    %2718 = vrot.lane.b32.xlu0 %v2707, 96
    %v2719 = vpop.permute.xlu0 %2718
    %v2721 = vsel %vm547, %v2509, %v2711
    %v2722 = vsel %vm825, %v2721, %v2715
    %v2723 = vsel %vm827, %v2722, %v2719
    %v2725 = vrot.slane %v2723, 3
    %v2727 = vsel %vm590, %v2438, %v2725
    %v2728 = vpack.c.bf16 %v2725, %v2727
    %s2729 = scalar_lea.vmem [#allocation6], 64
    %v2730 = vld [vmem:[%s2729] sm:$0xf]
    %v2731 = vld [vmem:[%s2729 + $0x4] sm:$0xf]
    %v2732 = vld [vmem:[%s2729 + $0x8] sm:$0xf]
    %v2733 = vld [vmem:[%s2729 + $0xc] sm:$0xf]
    %v2734 = vld [vmem:[%s2729 + $0x10] sm:$0xf]
    %v2735 = vld [vmem:[%s2729 + $0x14] sm:$0xf]
    %v2736 = vld [vmem:[%s2729 + $0x18] sm:$0xf]
    %v2737 = vld [vmem:[%s2729 + $0x1c] sm:$0xf]
    %v2738 = vld [vmem:[%s2729 + $0x20] sm:$0xf]
    %v2739 = vld [vmem:[%s2729 + $0x24] sm:$0xf]
    %v2740 = vld [vmem:[%s2729 + $0x28] sm:$0xf]
    %v2741 = vld [vmem:[%s2729 + $0x2c] sm:$0xf]
    %v2742 = vld [vmem:[%s2729 + $0x30] sm:$0xf]
    %v2743 = vld [vmem:[%s2729 + $0x34] sm:$0xf]
    %v2744 = vld [vmem:[%s2729 + $0x38] sm:$0xf]
    %v2745 = vld [vmem:[%s2729 + $0x3c] sm:$0xf]
    %v2762 = vunpack.c.l.b16 %v2730
    %v2763 = vunpack.c.l.b16 %v2731
    %v2764 = vunpack.c.l.b16 %v2732
    %v2765 = vunpack.c.l.b16 %v2733
    %v2766 = vunpack.c.l.b16 %v2734
    %v2767 = vunpack.c.l.b16 %v2735
    %v2768 = vunpack.c.l.b16 %v2736
    %v2769 = vunpack.c.l.b16 %v2737
    %v2770 = vunpack.c.l.b16 %v2738
    %v2771 = vunpack.c.l.b16 %v2739
    %v2772 = vunpack.c.l.b16 %v2740
    %v2773 = vunpack.c.l.b16 %v2741
    %v2774 = vunpack.c.l.b16 %v2742
    %v2775 = vunpack.c.l.b16 %v2743
    %v2776 = vunpack.c.l.b16 %v2744
    %v2777 = vunpack.c.l.b16 %v2745
    %v2778 = vpack.c.b16 %v2763, %v2762
    %v2779 = vpack.c.b16 %v2765, %v2764
    %v2780 = vpack.c.b16 %v2767, %v2766
    %v2781 = vpack.c.b16 %v2769, %v2768
    %v2782 = vpack.c.b16 %v2771, %v2770
    %v2783 = vpack.c.b16 %v2773, %v2772
    %v2784 = vpack.c.b16 %v2775, %v2774
    %v2785 = vpack.c.b16 %v2777, %v2776
    %2794 = vmatpush.bf16.msra.mxu0 %v2785
    %2795 = vmatpush.bf16.msra.mxu0 %v2784
    %2796 = vmatpush.bf16.msra.mxu0 %v2783
    %2797 = vmatpush.bf16.msra.mxu0 %v2782
    %2798 = vmatpush.bf16.msra.mxu0 %v2781
    %2799 = vmatpush.bf16.msra.mxu0 %v2780
    %2800 = vmatpush.bf16.msra.mxu0 %v2779
    %2801 = vmatpush.bf16.msra.mxu0 %v2778
    %2802 = vmatmul.bf16.gmra.mxu0 %v2728
    %v2803 = vpop.f32.mrf.mxu0
    %v2804 = vadd.f32 0.0, %v2803
    %v2805 = vpop.f32.mrf.mxu0
    %v2806 = vadd.f32 0.0, %v2805
    %2807 = vdwg.mxu0
    %v2808 = vadd.f32 %v1900, %v2804
    %v2809 = vadd.f32 %v1901, %v2806
    %v2810 = vld [vmem:[#allocation4 + $0x23] ss:$0 sm:$0xff]
    %v2811 = vadd.f32 %v2808, %v2810
    %v2812 = vadd.f32 %v2809, %v2810
    %v2813 = vld [vmem:[#allocation4 + $0x24] ss:$0 sm:$0xff]
    %v2814 = vld [vmem:[#allocation4 + $0x25] ss:$0 sm:$0xff]
    %2815 = vadd.xlane.f32.xlu0 %v2811
    %v2816 = vpop.xlane.xlu0 %2815
    %v2817 = vsel %vm283, %v2812, 0.0
    %2818 = vadd.xlane.f32.xlu0 %v2817
    %v2819 = vpop.xlane.xlu0 %2818
    %v2820 = vmul.f32 %v2816, %v293
    %v2821 = vmul.f32 %v2819, %v293
    %v2822 = vsub.f32 %v2811, %v2820
    %v2823 = vsub.f32 %v2812, %v2821
    %v2824 = vmul.f32 %v2822, %v2822
    %v2825 = vmul.f32 %v2823, %v2823
    %2826 = vadd.xlane.f32.xlu0 %v2824
    %v2827 = vpop.xlane.xlu0 %2826
    %v2828 = vsel %vm283, %v2825, 0.0
    %2829 = vadd.xlane.f32.xlu0 %v2828
    %v2830 = vpop.xlane.xlu0 %2829
    %v2831 = vmul.f32 %v2827, %v293
    %v2832 = vmul.f32 %v2830, %v293
    %v2833 = vadd.f32 %v2831, 1e-06
    %v2834 = vadd.f32 %v2832, 1e-06
    %v2835 = vrsqrt.pop %v2833
    %v2836 = vmul.f32 %v2835, %v2833
    %v2837 = vmul.f32 %v2836, %v2835
    %v2838 = vmul.f32 0.5, %v2837
    %v2839 = vsub.f32 1.5, %v2838
    %v2840 = vmul.f32 %v2835, %v2839
    %vm2841 = vweird.f32 %v2833
    %vm2842 = vweird.f32 %v2835
    %vm2843 = vmor %vm2841, %vm2842
    %v2844 = vsel %vm2843, %v2835, %v2840
    %v2845 = vrsqrt.pop %v2834
    %v2846 = vmul.f32 %v2845, %v2834
    %v2847 = vmul.f32 %v2846, %v2845
    %v2848 = vmul.f32 0.5, %v2847
    %v2849 = vsub.f32 1.5, %v2848
    %v2850 = vmul.f32 %v2845, %v2849
    %vm2851 = vweird.f32 %v2834
    %vm2852 = vweird.f32 %v2845
    %vm2853 = vmor %vm2851, %vm2852
    %v2854 = vsel %vm2853, %v2845, %v2850
    %v2855 = vmul.f32 %v2822, %v2844
    %v2856 = vmul.f32 %v2823, %v2854
    %v2857 = vmul.f32 %v2855, %v2813
    %v2858 = vmul.f32 %v2856, %v2813
    %v2859 = vadd.f32 %v2857, %v2814
    %v2860 = vadd.f32 %v2858, %v2814
    %v2861 = vpack.c.bf16 %v2860, %v2859
    %s2862 = scalar_lea.vmem [#allocation7], 256
    %v2863 = vld [vmem:[%s2862] sm:$0xff]
    %v2864 = vld [vmem:[%s2862 + $0x8] sm:$0xff]
    %v2865 = vld [vmem:[%s2862 + $0x10] sm:$0xff]
    %v2866 = vld [vmem:[%s2862 + $0x18] sm:$0xff]
    %v2867 = vld [vmem:[%s2862 + $0x20] sm:$0xff]
    %v2868 = vld [vmem:[%s2862 + $0x28] sm:$0xff]
    %v2869 = vld [vmem:[%s2862 + $0x30] sm:$0xff]
    %v2870 = vld [vmem:[%s2862 + $0x38] sm:$0xff]
    %v2871 = vld [vmem:[%s2862 + $0x40] sm:$0xff]
    %v2872 = vld [vmem:[%s2862 + $0x48] sm:$0xff]
    %v2873 = vld [vmem:[%s2862 + $0x50] sm:$0xff]
    %v2874 = vld [vmem:[%s2862 + $0x58] sm:$0xff]
    %v2875 = vld [vmem:[%s2862 + $0x60] sm:$0xff]
    %v2876 = vld [vmem:[%s2862 + $0x68] sm:$0xff]
    %v2877 = vld [vmem:[%s2862 + $0x70] sm:$0xff]
    %v2878 = vld [vmem:[%s2862 + $0x78] sm:$0xff]
    %v2879 = vld [vmem:[%s2862 + $0x80] sm:$0xff]
    %v2880 = vld [vmem:[%s2862 + $0x88] sm:$0xff]
    %v2881 = vld [vmem:[%s2862 + $0x90] sm:$0xff]
    %v2882 = vld [vmem:[%s2862 + $0x98] sm:$0xff]
    %v2883 = vld [vmem:[%s2862 + $0xa0] sm:$0xff]
    %v2884 = vld [vmem:[%s2862 + $0xa8] sm:$0xff]
    %v2885 = vld [vmem:[%s2862 + $0xb0] sm:$0xff]
    %v2886 = vld [vmem:[%s2862 + $0xb8] sm:$0xff]
    %v2887 = vld [vmem:[%s2862 + $0xc0] sm:$0xff]
    %v2888 = vld [vmem:[%s2862 + $0xc8] sm:$0xff]
    %v2889 = vld [vmem:[%s2862 + $0xd0] sm:$0xff]
    %v2890 = vld [vmem:[%s2862 + $0xd8] sm:$0xff]
    %v2891 = vld [vmem:[%s2862 + $0xe0] sm:$0xff]
    %v2892 = vld [vmem:[%s2862 + $0xe8] sm:$0xff]
    %v2893 = vld [vmem:[%s2862 + $0xf0] sm:$0xff]
    %v2894 = vld [vmem:[%s2862 + $0xf8] sm:$0xff]
    %s2895 = scalar_lea.vmem [#allocation4], 38
    %v2896 = vld [vmem:[%s2895] ss:$8 sm:$0xf]
    %v2898 = vperm.slane %v2896, 0
    %v2899 = vperm.slane %v2896, 1
    %v2900 = vperm.slane %v2896, 2
    %v2901 = vperm.slane %v2896, 3
    %v2938 = vunpack.c.l.b16 %v2863
    %v2939 = vunpack.c.h.b16 %v2863
    %v2940 = vunpack.c.l.b16 %v2864
    %v2941 = vunpack.c.h.b16 %v2864
    %v2942 = vunpack.c.l.b16 %v2865
    %v2943 = vunpack.c.h.b16 %v2865
    %v2944 = vunpack.c.l.b16 %v2866
    %v2945 = vunpack.c.h.b16 %v2866
    %v2946 = vunpack.c.l.b16 %v2867
    %v2947 = vunpack.c.h.b16 %v2867
    %v2948 = vunpack.c.l.b16 %v2868
    %v2949 = vunpack.c.h.b16 %v2868
    %v2950 = vunpack.c.l.b16 %v2869
    %v2951 = vunpack.c.h.b16 %v2869
    %v2952 = vunpack.c.l.b16 %v2870
    %v2953 = vunpack.c.h.b16 %v2870
    %v2954 = vunpack.c.l.b16 %v2871
    %v2955 = vunpack.c.h.b16 %v2871
    %v2956 = vunpack.c.l.b16 %v2872
    %v2957 = vunpack.c.h.b16 %v2872
    %v2958 = vunpack.c.l.b16 %v2873
    %v2959 = vunpack.c.h.b16 %v2873
    %v2960 = vunpack.c.l.b16 %v2874
    %v2961 = vunpack.c.h.b16 %v2874
    %v2962 = vunpack.c.l.b16 %v2875
    %v2963 = vunpack.c.h.b16 %v2875
    %v2964 = vunpack.c.l.b16 %v2876
    %v2965 = vunpack.c.h.b16 %v2876
    %v2966 = vunpack.c.l.b16 %v2877
    %v2967 = vunpack.c.h.b16 %v2877
    %v2968 = vunpack.c.l.b16 %v2878
    %v2969 = vunpack.c.h.b16 %v2878
    %v2970 = vunpack.c.l.b16 %v2879
    %v2971 = vunpack.c.h.b16 %v2879
    %v2972 = vunpack.c.l.b16 %v2880
    %v2973 = vunpack.c.h.b16 %v2880
    %v2974 = vunpack.c.l.b16 %v2881
    %v2975 = vunpack.c.h.b16 %v2881
    %v2976 = vunpack.c.l.b16 %v2882
    %v2977 = vunpack.c.h.b16 %v2882
    %v2978 = vunpack.c.l.b16 %v2883
    %v2979 = vunpack.c.h.b16 %v2883
    %v2980 = vunpack.c.l.b16 %v2884
    %v2981 = vunpack.c.h.b16 %v2884
    %v2982 = vunpack.c.l.b16 %v2885
    %v2983 = vunpack.c.h.b16 %v2885
    %v2984 = vunpack.c.l.b16 %v2886
    %v2985 = vunpack.c.h.b16 %v2886
    %v2986 = vunpack.c.l.b16 %v2887
    %v2987 = vunpack.c.h.b16 %v2887
    %v2988 = vunpack.c.l.b16 %v2888
    %v2989 = vunpack.c.h.b16 %v2888
    %v2990 = vunpack.c.l.b16 %v2889
    %v2991 = vunpack.c.h.b16 %v2889
    %v2992 = vunpack.c.l.b16 %v2890
    %v2993 = vunpack.c.h.b16 %v2890
    %v2994 = vunpack.c.l.b16 %v2891
    %v2995 = vunpack.c.h.b16 %v2891
    %v2996 = vunpack.c.l.b16 %v2892
    %v2997 = vunpack.c.h.b16 %v2892
    %v2998 = vunpack.c.l.b16 %v2893
    %v2999 = vunpack.c.h.b16 %v2893
    %v3000 = vunpack.c.l.b16 %v2894
    %v3001 = vunpack.c.h.b16 %v2894
    %v3002 = vpack.c.b16 %v2942, %v2938
    %v3003 = vpack.c.b16 %v2943, %v2939
    %v3004 = vpack.c.b16 %v2944, %v2940
    %v3005 = vpack.c.b16 %v2945, %v2941
    %v3006 = vpack.c.b16 %v2950, %v2946
    %v3007 = vpack.c.b16 %v2951, %v2947
    %v3008 = vpack.c.b16 %v2952, %v2948
    %v3009 = vpack.c.b16 %v2953, %v2949
    %v3010 = vpack.c.b16 %v2958, %v2954
    %v3011 = vpack.c.b16 %v2959, %v2955
    %v3012 = vpack.c.b16 %v2960, %v2956
    %v3013 = vpack.c.b16 %v2961, %v2957
    %v3014 = vpack.c.b16 %v2966, %v2962
    %v3015 = vpack.c.b16 %v2967, %v2963
    %v3016 = vpack.c.b16 %v2968, %v2964
    %v3017 = vpack.c.b16 %v2969, %v2965
    %v3018 = vpack.c.b16 %v2974, %v2970
    %v3019 = vpack.c.b16 %v2975, %v2971
    %v3020 = vpack.c.b16 %v2976, %v2972
    %v3021 = vpack.c.b16 %v2977, %v2973
    %v3022 = vpack.c.b16 %v2982, %v2978
    %v3023 = vpack.c.b16 %v2983, %v2979
    %v3024 = vpack.c.b16 %v2984, %v2980
    %v3025 = vpack.c.b16 %v2985, %v2981
    %v3026 = vpack.c.b16 %v2990, %v2986
    %v3027 = vpack.c.b16 %v2991, %v2987
    %v3028 = vpack.c.b16 %v2992, %v2988
    %v3029 = vpack.c.b16 %v2993, %v2989
    %v3030 = vpack.c.b16 %v2998, %v2994
    %v3031 = vpack.c.b16 %v2999, %v2995
    %v3032 = vpack.c.b16 %v3000, %v2996
    %v3033 = vpack.c.b16 %v3001, %v2997
    %3066 = vmatpush.bf16.msra.mxu0 %v3030
    %3067 = vmatpush.bf16.msra.mxu0 %v3026
    %3068 = vmatpush.bf16.msra.mxu0 %v3022
    %3069 = vmatpush.bf16.msra.mxu0 %v3018
    %3070 = vmatpush.bf16.msra.mxu0 %v3014
    %3071 = vmatpush.bf16.msra.mxu0 %v3010
    %3072 = vmatpush.bf16.msra.mxu0 %v3006
    %3073 = vmatpush.bf16.msra.mxu0 %v3002
    %3074 = vmatmul.bf16.gmra.mxu0 %v2861
    %v3075 = vpop.f32.mrf.mxu0
    %v3076 = vadd.f32 %v2898, %v3075
    %v3077 = vpop.f32.mrf.mxu0
    %v3078 = vadd.f32 %v2898, %v3077
    %3079 = vdwg.mxu0
    %3080 = vmatpush.bf16.msra.mxu0 %v3031
    %3081 = vmatpush.bf16.msra.mxu0 %v3027
    %3082 = vmatpush.bf16.msra.mxu0 %v3023
    %3083 = vmatpush.bf16.msra.mxu0 %v3019
    %3084 = vmatpush.bf16.msra.mxu0 %v3015
    %3085 = vmatpush.bf16.msra.mxu0 %v3011
    %3086 = vmatpush.bf16.msra.mxu0 %v3007
    %3087 = vmatpush.bf16.msra.mxu0 %v3003
    %3088 = vmatmul.bf16.gmra.mxu0 %v2861
    %v3089 = vpop.f32.mrf.mxu0
    %v3090 = vadd.f32 %v2899, %v3089
    %v3091 = vpop.f32.mrf.mxu0
    %v3092 = vadd.f32 %v2899, %v3091
    %3093 = vdwg.mxu0
    %3094 = vmatpush.bf16.msra.mxu0 %v3032
    %3095 = vmatpush.bf16.msra.mxu0 %v3028
    %3096 = vmatpush.bf16.msra.mxu0 %v3024
    %3097 = vmatpush.bf16.msra.mxu0 %v3020
    %3098 = vmatpush.bf16.msra.mxu0 %v3016
    %3099 = vmatpush.bf16.msra.mxu0 %v3012
    %3100 = vmatpush.bf16.msra.mxu0 %v3008
    %3101 = vmatpush.bf16.msra.mxu0 %v3004
    %3102 = vmatmul.bf16.gmra.mxu0 %v2861
    %v3103 = vpop.f32.mrf.mxu0
    %v3104 = vadd.f32 %v2900, %v3103
    %v3105 = vpop.f32.mrf.mxu0
    %v3106 = vadd.f32 %v2900, %v3105
    %3107 = vdwg.mxu0
    %3108 = vmatpush.bf16.msra.mxu0 %v3033
    %3109 = vmatpush.bf16.msra.mxu0 %v3029
    %3110 = vmatpush.bf16.msra.mxu0 %v3025
    %3111 = vmatpush.bf16.msra.mxu0 %v3021
    %3112 = vmatpush.bf16.msra.mxu0 %v3017
    %3113 = vmatpush.bf16.msra.mxu0 %v3013
    %3114 = vmatpush.bf16.msra.mxu0 %v3009
    %3115 = vmatpush.bf16.msra.mxu0 %v3005
    %3116 = vmatmul.bf16.gmra.mxu0 %v2861
    %v3117 = vpop.f32.mrf.mxu0
    %v3118 = vadd.f32 %v2901, %v3117
    %v3119 = vpop.f32.mrf.mxu0
    %v3120 = vadd.f32 %v2901, %v3119
    %3121 = vdwg.mxu0
    %v3122 = vmul.f32 %v3076, %v3076
    %v3123 = vmul.f32 %v3090, %v3090
    %v3124 = vmul.f32 %v3104, %v3104
    %v3125 = vmul.f32 %v3118, %v3118
    %v3126 = vmul.f32 %v3078, %v3078
    %v3127 = vmul.f32 %v3092, %v3092
    %v3128 = vmul.f32 %v3106, %v3106
    %v3129 = vmul.f32 %v3120, %v3120
    %v3130 = vmul.f32 %v3076, %v3122
    %v3131 = vmul.f32 %v3090, %v3123
    %v3132 = vmul.f32 %v3104, %v3124
    %v3133 = vmul.f32 %v3118, %v3125
    %v3134 = vmul.f32 %v3078, %v3126
    %v3135 = vmul.f32 %v3092, %v3127
    %v3136 = vmul.f32 %v3106, %v3128
    %v3137 = vmul.f32 %v3120, %v3129
    %v3138 = vmul.f32 %v3130, 0.044715
    %v3139 = vmul.f32 %v3131, 0.044715
    %v3140 = vmul.f32 %v3132, 0.044715
    %v3141 = vmul.f32 %v3133, 0.044715
    %v3142 = vmul.f32 %v3134, 0.044715
    %v3143 = vmul.f32 %v3135, 0.044715
    %v3144 = vmul.f32 %v3136, 0.044715
    %v3145 = vmul.f32 %v3137, 0.044715
    %v3146 = vadd.f32 %v3076, %v3138
    %v3147 = vadd.f32 %v3090, %v3139
    %v3148 = vadd.f32 %v3104, %v3140
    %v3149 = vadd.f32 %v3118, %v3141
    %v3150 = vadd.f32 %v3078, %v3142
    %v3151 = vadd.f32 %v3092, %v3143
    %v3152 = vadd.f32 %v3106, %v3144
    %v3153 = vadd.f32 %v3120, %v3145
    %v3154 = vmul.f32 %v3146, 0.7978846
    %v3155 = vmul.f32 %v3147, 0.7978846
    %v3156 = vmul.f32 %v3148, 0.7978846
    %v3157 = vmul.f32 %v3149, 0.7978846
    %v3158 = vmul.f32 %v3150, 0.7978846
    %v3159 = vmul.f32 %v3151, 0.7978846
    %v3160 = vmul.f32 %v3152, 0.7978846
    %v3161 = vmul.f32 %v3153, 0.7978846
    %v3162 = vtanh.pop %v3154
    %v3163 = vtanh.pop %v3155
    %v3164 = vtanh.pop %v3156
    %v3165 = vtanh.pop %v3157
    %v3166 = vtanh.pop %v3158
    %v3167 = vtanh.pop %v3159
    %v3168 = vtanh.pop %v3160
    %v3169 = vtanh.pop %v3161
    %v3170 = vadd.f32 %v3162, 1.0
    %v3171 = vadd.f32 %v3163, 1.0
    %v3172 = vadd.f32 %v3164, 1.0
    %v3173 = vadd.f32 %v3165, 1.0
    %v3174 = vadd.f32 %v3166, 1.0
    %v3175 = vadd.f32 %v3167, 1.0
    %v3176 = vadd.f32 %v3168, 1.0
    %v3177 = vadd.f32 %v3169, 1.0
    %v3178 = vmul.f32 %v3170, 0.5
    %v3179 = vmul.f32 %v3171, 0.5
    %v3180 = vmul.f32 %v3172, 0.5
    %v3181 = vmul.f32 %v3173, 0.5
    %v3182 = vmul.f32 %v3174, 0.5
    %v3183 = vmul.f32 %v3175, 0.5
    %v3184 = vmul.f32 %v3176, 0.5
    %v3185 = vmul.f32 %v3177, 0.5
    %v3186 = vmul.f32 %v3076, %v3178
    %v3187 = vmul.f32 %v3090, %v3179
    %v3188 = vmul.f32 %v3104, %v3180
    %v3189 = vmul.f32 %v3118, %v3181
    %v3190 = vmul.f32 %v3078, %v3182
    %v3191 = vmul.f32 %v3092, %v3183
    %v3192 = vmul.f32 %v3106, %v3184
    %v3193 = vmul.f32 %v3120, %v3185
    %v3194 = vpack.c.bf16 %v3190, %v3186
    %v3195 = vpack.c.bf16 %v3191, %v3187
    %v3196 = vpack.c.bf16 %v3192, %v3188
    %v3197 = vpack.c.bf16 %v3193, %v3189
    %s3198 = scalar_lea.vmem [#allocation9], 256
    %v3199 = vld [vmem:[%s3198] sm:$0xf]
    %v3200 = vld [vmem:[%s3198 + $0x4] sm:$0xf]
    %v3201 = vld [vmem:[%s3198 + $0x8] sm:$0xf]
    %v3202 = vld [vmem:[%s3198 + $0xc] sm:$0xf]
    %v3203 = vld [vmem:[%s3198 + $0x10] sm:$0xf]
    %v3204 = vld [vmem:[%s3198 + $0x14] sm:$0xf]
    %v3205 = vld [vmem:[%s3198 + $0x18] sm:$0xf]
    %v3206 = vld [vmem:[%s3198 + $0x1c] sm:$0xf]
    %v3207 = vld [vmem:[%s3198 + $0x20] sm:$0xf]
    %v3208 = vld [vmem:[%s3198 + $0x24] sm:$0xf]
    %v3209 = vld [vmem:[%s3198 + $0x28] sm:$0xf]
    %v3210 = vld [vmem:[%s3198 + $0x2c] sm:$0xf]
    %v3211 = vld [vmem:[%s3198 + $0x30] sm:$0xf]
    %v3212 = vld [vmem:[%s3198 + $0x34] sm:$0xf]
    %v3213 = vld [vmem:[%s3198 + $0x38] sm:$0xf]
    %v3214 = vld [vmem:[%s3198 + $0x3c] sm:$0xf]
    %v3215 = vld [vmem:[%s3198 + $0x40] sm:$0xf]
    %v3216 = vld [vmem:[%s3198 + $0x44] sm:$0xf]
    %v3217 = vld [vmem:[%s3198 + $0x48] sm:$0xf]
    %v3218 = vld [vmem:[%s3198 + $0x4c] sm:$0xf]
    %v3219 = vld [vmem:[%s3198 + $0x50] sm:$0xf]
    %v3220 = vld [vmem:[%s3198 + $0x54] sm:$0xf]
    %v3221 = vld [vmem:[%s3198 + $0x58] sm:$0xf]
    %v3222 = vld [vmem:[%s3198 + $0x5c] sm:$0xf]
    %v3223 = vld [vmem:[%s3198 + $0x60] sm:$0xf]
    %v3224 = vld [vmem:[%s3198 + $0x64] sm:$0xf]
    %v3225 = vld [vmem:[%s3198 + $0x68] sm:$0xf]
    %v3226 = vld [vmem:[%s3198 + $0x6c] sm:$0xf]
    %v3227 = vld [vmem:[%s3198 + $0x70] sm:$0xf]
    %v3228 = vld [vmem:[%s3198 + $0x74] sm:$0xf]
    %v3229 = vld [vmem:[%s3198 + $0x78] sm:$0xf]
    %v3230 = vld [vmem:[%s3198 + $0x7c] sm:$0xf]
    %v3231 = vld [vmem:[%s3198 + $0x80] sm:$0xf]
    %v3232 = vld [vmem:[%s3198 + $0x84] sm:$0xf]
    %v3233 = vld [vmem:[%s3198 + $0x88] sm:$0xf]
    %v3234 = vld [vmem:[%s3198 + $0x8c] sm:$0xf]
    %v3235 = vld [vmem:[%s3198 + $0x90] sm:$0xf]
    %v3236 = vld [vmem:[%s3198 + $0x94] sm:$0xf]
    %v3237 = vld [vmem:[%s3198 + $0x98] sm:$0xf]
    %v3238 = vld [vmem:[%s3198 + $0x9c] sm:$0xf]
    %v3239 = vld [vmem:[%s3198 + $0xa0] sm:$0xf]
    %v3240 = vld [vmem:[%s3198 + $0xa4] sm:$0xf]
    %v3241 = vld [vmem:[%s3198 + $0xa8] sm:$0xf]
    %v3242 = vld [vmem:[%s3198 + $0xac] sm:$0xf]
    %v3243 = vld [vmem:[%s3198 + $0xb0] sm:$0xf]
    %v3244 = vld [vmem:[%s3198 + $0xb4] sm:$0xf]
    %v3245 = vld [vmem:[%s3198 + $0xb8] sm:$0xf]
    %v3246 = vld [vmem:[%s3198 + $0xbc] sm:$0xf]
    %v3247 = vld [vmem:[%s3198 + $0xc0] sm:$0xf]
    %v3248 = vld [vmem:[%s3198 + $0xc4] sm:$0xf]
    %v3249 = vld [vmem:[%s3198 + $0xc8] sm:$0xf]
    %v3250 = vld [vmem:[%s3198 + $0xcc] sm:$0xf]
    %v3251 = vld [vmem:[%s3198 + $0xd0] sm:$0xf]
    %v3252 = vld [vmem:[%s3198 + $0xd4] sm:$0xf]
    %v3253 = vld [vmem:[%s3198 + $0xd8] sm:$0xf]
    %v3254 = vld [vmem:[%s3198 + $0xdc] sm:$0xf]
    %v3255 = vld [vmem:[%s3198 + $0xe0] sm:$0xf]
    %v3256 = vld [vmem:[%s3198 + $0xe4] sm:$0xf]
    %v3257 = vld [vmem:[%s3198 + $0xe8] sm:$0xf]
    %v3258 = vld [vmem:[%s3198 + $0xec] sm:$0xf]
    %v3259 = vld [vmem:[%s3198 + $0xf0] sm:$0xf]
    %v3260 = vld [vmem:[%s3198 + $0xf4] sm:$0xf]
    %v3261 = vld [vmem:[%s3198 + $0xf8] sm:$0xf]
    %v3262 = vld [vmem:[%s3198 + $0xfc] sm:$0xf]
    %v3263 = vld [vmem:[#allocation4 + $0x27] ss:$0 sm:$0xff]
    %v3328 = vunpack.c.l.b16 %v3199
    %v3329 = vunpack.c.l.b16 %v3200
    %v3330 = vunpack.c.l.b16 %v3201
    %v3331 = vunpack.c.l.b16 %v3202
    %v3332 = vunpack.c.l.b16 %v3203
    %v3333 = vunpack.c.l.b16 %v3204
    %v3334 = vunpack.c.l.b16 %v3205
    %v3335 = vunpack.c.l.b16 %v3206
    %v3336 = vunpack.c.l.b16 %v3207
    %v3337 = vunpack.c.l.b16 %v3208
    %v3338 = vunpack.c.l.b16 %v3209
    %v3339 = vunpack.c.l.b16 %v3210
    %v3340 = vunpack.c.l.b16 %v3211
    %v3341 = vunpack.c.l.b16 %v3212
    %v3342 = vunpack.c.l.b16 %v3213
    %v3343 = vunpack.c.l.b16 %v3214
    %v3344 = vunpack.c.l.b16 %v3215
    %v3345 = vunpack.c.l.b16 %v3216
    %v3346 = vunpack.c.l.b16 %v3217
    %v3347 = vunpack.c.l.b16 %v3218
    %v3348 = vunpack.c.l.b16 %v3219
    %v3349 = vunpack.c.l.b16 %v3220
    %v3350 = vunpack.c.l.b16 %v3221
    %v3351 = vunpack.c.l.b16 %v3222
    %v3352 = vunpack.c.l.b16 %v3223
    %v3353 = vunpack.c.l.b16 %v3224
    %v3354 = vunpack.c.l.b16 %v3225
    %v3355 = vunpack.c.l.b16 %v3226
    %v3356 = vunpack.c.l.b16 %v3227
    %v3357 = vunpack.c.l.b16 %v3228
    %v3358 = vunpack.c.l.b16 %v3229
    %v3359 = vunpack.c.l.b16 %v3230
    %v3360 = vunpack.c.l.b16 %v3231
    %v3361 = vunpack.c.l.b16 %v3232
    %v3362 = vunpack.c.l.b16 %v3233
    %v3363 = vunpack.c.l.b16 %v3234
    %v3364 = vunpack.c.l.b16 %v3235
    %v3365 = vunpack.c.l.b16 %v3236
    %v3366 = vunpack.c.l.b16 %v3237
    %v3367 = vunpack.c.l.b16 %v3238
    %v3368 = vunpack.c.l.b16 %v3239
    %v3369 = vunpack.c.l.b16 %v3240
    %v3370 = vunpack.c.l.b16 %v3241
    %v3371 = vunpack.c.l.b16 %v3242
    %v3372 = vunpack.c.l.b16 %v3243
    %v3373 = vunpack.c.l.b16 %v3244
    %v3374 = vunpack.c.l.b16 %v3245
    %v3375 = vunpack.c.l.b16 %v3246
    %v3376 = vunpack.c.l.b16 %v3247
    %v3377 = vunpack.c.l.b16 %v3248
    %v3378 = vunpack.c.l.b16 %v3249
    %v3379 = vunpack.c.l.b16 %v3250
    %v3380 = vunpack.c.l.b16 %v3251
    %v3381 = vunpack.c.l.b16 %v3252
    %v3382 = vunpack.c.l.b16 %v3253
    %v3383 = vunpack.c.l.b16 %v3254
    %v3384 = vunpack.c.l.b16 %v3255
    %v3385 = vunpack.c.l.b16 %v3256
    %v3386 = vunpack.c.l.b16 %v3257
    %v3387 = vunpack.c.l.b16 %v3258
    %v3388 = vunpack.c.l.b16 %v3259
    %v3389 = vunpack.c.l.b16 %v3260
    %v3390 = vunpack.c.l.b16 %v3261
    %v3391 = vunpack.c.l.b16 %v3262
    %v3392 = vpack.c.b16 %v3329, %v3328
    %v3393 = vpack.c.b16 %v3331, %v3330
    %v3394 = vpack.c.b16 %v3333, %v3332
    %v3395 = vpack.c.b16 %v3335, %v3334
    %v3396 = vpack.c.b16 %v3337, %v3336
    %v3397 = vpack.c.b16 %v3339, %v3338
    %v3398 = vpack.c.b16 %v3341, %v3340
    %v3399 = vpack.c.b16 %v3343, %v3342
    %v3400 = vpack.c.b16 %v3345, %v3344
    %v3401 = vpack.c.b16 %v3347, %v3346
    %v3402 = vpack.c.b16 %v3349, %v3348
    %v3403 = vpack.c.b16 %v3351, %v3350
    %v3404 = vpack.c.b16 %v3353, %v3352
    %v3405 = vpack.c.b16 %v3355, %v3354
    %v3406 = vpack.c.b16 %v3357, %v3356
    %v3407 = vpack.c.b16 %v3359, %v3358
    %v3408 = vpack.c.b16 %v3361, %v3360
    %v3409 = vpack.c.b16 %v3363, %v3362
    %v3410 = vpack.c.b16 %v3365, %v3364
    %v3411 = vpack.c.b16 %v3367, %v3366
    %v3412 = vpack.c.b16 %v3369, %v3368
    %v3413 = vpack.c.b16 %v3371, %v3370
    %v3414 = vpack.c.b16 %v3373, %v3372
    %v3415 = vpack.c.b16 %v3375, %v3374
    %v3416 = vpack.c.b16 %v3377, %v3376
    %v3417 = vpack.c.b16 %v3379, %v3378
    %v3418 = vpack.c.b16 %v3381, %v3380
    %v3419 = vpack.c.b16 %v3383, %v3382
    %v3420 = vpack.c.b16 %v3385, %v3384
    %v3421 = vpack.c.b16 %v3387, %v3386
    %v3422 = vpack.c.b16 %v3389, %v3388
    %v3423 = vpack.c.b16 %v3391, %v3390
    %3456 = vmatpush.bf16.msra.mxu0 %v3399
    %3457 = vmatpush.bf16.msra.mxu0 %v3398
    %3458 = vmatpush.bf16.msra.mxu0 %v3397
    %3459 = vmatpush.bf16.msra.mxu0 %v3396
    %3460 = vmatpush.bf16.msra.mxu0 %v3395
    %3461 = vmatpush.bf16.msra.mxu0 %v3394
    %3462 = vmatpush.bf16.msra.mxu0 %v3393
    %3463 = vmatpush.bf16.msra.mxu0 %v3392
    %3464 = vmatmul.bf16.gmra.mxu0 %v3194
    %v3465 = vpop.f32.mrf.mxu0
    %v3466 = vadd.f32 %v3263, %v3465
    %v3467 = vpop.f32.mrf.mxu0
    %3468 = vdwg.mxu0
    %3469 = vmatpush.bf16.msra.mxu0 %v3407
    %3470 = vmatpush.bf16.msra.mxu0 %v3406
    %3471 = vmatpush.bf16.msra.mxu0 %v3405
    %3472 = vmatpush.bf16.msra.mxu0 %v3404
    %3473 = vmatpush.bf16.msra.mxu0 %v3403
    %3474 = vmatpush.bf16.msra.mxu0 %v3402
    %3475 = vmatpush.bf16.msra.mxu0 %v3401
    %3476 = vmatpush.bf16.msra.mxu0 %v3400
    %3477 = vmatmul.bf16.gmra.mxu0 %v3195
    %v3478 = vpop.f32.mrf.mxu0
    %v3479 = vadd.f32 %v3466, %v3478
    %v3480 = vpop.f32.mrf.mxu0
    %3481 = vdwg.mxu0
    %3482 = vmatpush.bf16.msra.mxu0 %v3415
    %3483 = vmatpush.bf16.msra.mxu0 %v3414
    %3484 = vmatpush.bf16.msra.mxu0 %v3413
    %3485 = vmatpush.bf16.msra.mxu0 %v3412
    %3486 = vmatpush.bf16.msra.mxu0 %v3411
    %3487 = vmatpush.bf16.msra.mxu0 %v3410
    %3488 = vmatpush.bf16.msra.mxu0 %v3409
    %3489 = vmatpush.bf16.msra.mxu0 %v3408
    %3490 = vmatmul.bf16.gmra.mxu0 %v3196
    %v3491 = vpop.f32.mrf.mxu0
    %v3492 = vadd.f32 %v3479, %v3491
    %v3493 = vpop.f32.mrf.mxu0
    %3494 = vdwg.mxu0
    %3495 = vmatpush.bf16.msra.mxu0 %v3423
    %3496 = vmatpush.bf16.msra.mxu0 %v3422
    %3497 = vmatpush.bf16.msra.mxu0 %v3421
    %3498 = vmatpush.bf16.msra.mxu0 %v3420
    %3499 = vmatpush.bf16.msra.mxu0 %v3419
    %3500 = vmatpush.bf16.msra.mxu0 %v3418
    %3501 = vmatpush.bf16.msra.mxu0 %v3417
    %3502 = vmatpush.bf16.msra.mxu0 %v3416
    %3503 = vmatmul.bf16.gmra.mxu0 %v3197
    %v3504 = vpop.f32.mrf.mxu0
    %v3505 = vadd.f32 %v3492, %v3504
    %v3506 = vpop.f32.mrf.mxu0
    %3507 = vdwg.mxu0
    %v3508 = vadd.f32 %v2811, %v3505
    %v3510 = vrot.slane %v3508, 4
    %vm3512 = vcmask 1040384
    %v3513 = vsel %vm3512, %v3508, %v3510
    %v3514 = vld [vmem:[#allocation4 + $0x40] ss:$0 sm:$0xff]
    %v3515 = vld [vmem:[#allocation4 + $0x41] ss:$0 sm:$0xff]
    %v3516 = vsel %vm283, %v3513, 0.0
    %3517 = vadd.xlane.f32.xlu0 %v3516
    %v3518 = vpop.xlane.xlu0 %3517
    %v3519 = vmul.f32 %v3518, %v293
    %v3520 = vsub.f32 %v3513, %v3519
    %v3521 = vmul.f32 %v3520, %v3520
    %v3522 = vsel %vm283, %v3521, 0.0
    %3523 = vadd.xlane.f32.xlu0 %v3522
    %v3524 = vpop.xlane.xlu0 %3523
    %v3525 = vmul.f32 %v3524, %v293
    %v3526 = vadd.f32 %v3525, 1e-06
    %v3527 = vrsqrt.pop %v3526
    %v3528 = vmul.f32 %v3527, %v3526
    %v3529 = vmul.f32 %v3528, %v3527
    %v3530 = vmul.f32 0.5, %v3529
    %v3531 = vsub.f32 1.5, %v3530
    %v3532 = vmul.f32 %v3527, %v3531
    %vm3533 = vweird.f32 %v3526
    %vm3534 = vweird.f32 %v3527
    %vm3535 = vmor %vm3533, %vm3534
    %v3536 = vsel %vm3535, %v3527, %v3532
    %v3537 = vmul.f32 %v3520, %v3536
    %v3538 = vmul.f32 %v3537, %v3514
    %v3539 = vadd.f32 %v3538, %v3515
    %v3540 = vld [vmem:[#allocation4 + $0x42] ss:$0 sm:$0xff]
    %v3541 = vmul.f32 %v3539, %v3540
    %v3542 = vsel %vm283, %v3541, 0.0
    %3543 = vadd.xlane.f32.xlu0 %v3542
    %v3544 = vpop.xlane.xlu0 %3543
    %v3545 = vld [vmem:[#allocation4 + $0x43] ss:$0 sm:$0xff]
    %v3546 = vadd.f32 %v3544, %v3545
    %3547 = vst [vmem:[%s8] sm:$0x3] %v3546
    // Predicated region
    $region54: #{forward.1} parent=1 // pred_check
      _
    $region55: #{forward.1} parent=1 // pred_check_branch
      %3549 = sbr.rel (0) target = $region57
    $region56: #{forward.1} parent=1 // pred_region
      _
    $region57: #{forward.1} parent=1 // pred_fallthru
      _
    // Predicated region
    $region58: #{forward.1} parent=1 // pred_check
      _
    $region59: #{forward.1} parent=1 // pred_check_branch
      %3551 = sbr.rel (0) target = $region61
    $region60: #{forward.1} parent=1 // pred_region
      _
    $region61: #{forward.1} parent=1 // pred_fallthru
      _
    %3552 = vsyncpa [#allocation3], 1
    %3553 = vsyncpa [#allocation5], 1
    %3554 = vsyncpa [#allocation8], 1

</llo_original>
